<compile_context>
chip_gen: v7x
topology: tpu7x:2x2x1
jax: 0.10.0
libtpu: 0.0.40
codegen_flags: <defaults>
</compile_context>

<pallas_src>
import functools

import numpy as np
import jax
import jax.numpy as jnp
from jax import lax
from jax.experimental import pallas as pl
from jax.experimental.pallas import tpu as pltpu


# Explicit scoped-VMEM budget: above the 16/32 MiB defaults so blocks are not
# silently shrunk, below every generation's physical VMEM (v7x = 64 MiB).
_VMEM_LIMIT = 48 * 1024 * 1024


# ----------------------------------------------------------------------------
# Kernel 1: fused conv_p1 + conv_c1 (3x3, pad=1, no bias) + folded BN + ReLU
# 9 accumulated per-tap matmuls; halo built in a VMEM scratch (no wrapper pad).
# ----------------------------------------------------------------------------
def _conv1_kernel(x_ref, w_ref, s_ref, sh_ref, o_ref, pad_scr, *, H, W):
    Cin = x_ref.shape[-1]
    Cout = w_ref.shape[-1]
    pad_scr[...] = jnp.zeros_like(pad_scr)
    pad_scr[pl.ds(1, H), pl.ds(1, W), :] = x_ref[0].astype(pad_scr.dtype)
    acc = jnp.zeros((H * W, Cout), jnp.float32)
    for ky in range(3):
        for kx in range(3):
            patch = pad_scr[pl.ds(ky, H), pl.ds(kx, W), :].reshape(H * W, Cin)
            acc = acc + jnp.dot(patch, w_ref[3 * ky + kx],
                                preferred_element_type=jnp.float32)
    y = jnp.maximum(acc * s_ref[...] + sh_ref[...], 0.0)
    o_ref[0] = y.reshape(H, W, Cout).astype(o_ref.dtype)


def conv1_fused(x, w1, s1, sh1):
    B, H, W, Cin = x.shape
    Cout = w1.shape[-1]
    kern = functools.partial(_conv1_kernel, H=H, W=W)
    return pl.pallas_call(
        kern,
        out_shape=jax.ShapeDtypeStruct((B, H, W, Cout), jnp.bfloat16),
        grid=(B,),
        in_specs=[
            pl.BlockSpec((1, H, W, Cin), lambda b: (b, 0, 0, 0)),
            pl.BlockSpec((9, Cin, Cout), lambda b: (0, 0, 0)),
            pl.BlockSpec((1, Cout), lambda b: (0, 0)),
            pl.BlockSpec((1, Cout), lambda b: (0, 0)),
        ],
        out_specs=pl.BlockSpec((1, H, W, Cout), lambda b: (b, 0, 0, 0)),
        scratch_shapes=[pltpu.VMEM((H + 2, W + 2, Cin), jnp.bfloat16)],
        compiler_params=pltpu.CompilerParams(
            dimension_semantics=("parallel",),
            vmem_limit_bytes=_VMEM_LIMIT),
    )(x, w1, s1, sh1)


# ----------------------------------------------------------------------------
# Kernel 2: fused position attention (flash-style) + channel attention
# ----------------------------------------------------------------------------
def _pam_cam_kernel(f1_ref, wproj_ref, bproj_ref, ab_ref, o_ref, proj_scr,
                    *, H, W, Ci, Cq, KB):
    N = H * W
    xf = f1_ref[0].reshape(N, 2 * Ci)        # bf16
    xp = xf[:, :Ci]       # conv_p1 branch -> position attention
    xc = xf[:, Ci:]       # conv_c1 branch -> channel attention

    # ---- Position attention: fused [conv_b | conv_c | conv_d] projection ----
    proj_scr[...] = (jnp.dot(xp, wproj_ref[...],
                             preferred_element_type=jnp.float32)
                     + bproj_ref[...])
    fb = proj_scr[:, pl.ds(0, Cq)].astype(jnp.bfloat16)      # queries (N, Cq)

    nkb = N // KB

    # Flash-style online softmax over key blocks: the (N, N) logits / p are
    # never materialized; per-block exp overlaps with the p @ v matmul.
    def kv_step(kb, carry):
        m_i, l_i, acc = carry
        start = kb * KB
        if not isinstance(kb, int):
            start = pl.multiple_of(start, KB)
        kblk = proj_scr[pl.ds(start, KB), pl.ds(Cq, Cq)].astype(jnp.bfloat16)
        vblk = proj_scr[pl.ds(start, KB), pl.ds(2 * Cq, Ci)].astype(jnp.bfloat16)
        s = lax.dot_general(fb, kblk, (((1,), (1,)), ((), ())),
                            preferred_element_type=jnp.float32)      # (N, KB)
        m_new = jnp.maximum(m_i, jnp.max(s, axis=-1, keepdims=True))
        corr = jnp.exp(m_i - m_new)
        p = jnp.exp(s - m_new)
        l_new = corr * l_i + jnp.sum(p, axis=-1, keepdims=True)
        acc_new = corr * acc + jnp.dot(p.astype(jnp.bfloat16), vblk,
                                       preferred_element_type=jnp.float32)
        return m_new, l_new, acc_new

    carry = (jnp.full((N, 1), -jnp.inf, jnp.float32),
             jnp.zeros((N, 1), jnp.float32),
             jnp.zeros((N, Ci), jnp.float32))
    if nkb <= 4:                      # short static trip count -> unroll
        for kb in range(nkb):
            carry = kv_step(kb, carry)
    else:
        carry = lax.fori_loop(0, nkb, kv_step, carry)
    _, l_f, acc_f = carry
    alpha = ab_ref[0, 0]
    # attn @ d == (p @ d) * (1/l): fold alpha + softmax denom into one row scale
    out_p = xp.astype(jnp.float32) + (alpha * pl.reciprocal(l_f, approx=True)) * acc_f

    # ---- Channel attention: (Ci, Ci) gram, bf16 MXU operands, f32 accum ----
    gram = lax.dot_general(xc, xc, (((0,), (0,)), ((), ())),
                           preferred_element_type=jnp.float32)       # (Ci, Ci)
    new = jnp.max(gram, axis=-1, keepdims=True) - gram
    pc = jnp.exp(new - jnp.max(new, axis=-1, keepdims=True))
    lc = jnp.sum(pc, axis=-1, keepdims=True)
    attn_c = (pc * pl.reciprocal(lc, approx=True)).astype(jnp.bfloat16)
    et = lax.dot_general(xc, attn_c, (((1,), (1,)), ((), ())),
                         preferred_element_type=jnp.float32)         # (N, Ci)
    beta = ab_ref[0, 1]
    out_c = xc.astype(jnp.float32) + beta * et

    # branch-interleaved bf16 output: rows (2b, 2b+1) = (PAM, CAM) for batch b
    o_ref[0] = out_p.reshape(H, W, Ci).astype(o_ref.dtype)
    o_ref[1] = out_c.reshape(H, W, Ci).astype(o_ref.dtype)


def pam_cam_fused(f1, wproj, bproj, ab, Ci, Cq):
    B, H, W, C2 = f1.shape
    N = H * W
    # key-block size; raise to 256/512 at production sizes on v6e/v7x
    KB = 128 if (N % 128 == 0 and N > 128) else N
    kern = functools.partial(_pam_cam_kernel, H=H, W=W, Ci=Ci, Cq=Cq, KB=KB)
    return pl.pallas_call(
        kern,
        out_shape=jax.ShapeDtypeStruct((2 * B, H, W, Ci), jnp.bfloat16),
        grid=(B,),
        in_specs=[
            pl.BlockSpec((1, H, W, C2), lambda b: (b, 0, 0, 0)),
            pl.BlockSpec((Ci, 2 * Cq + Ci), lambda b: (0, 0)),
            pl.BlockSpec((1, 2 * Cq + Ci), lambda b: (0, 0)),
            pl.BlockSpec(memory_space=pltpu.MemorySpace.SMEM),   # [alpha, beta]
        ],
        out_specs=pl.BlockSpec((2, H, W, Ci), lambda b: (b, 0, 0, 0)),
        scratch_shapes=[pltpu.VMEM((N, 2 * Cq + Ci), jnp.float32)],
        compiler_params=pltpu.CompilerParams(
            dimension_semantics=("parallel",),
            vmem_limit_bytes=_VMEM_LIMIT),
    )(f1, wproj, bproj, ab)


# ----------------------------------------------------------------------------
# Kernel 3: conv_p2/conv_c2 + BN + ReLU + fused final 1x1 conv + fusion add.
# Both branches arrive in one block; the two conv+1x1 partial chains are
# unrolled in-kernel into one f32 accumulator (no branch grid axis, no o_ref
# read-modify-write). (Dropout(0.1) is identity in eval mode.)
# ----------------------------------------------------------------------------
def _conv2_out_kernel(att_ref, w2_ref, s2_ref, sh2_ref, wout_ref, bout_ref,
                      o_ref, pad_scr, *, H, W):
    Ci = att_ref.shape[-1]
    ncp = wout_ref.shape[-1]
    pad_scr[...] = jnp.zeros_like(pad_scr)
    pad_scr[:, pl.ds(1, H), pl.ds(1, W), :] = att_ref[...]
    out = jnp.zeros((H * W, ncp), jnp.float32)
    for r in range(2):        # branch unroll: r=0 PAM path, r=1 CAM path
        acc = jnp.zeros((H * W, Ci), jnp.float32)
        for ky in range(3):
            for kx in range(3):
                patch = pad_scr[r, pl.ds(ky, H), pl.ds(kx, W), :].reshape(H * W, Ci)
                acc = acc + jnp.dot(patch, w2_ref[r, 3 * ky + kx],
                                    preferred_element_type=jnp.float32)
        y = jnp.maximum(acc * s2_ref[r] + sh2_ref[r], 0.0).astype(jnp.bfloat16)
        out = out + jnp.dot(y, wout_ref[...], preferred_element_type=jnp.float32)
    o_ref[0] = out + bout_ref[...]


def conv2_and_out(att, w2, s2, sh2, wout, bout):
    twoB, H, W, Ci = att.shape
    B = twoB // 2
    ncp = wout.shape[-1]
    kern = functools.partial(_conv2_out_kernel, H=H, W=W)
    return pl.pallas_call(
        kern,
        out_shape=jax.ShapeDtypeStruct((B, H * W, ncp), jnp.float32),
        grid=(B,),
        in_specs=[
            pl.BlockSpec((2, H, W, Ci), lambda b: (b, 0, 0, 0)),
            pl.BlockSpec((2, 9, Ci, Ci), lambda b: (0, 0, 0, 0)),
            pl.BlockSpec((2, 1, Ci), lambda b: (0, 0, 0)),
            pl.BlockSpec((2, 1, Ci), lambda b: (0, 0, 0)),
            pl.BlockSpec((Ci, ncp), lambda b: (0, 0)),
            pl.BlockSpec((1, ncp), lambda b: (0, 0)),
        ],
        out_specs=pl.BlockSpec((1, H * W, ncp), lambda b: (b, 0, 0)),
        scratch_shapes=[pltpu.VMEM((2, H + 2, W + 2, Ci), jnp.bfloat16)],
        compiler_params=pltpu.CompilerParams(
            dimension_semantics=("parallel",),
            vmem_limit_bytes=_VMEM_LIMIT),
    )(att, w2, s2, sh2, wout, bout)


# ----------------------------------------------------------------------------
# Full _DAHead forward (Pallas path)
# ----------------------------------------------------------------------------
def da_head_forward(x_nchw, P, nclass):
    x = jnp.transpose(x_nchw, (0, 2, 3, 1)).astype(jnp.float32)        # NCHW -> NHWC
    B, H, W, _ = x.shape
    Ci = P["w2"].shape[-1]
    Cq = (P["wproj"].shape[-1] - Ci) // 2

    f1 = conv1_fused(x, P["w1"], P["s1"], P["sh1"])                    # (B,H,W,2Ci) bf16
    att = pam_cam_fused(f1, P["wproj"], P["bproj"], P["ab"], Ci, Cq)   # (2B,H,W,Ci) bf16
    y = conv2_and_out(att, P["w2"], P["s2"], P["sh2"], P["wout"], P["bout"])
    y = y[:, :, :nclass].reshape(B, H, W, nclass)                      # drop lane padding
    return (jnp.transpose(y, (0, 3, 1, 2)),)                           # NCHW, tuple


# ----------------------------------------------------------------------------
# Pure-JAX reference (same math, incl. bf16 casts / bf16 inter-stage storage)
# ----------------------------------------------------------------------------
def _ref_conv(xin, w_taps, scale, shift):
    B, H, W, Cin = xin.shape
    Cout = w_taps.shape[-1]
    xb = jnp.pad(xin.astype(jnp.bfloat16), ((0, 0), (1, 1), (1, 1), (0, 0)))
    acc = jnp.zeros((B, H * W, Cout), jnp.float32)
    t = 0
    for ky in range(3):
        for kx in range(3):
            patch = xb[:, ky:ky + H, kx:kx + W, :].reshape(B, H * W, Cin)
            acc = acc + jnp.einsum("bnk,kc->bnc", patch, w_taps[t],
                                   preferred_element_type=jnp.float32)
            t += 1
    return jnp.maximum(acc * scale + shift, 0.0)                       # (B, HW, Cout)


def _ref_forward(x_nchw, P, nclass):
    Ci = P["w2"].shape[-1]
    Cq = (P["wproj"].shape[-1] - Ci) // 2
    x = jnp.transpose(x_nchw, (0, 2, 3, 1)).astype(jnp.float32)
    B, H, W, _ = x.shape

    f1 = _ref_conv(x, P["w1"], P["s1"], P["sh1"]).astype(jnp.bfloat16)  # bf16 storage
    xp_, xc_ = f1[..., :Ci], f1[..., Ci:]

    # PAM (full softmax; the kernel's flash online softmax is equivalent)
    proj = jnp.einsum("bnc,ck->bnk", xp_, P["wproj"],
                      preferred_element_type=jnp.float32) + P["bproj"]
    fb = proj[..., :Cq].astype(jnp.bfloat16)
    fc = proj[..., Cq:2 * Cq].astype(jnp.bfloat16)
    fd = proj[..., 2 * Cq:].astype(jnp.bfloat16)
    logits = jnp.einsum("bnk,bmk->bnm", fb, fc, preferred_element_type=jnp.float32)
    m = jnp.max(logits, axis=-1, keepdims=True)
    p = jnp.exp(logits - m)
    l = jnp.sum(p, axis=-1, keepdims=True)
    e = jnp.einsum("bnm,bmc->bnc", p.astype(jnp.bfloat16), fd,
                   preferred_element_type=jnp.float32)
    feat_p = xp_.astype(jnp.float32) + (P["ab"][0, 0] / l) * e

    # CAM
    gram = jnp.einsum("bnc,bnd->bcd", xc_, xc_, preferred_element_type=jnp.float32)
    new = jnp.max(gram, axis=-1, keepdims=True) - gram
    pc = jnp.exp(new - jnp.max(new, axis=-1, keepdims=True))
    attn_c = (pc / jnp.sum(pc, axis=-1, keepdims=True)).astype(jnp.bfloat16)
    et = jnp.einsum("bnj,bcj->bnc", xc_, attn_c, preferred_element_type=jnp.float32)
    feat_c = xc_.astype(jnp.float32) + P["ab"][0, 1] * et

    # bf16 inter-stage storage, then conv2 + fused final 1x1 (Dropout identity)
    feat_p = feat_p.astype(jnp.bfloat16).reshape(B, H, W, Ci)
    feat_c = feat_c.astype(jnp.bfloat16).reshape(B, H, W, Ci)
    y_p = _ref_conv(feat_p, P["w2"][0], P["s2"][0], P["sh2"][0])
    y_c = _ref_conv(feat_c, P["w2"][1], P["s2"][1], P["sh2"][1])
    out = (jnp.einsum("bnc,ck->bnk", y_p.astype(jnp.bfloat16), P["wout"],
                      preferred_element_type=jnp.float32)
           + jnp.einsum("bnc,ck->bnk", y_c.astype(jnp.bfloat16), P["wout"],
                        preferred_element_type=jnp.float32)
           + P["bout"])
    out = out[..., :nclass].reshape(B, H, W, nclass)
    return (jnp.transpose(out, (0, 3, 1, 2)),)


# ----------------------------------------------------------------------------
# Deterministic parameter construction (shapes follow the nn.Module __init__)
# ----------------------------------------------------------------------------
def make_params(key, in_channels, nclass, nc_pad=128):
    Ci = in_channels // 4          # inter_channels
    Cq = Ci // 8                   # PAM query/key channels
    keys = iter(jax.random.split(key, 64))

    def nrm(shape, s=0.1):
        return s * jax.random.normal(next(keys), shape, jnp.float32)

    def bn_fold(cout):
        gamma = jax.random.uniform(next(keys), (cout,), jnp.float32, 0.5, 1.5)
        beta = nrm((cout,))
        mean = nrm((cout,))
        var = jax.random.uniform(next(keys), (cout,), jnp.float32, 0.5, 1.5)
        scale = gamma / jnp.sqrt(var + 1e-5)
        shift = beta - mean * scale
        return scale, shift

    # stage 1: conv_p1 / conv_c1 fused along Cout (per-tap weight layout)
    wp1, wc1 = nrm((9, in_channels, Ci)), nrm((9, in_channels, Ci))
    sp1, shp1 = bn_fold(Ci)
    sc1, shc1 = bn_fold(Ci)
    w1 = jnp.concatenate([wp1, wc1], axis=-1)                        # (9, Cin, 2Ci)
    s1 = jnp.concatenate([sp1, sc1])[None, :]
    sh1 = jnp.concatenate([shp1, shc1])[None, :]

    # stage 2: conv_p2 / conv_c2 stacked along a branch axis
    wp2, wc2 = nrm((9, Ci, Ci)), nrm((9, Ci, Ci))
    sp2, shp2 = bn_fold(Ci)
    sc2, shc2 = bn_fold(Ci)
    w2 = jnp.stack([wp2, wc2])                                       # (2, 9, Ci, Ci)
    s2 = jnp.stack([sp2, sc2])[:, None, :]
    sh2 = jnp.stack([shp2, shc2])[:, None, :]

    # PAM 1x1 projections fused: [conv_b | conv_c | conv_d]
    wproj = jnp.concatenate([nrm((Ci, Cq)), nrm((Ci, Cq)), nrm((Ci, Ci))], axis=-1)
    bproj = jnp.concatenate([nrm((Cq,)), nrm((Cq,)), nrm((Ci,))])[None, :]

    # final 1x1 conv, lane-padded to nc_pad output columns (lane-dense stores)
    wout = jnp.zeros((Ci, nc_pad), jnp.float32).at[:, :nclass].set(nrm((Ci, nclass)))
    bout = jnp.zeros((1, nc_pad), jnp.float32).at[:, :nclass].set(nrm((1, nclass)))

    return {
        "w1": w1.astype(jnp.bfloat16), "s1": s1, "sh1": sh1,
        "w2": w2.astype(jnp.bfloat16), "s2": s2, "sh2": sh2,
        "wproj": wproj.astype(jnp.bfloat16), "bproj": bproj,
        # torch inits alpha/beta to 0 (attention branch is then a no-op);
        # non-zero here so the attention math is actually exercised.
        "ab": jnp.array([[0.7, 0.3]], jnp.float32),
        "wout": wout.astype(jnp.bfloat16), "bout": bout,
    }


if __name__ == "__main__":
    B, Cin, H, W, nclass = 2, 64, 16, 16, 5
    key = jax.random.PRNGKey(0)
    kx_, kp_ = jax.random.split(key)
    x = jax.random.normal(kx_, (B, Cin, H, W), jnp.float32)     # NCHW like PyTorch
    P = make_params(kp_, Cin, nclass)

    out = da_head_forward(x, P, nclass)
    out0 = jax.block_until_ready(out[0])

    ref0 = np.asarray(_ref_forward(x, P, nclass)[0])
    assert out0.shape == (B, nclass, H, W)
    assert np.allclose(np.asarray(out0), ref0, rtol=1e-2, atol=1e-2), "mismatch vs reference"

    print("KERNEL_OK")
</pallas_src>

<mosaic_0001>
module attributes {stable_mosaic.version = 11 : i64} {
  func.func @_conv1_kernel(%arg0: i32, %arg1: memref<1x16x16x64xf32, #tpu.memory_space<vmem>>, %arg2: memref<9x64x32xbf16, #tpu.memory_space<vmem>>, %arg3: memref<1x32xf32, #tpu.memory_space<vmem>>, %arg4: memref<1x32xf32, #tpu.memory_space<vmem>>, %arg5: memref<1x16x16x32xbf16, #tpu.memory_space<vmem>>, %arg6: memref<18x18x64xbf16, #tpu.memory_space<vmem>>) attributes {dimension_semantics = [#tpu.dimension_semantics<parallel>], iteration_bounds = array<i64: 2>, scalar_prefetch = 0 : i64, scratch_operands = 1 : i64, tpu.core_type = #tpu.core_type<tc>, window_params = [{transform_indices = @transform_0, window_bounds = array<i64: 1, 16, 16, 64>}, {pipeline_mode = #tpu.pipeline_mode<synchronous>, transform_indices = @transform_1, window_bounds = array<i64: 9, 64, 32>}, {pipeline_mode = #tpu.pipeline_mode<synchronous>, transform_indices = @transform_2, window_bounds = array<i64: 1, 32>}, {pipeline_mode = #tpu.pipeline_mode<synchronous>, transform_indices = @transform_3, window_bounds = array<i64: 1, 32>}, {transform_indices = @transform_4, window_bounds = array<i64: 1, 16, 16, 32>}]} {
    %cst = arith.constant 0.000000e+00 : bf16
    %0 = vector.broadcast %cst : bf16 to vector<18x18x64xbf16>
    %c0 = arith.constant 0 : index
    %c0_0 = arith.constant 0 : index
    %c0_1 = arith.constant 0 : index
    %1 = vector.load %arg6[%c0, %c0_0, %c0_1] : memref<18x18x64xbf16, #tpu.memory_space<vmem>>, vector<18x18x64xbf16>
    tpu.vector_store %arg6[%c0, %c0_0, %c0_1], %0 {strides = array<i32>} : memref<18x18x64xbf16, #tpu.memory_space<vmem>>, vector<18x18x64xbf16>,
    %c0_2 = arith.constant 0 : index
    %c0_3 = arith.constant 0 : index
    %c0_4 = arith.constant 0 : index
    %c0_5 = arith.constant 0 : index
    %2 = vector.load %arg1[%c0_2, %c0_3, %c0_4, %c0_5] : memref<1x16x16x64xf32, #tpu.memory_space<vmem>>, vector<1x16x16x64xf32>
    %3 = vector.shape_cast %2 : vector<1x16x16x64xf32> to vector<16x16x64xf32>
    %4 = arith.truncf %3 : vector<16x16x64xf32> to vector<16x16x64xbf16>
    %c1 = arith.constant 1 : index
    %c1_6 = arith.constant 1 : index
    %c0_7 = arith.constant 0 : index
    %5 = vector.load %arg6[%c1, %c1_6, %c0_7] : memref<18x18x64xbf16, #tpu.memory_space<vmem>>, vector<16x16x64xbf16>
    tpu.vector_store %arg6[%c1, %c1_6, %c0_7], %4 {strides = array<i32>} : memref<18x18x64xbf16, #tpu.memory_space<vmem>>, vector<16x16x64xbf16>,
    %cst_8 = arith.constant 0.000000e+00 : f32
    %6 = vector.broadcast %cst_8 : f32 to vector<256x32xf32>
    %c0_9 = arith.constant 0 : index
    %c0_10 = arith.constant 0 : index
    %c0_11 = arith.constant 0 : index
    %7 = vector.load %arg6[%c0_9, %c0_10, %c0_11] : memref<18x18x64xbf16, #tpu.memory_space<vmem>>, vector<16x16x64xbf16>
    %8 = vector.shape_cast %7 : vector<16x16x64xbf16> to vector<256x64xbf16>
    %c0_12 = arith.constant 0 : index
    %c0_13 = arith.constant 0 : index
    %c0_14 = arith.constant 0 : index
    %9 = vector.load %arg2[%c0_12, %c0_13, %c0_14] : memref<9x64x32xbf16, #tpu.memory_space<vmem>>, vector<1x64x32xbf16>
    %10 = vector.shape_cast %9 : vector<1x64x32xbf16> to vector<64x32xbf16>
    %cst_15 = arith.constant dense<0.000000e+00> : vector<256x32xf32>
    %11 = tpu.matmul %8, %10, %cst_15 {dimension_numbers = #tpu.dot_dimension_numbers<[1], [0], [0], [1], [0, 0, 1, 1], [], []>} : vector<256x64xbf16>, vector<64x32xbf16>, vector<256x32xf32> -> vector<256x32xf32>
    %12 = arith.addf %6, %11 : vector<256x32xf32>
    %c0_16 = arith.constant 0 : index
    %c1_17 = arith.constant 1 : index
    %c0_18 = arith.constant 0 : index
    %13 = vector.load %arg6[%c0_16, %c1_17, %c0_18] : memref<18x18x64xbf16, #tpu.memory_space<vmem>>, vector<16x16x64xbf16>
    %14 = vector.shape_cast %13 : vector<16x16x64xbf16> to vector<256x64xbf16>
    %c1_19 = arith.constant 1 : index
    %c0_20 = arith.constant 0 : index
    %c0_21 = arith.constant 0 : index
    %15 = vector.load %arg2[%c1_19, %c0_20, %c0_21] : memref<9x64x32xbf16, #tpu.memory_space<vmem>>, vector<1x64x32xbf16>
    %16 = vector.shape_cast %15 : vector<1x64x32xbf16> to vector<64x32xbf16>
    %cst_22 = arith.constant dense<0.000000e+00> : vector<256x32xf32>
    %17 = tpu.matmul %14, %16, %cst_22 {dimension_numbers = #tpu.dot_dimension_numbers<[1], [0], [0], [1], [0, 0, 1, 1], [], []>} : vector<256x64xbf16>, vector<64x32xbf16>, vector<256x32xf32> -> vector<256x32xf32>
    %18 = arith.addf %12, %17 : vector<256x32xf32>
    %c0_23 = arith.constant 0 : index
    %c2 = arith.constant 2 : index
    %c0_24 = arith.constant 0 : index
    %19 = vector.load %arg6[%c0_23, %c2, %c0_24] : memref<18x18x64xbf16, #tpu.memory_space<vmem>>, vector<16x16x64xbf16>
    %20 = vector.shape_cast %19 : vector<16x16x64xbf16> to vector<256x64xbf16>
    %c2_25 = arith.constant 2 : index
    %c0_26 = arith.constant 0 : index
    %c0_27 = arith.constant 0 : index
    %21 = vector.load %arg2[%c2_25, %c0_26, %c0_27] : memref<9x64x32xbf16, #tpu.memory_space<vmem>>, vector<1x64x32xbf16>
    %22 = vector.shape_cast %21 : vector<1x64x32xbf16> to vector<64x32xbf16>
    %cst_28 = arith.constant dense<0.000000e+00> : vector<256x32xf32>
    %23 = tpu.matmul %20, %22, %cst_28 {dimension_numbers = #tpu.dot_dimension_numbers<[1], [0], [0], [1], [0, 0, 1, 1], [], []>} : vector<256x64xbf16>, vector<64x32xbf16>, vector<256x32xf32> -> vector<256x32xf32>
    %24 = arith.addf %18, %23 : vector<256x32xf32>
    %c1_29 = arith.constant 1 : index
    %c0_30 = arith.constant 0 : index
    %c0_31 = arith.constant 0 : index
    %25 = vector.load %arg6[%c1_29, %c0_30, %c0_31] : memref<18x18x64xbf16, #tpu.memory_space<vmem>>, vector<16x16x64xbf16>
    %26 = vector.shape_cast %25 : vector<16x16x64xbf16> to vector<256x64xbf16>
    %c3 = arith.constant 3 : index
    %c0_32 = arith.constant 0 : index
    %c0_33 = arith.constant 0 : index
    %27 = vector.load %arg2[%c3, %c0_32, %c0_33] : memref<9x64x32xbf16, #tpu.memory_space<vmem>>, vector<1x64x32xbf16>
    %28 = vector.shape_cast %27 : vector<1x64x32xbf16> to vector<64x32xbf16>
    %cst_34 = arith.constant dense<0.000000e+00> : vector<256x32xf32>
    %29 = tpu.matmul %26, %28, %cst_34 {dimension_numbers = #tpu.dot_dimension_numbers<[1], [0], [0], [1], [0, 0, 1, 1], [], []>} : vector<256x64xbf16>, vector<64x32xbf16>, vector<256x32xf32> -> vector<256x32xf32>
    %30 = arith.addf %24, %29 : vector<256x32xf32>
    %c1_35 = arith.constant 1 : index
    %c1_36 = arith.constant 1 : index
    %c0_37 = arith.constant 0 : index
    %31 = vector.load %arg6[%c1_35, %c1_36, %c0_37] : memref<18x18x64xbf16, #tpu.memory_space<vmem>>, vector<16x16x64xbf16>
    %32 = vector.shape_cast %31 : vector<16x16x64xbf16> to vector<256x64xbf16>
    %c4 = arith.constant 4 : index
    %c0_38 = arith.constant 0 : index
    %c0_39 = arith.constant 0 : index
    %33 = vector.load %arg2[%c4, %c0_38, %c0_39] : memref<9x64x32xbf16, #tpu.memory_space<vmem>>, vector<1x64x32xbf16>
    %34 = vector.shape_cast %33 : vector<1x64x32xbf16> to vector<64x32xbf16>
    %cst_40 = arith.constant dense<0.000000e+00> : vector<256x32xf32>
    %35 = tpu.matmul %32, %34, %cst_40 {dimension_numbers = #tpu.dot_dimension_numbers<[1], [0], [0], [1], [0, 0, 1, 1], [], []>} : vector<256x64xbf16>, vector<64x32xbf16>, vector<256x32xf32> -> vector<256x32xf32>
    %36 = arith.addf %30, %35 : vector<256x32xf32>
    %c1_41 = arith.constant 1 : index
    %c2_42 = arith.constant 2 : index
    %c0_43 = arith.constant 0 : index
    %37 = vector.load %arg6[%c1_41, %c2_42, %c0_43] : memref<18x18x64xbf16, #tpu.memory_space<vmem>>, vector<16x16x64xbf16>
    %38 = vector.shape_cast %37 : vector<16x16x64xbf16> to vector<256x64xbf16>
    %c5 = arith.constant 5 : index
    %c0_44 = arith.constant 0 : index
    %c0_45 = arith.constant 0 : index
    %39 = vector.load %arg2[%c5, %c0_44, %c0_45] : memref<9x64x32xbf16, #tpu.memory_space<vmem>>, vector<1x64x32xbf16>
    %40 = vector.shape_cast %39 : vector<1x64x32xbf16> to vector<64x32xbf16>
    %cst_46 = arith.constant dense<0.000000e+00> : vector<256x32xf32>
    %41 = tpu.matmul %38, %40, %cst_46 {dimension_numbers = #tpu.dot_dimension_numbers<[1], [0], [0], [1], [0, 0, 1, 1], [], []>} : vector<256x64xbf16>, vector<64x32xbf16>, vector<256x32xf32> -> vector<256x32xf32>
    %42 = arith.addf %36, %41 : vector<256x32xf32>
    %c2_47 = arith.constant 2 : index
    %c0_48 = arith.constant 0 : index
    %c0_49 = arith.constant 0 : index
    %43 = vector.load %arg6[%c2_47, %c0_48, %c0_49] : memref<18x18x64xbf16, #tpu.memory_space<vmem>>, vector<16x16x64xbf16>
    %44 = vector.shape_cast %43 : vector<16x16x64xbf16> to vector<256x64xbf16>
    %c6 = arith.constant 6 : index
    %c0_50 = arith.constant 0 : index
    %c0_51 = arith.constant 0 : index
    %45 = vector.load %arg2[%c6, %c0_50, %c0_51] : memref<9x64x32xbf16, #tpu.memory_space<vmem>>, vector<1x64x32xbf16>
    %46 = vector.shape_cast %45 : vector<1x64x32xbf16> to vector<64x32xbf16>
    %cst_52 = arith.constant dense<0.000000e+00> : vector<256x32xf32>
    %47 = tpu.matmul %44, %46, %cst_52 {dimension_numbers = #tpu.dot_dimension_numbers<[1], [0], [0], [1], [0, 0, 1, 1], [], []>} : vector<256x64xbf16>, vector<64x32xbf16>, vector<256x32xf32> -> vector<256x32xf32>
    %48 = arith.addf %42, %47 : vector<256x32xf32>
    %c2_53 = arith.constant 2 : index
    %c1_54 = arith.constant 1 : index
    %c0_55 = arith.constant 0 : index
    %49 = vector.load %arg6[%c2_53, %c1_54, %c0_55] : memref<18x18x64xbf16, #tpu.memory_space<vmem>>, vector<16x16x64xbf16>
    %50 = vector.shape_cast %49 : vector<16x16x64xbf16> to vector<256x64xbf16>
    %c7 = arith.constant 7 : index
    %c0_56 = arith.constant 0 : index
    %c0_57 = arith.constant 0 : index
    %51 = vector.load %arg2[%c7, %c0_56, %c0_57] : memref<9x64x32xbf16, #tpu.memory_space<vmem>>, vector<1x64x32xbf16>
    %52 = vector.shape_cast %51 : vector<1x64x32xbf16> to vector<64x32xbf16>
    %cst_58 = arith.constant dense<0.000000e+00> : vector<256x32xf32>
    %53 = tpu.matmul %50, %52, %cst_58 {dimension_numbers = #tpu.dot_dimension_numbers<[1], [0], [0], [1], [0, 0, 1, 1], [], []>} : vector<256x64xbf16>, vector<64x32xbf16>, vector<256x32xf32> -> vector<256x32xf32>
    %54 = arith.addf %48, %53 : vector<256x32xf32>
    %c2_59 = arith.constant 2 : index
    %c2_60 = arith.constant 2 : index
    %c0_61 = arith.constant 0 : index
    %55 = vector.load %arg6[%c2_59, %c2_60, %c0_61] : memref<18x18x64xbf16, #tpu.memory_space<vmem>>, vector<16x16x64xbf16>
    %56 = vector.shape_cast %55 : vector<16x16x64xbf16> to vector<256x64xbf16>
    %c8 = arith.constant 8 : index
    %c0_62 = arith.constant 0 : index
    %c0_63 = arith.constant 0 : index
    %57 = vector.load %arg2[%c8, %c0_62, %c0_63] : memref<9x64x32xbf16, #tpu.memory_space<vmem>>, vector<1x64x32xbf16>
    %58 = vector.shape_cast %57 : vector<1x64x32xbf16> to vector<64x32xbf16>
    %cst_64 = arith.constant dense<0.000000e+00> : vector<256x32xf32>
    %59 = tpu.matmul %56, %58, %cst_64 {dimension_numbers = #tpu.dot_dimension_numbers<[1], [0], [0], [1], [0, 0, 1, 1], [], []>} : vector<256x64xbf16>, vector<64x32xbf16>, vector<256x32xf32> -> vector<256x32xf32>
    %60 = arith.addf %54, %59 : vector<256x32xf32>
    %c0_65 = arith.constant 0 : index
    %c0_66 = arith.constant 0 : index
    %61 = vector.load %arg3[%c0_65, %c0_66] : memref<1x32xf32, #tpu.memory_space<vmem>>, vector<1x32xf32>
    %62 = vector.broadcast %61 : vector<1x32xf32> to vector<256x32xf32>
    %63 = arith.mulf %60, %62 : vector<256x32xf32>
    %c0_67 = arith.constant 0 : index
    %c0_68 = arith.constant 0 : index
    %64 = vector.load %arg4[%c0_67, %c0_68] : memref<1x32xf32, #tpu.memory_space<vmem>>, vector<1x32xf32>
    %65 = vector.broadcast %64 : vector<1x32xf32> to vector<256x32xf32>
    %66 = arith.addf %63, %65 : vector<256x32xf32>
    %cst_69 = arith.constant 0.000000e+00 : f32
    %67 = vector.broadcast %cst_69 : f32 to vector<256x32xf32>
    %68 = arith.maximumf %66, %67 : vector<256x32xf32>
    %69 = vector.shape_cast %68 : vector<256x32xf32> to vector<16x16x32xf32>
    %70 = arith.truncf %69 : vector<16x16x32xf32> to vector<16x16x32xbf16>
    %c0_70 = arith.constant 0 : index
    %c0_71 = arith.constant 0 : index
    %c0_72 = arith.constant 0 : index
    %c0_73 = arith.constant 0 : index
    %71 = vector.load %arg5[%c0_70, %c0_71, %c0_72, %c0_73] : memref<1x16x16x32xbf16, #tpu.memory_space<vmem>>, vector<1x16x16x32xbf16>
    %72 = vector.shape_cast %71 : vector<1x16x16x32xbf16> to vector<16x16x32xbf16>
    %73 = vector.shape_cast %70 : vector<16x16x32xbf16> to vector<1x16x16x32xbf16>
    tpu.vector_store %arg5[%c0_70, %c0_71, %c0_72, %c0_73], %73 {strides = array<i32>} : memref<1x16x16x32xbf16, #tpu.memory_space<vmem>>, vector<1x16x16x32xbf16>,
    return
  }
  func.func @transform_0(%arg0: i32) -> (i32, i32, i32, i32) {
    %c0_i32 = arith.constant 0 : i32
    %c0_i32_0 = arith.constant 0 : i32
    %c0_i32_1 = arith.constant 0 : i32
    %c0_i32_2 = arith.constant 0 : i32
    return %arg0, %c0_i32, %c0_i32_0, %c0_i32_1 : i32, i32, i32, i32
  }
  func.func @transform_1(%arg0: i32) -> (i32, i32, i32) {
    %c0_i32 = arith.constant 0 : i32
    %c0_i32_0 = arith.constant 0 : i32
    %c0_i32_1 = arith.constant 0 : i32
    %c0_i32_2 = arith.constant 0 : i32
    return %c0_i32, %c0_i32_0, %c0_i32_1 : i32, i32, i32
  }
  func.func @transform_2(%arg0: i32) -> (i32, i32) {
    %c0_i32 = arith.constant 0 : i32
    %c0_i32_0 = arith.constant 0 : i32
    %c0_i32_1 = arith.constant 0 : i32
    return %c0_i32, %c0_i32_0 : i32, i32
  }
  func.func @transform_3(%arg0: i32) -> (i32, i32) {
    %c0_i32 = arith.constant 0 : i32
    %c0_i32_0 = arith.constant 0 : i32
    %c0_i32_1 = arith.constant 0 : i32
    return %c0_i32, %c0_i32_0 : i32, i32
  }
  func.func @transform_4(%arg0: i32) -> (i32, i32, i32, i32) {
    %c0_i32 = arith.constant 0 : i32
    %c0_i32_0 = arith.constant 0 : i32
    %c0_i32_1 = arith.constant 0 : i32
    %c0_i32_2 = arith.constant 0 : i32
    return %arg0, %c0_i32, %c0_i32_0, %c0_i32_1 : i32, i32, i32, i32
  }
}

</mosaic_0001>

<llo_original>
// kernel: tpu_custom_call.1
$region0: #{tpu_custom_call.1}
  #allocation0 [shape = 'u32[]', space=smem, size = 0x4, offset = 0x4, fixed_abs, tag = 'smem constant byte address 0x4 - core index']
  #allocation1 [shape = 'u32[144,128]{1,0:T(1,128)}', space=vmem, size = 0x12000, scoped, tag = 'internal scratch']
  #allocation2 [shape = 'bf16[18,18,64]{2,1,0:T(8,128)(2,1)}', space=vmem, size = 0x1b000, scoped, tag = 'scratch operand']
  %s0 = inlined_call_operand.hbm [shape: f32[2,16,16,64], index: 0, kind: input, shape index: {}]
  %s1 = inlined_call_operand.vmem [shape: bf16[9,64,32], index: 1, kind: input, shape index: {}]
  %s2 = inlined_call_operand.vmem [shape: f32[1,32], index: 2, kind: input, shape index: {}]
  %s3 = inlined_call_operand.vmem [shape: f32[1,32], index: 3, kind: input, shape index: {}]
  %s4 = inlined_call_operand.hbm [shape: bf16[2,16,16,32], index: 4, kind: output, shape index: {}]
  %s5 = sld [smem:[#allocation0]]
  $region53: #{tpu_custom_call.1} parent=0
    _
  %s7 = ssub.s32 1, %s5
  %s8 = scalar_select 0, %s7, %s5
  $region1: #{tpu_custom_call.1} parent=0
    #allocation3 [shape = 'u8[262144]{0}', space=vmem, size = 0x40000, scoped, tag = 'input window, operand 0']
    #allocation4 [shape = 's32[2]{0}', space=sflag, size = 0x8, scoped, tag = 'scoped memory for tpu_custom_call.1']
    #allocation5 [shape = 's32[2]{0}', space=sflag, size = 0x8, scoped, tag = 'scoped memory for tpu_custom_call.1']
    #allocation6 [shape = 'u8[131072]{0}', space=vmem, size = 0x20000, scoped, tag = 'output window, operand 0']
    %9 = vsyncpa [#allocation4], 0
    %s10 = scalar_lea.sflag [#allocation4], 1
    %11 = vsyncpa %s10, 0
    %12 = vsyncpa [#allocation5], 0
    %s13 = scalar_lea.sflag [#allocation5], 1
    %14 = vsyncpa %s13, 0
    loop: start=0, step=1, limit=4
    $region2: #{tpu_custom_call.1} parent=1 // loop_pre_header
      _
    $region3: #{tpu_custom_call.1} parent=1 // loop_header
      %s16 = sphi 0, %s20
      %p17 = scmp.ge.s32.totalorder %s16, 4
      %s26 = sphi 0, %s28
      %s29 = sphi 0, %s26
      %s30 = sphi 0, %s29
      %s46 = sphi 0, %s30
      %s50 = sphi 0, %s50
      %s52 = sphi 0, %s50
      %s53 = sphi 0, %s52
      %s67 = sphi 0, %s53
      %s71 = sphi 0, %s71
      %s73 = sphi 0, %s71
      %s74 = sphi 0, %s73
      %s88 = sphi 0, %s74
      %s92 = sphi 0, %s92
      %s94 = sphi 0, %s92
      %s95 = sphi 0, %s94
      %s109 = sphi 0, %s95
      %s115 = sphi 0, %s117
      %s118 = sphi 0, %s115
      %s119 = sphi 0, %s118
      %s135 = sphi 0, %s119
    $region4: #{tpu_custom_call.1} parent=1 // loop_header_branch
      %19 = sbr.rel (%p17) target = $region8
    $region5: #{tpu_custom_call.1} parent=1 // loop_body
      %s21 = ssub.s32 %s16, 1
      %s22 = ssub.s32 %s16, 2
      %s23 = sadd.s32 %s16, 1
      %s24 = ssub.s32 %s16, %s23
      %p25 = scmp.eq.s32.totalorder %s24, 0
      %s27 = sadd.s32 %s26, 1
      %s28 = scalar_select %p25, %s26, %s27
      %p31 = pneg %p25
      %p32 = scmp.eq.s32.totalorder %s16, 1
      %p33 = por %p31, %p32
      %p34 = scmp.ne.s32.totalorder %s26, %s29
      %p35 = scmp.eq.s32.totalorder %s16, 0
      %p36 = por %p34, %p35
      %p37 = scmp.ne.s32.totalorder %s26, %s29
      %p38 = scmp.eq.s32.totalorder %s21, 1
      %p39 = por %p37, %p38
      %p40 = scmp.ne.s32.totalorder %s29, %s30
      %p41 = scmp.eq.s32.totalorder %s21, 0
      %p42 = por %p40, %p41
      %p43 = scmp.ne.s32.totalorder %s29, %s30
      %p44 = scmp.eq.s32.totalorder %s22, 1
      %p45 = por %p43, %p44
      %p47 = scmp.ne.s32.totalorder %s30, %s46
      %p48 = scmp.eq.s32.totalorder %s22, 0
      %p49 = por %p47, %p48
      %s51 = sadd.s32 %s50, 1
      %p54 = scmp.eq.s32.totalorder %s16, 1
      %p55 = scmp.ne.s32.totalorder %s50, %s52
      %p56 = scmp.eq.s32.totalorder %s16, 0
      %p57 = por %p55, %p56
      %p58 = scmp.ne.s32.totalorder %s50, %s52
      %p59 = scmp.eq.s32.totalorder %s21, 1
      %p60 = por %p58, %p59
      %p61 = scmp.ne.s32.totalorder %s52, %s53
      %p62 = scmp.eq.s32.totalorder %s21, 0
      %p63 = por %p61, %p62
      %p64 = scmp.ne.s32.totalorder %s52, %s53
      %p65 = scmp.eq.s32.totalorder %s22, 1
      %p66 = por %p64, %p65
      %p68 = scmp.ne.s32.totalorder %s53, %s67
      %p69 = scmp.eq.s32.totalorder %s22, 0
      %p70 = por %p68, %p69
      %s72 = sadd.s32 %s71, 1
      %p75 = scmp.eq.s32.totalorder %s16, 1
      %p76 = scmp.ne.s32.totalorder %s71, %s73
      %p77 = scmp.eq.s32.totalorder %s16, 0
      %p78 = por %p76, %p77
      %p79 = scmp.ne.s32.totalorder %s71, %s73
      %p80 = scmp.eq.s32.totalorder %s21, 1
      %p81 = por %p79, %p80
      %p82 = scmp.ne.s32.totalorder %s73, %s74
      %p83 = scmp.eq.s32.totalorder %s21, 0
      %p84 = por %p82, %p83
      %p85 = scmp.ne.s32.totalorder %s73, %s74
      %p86 = scmp.eq.s32.totalorder %s22, 1
      %p87 = por %p85, %p86
      %p89 = scmp.ne.s32.totalorder %s74, %s88
      %p90 = scmp.eq.s32.totalorder %s22, 0
      %p91 = por %p89, %p90
      %s93 = sadd.s32 %s92, 1
      %p96 = scmp.eq.s32.totalorder %s16, 1
      %p97 = scmp.ne.s32.totalorder %s92, %s94
      %p98 = scmp.eq.s32.totalorder %s16, 0
      %p99 = por %p97, %p98
      %p100 = scmp.ne.s32.totalorder %s92, %s94
      %p101 = scmp.eq.s32.totalorder %s21, 1
      %p102 = por %p100, %p101
      %p103 = scmp.ne.s32.totalorder %s94, %s95
      %p104 = scmp.eq.s32.totalorder %s21, 0
      %p105 = por %p103, %p104
      %p106 = scmp.ne.s32.totalorder %s94, %s95
      %p107 = scmp.eq.s32.totalorder %s22, 1
      %p108 = por %p106, %p107
      %p110 = scmp.ne.s32.totalorder %s95, %s109
      %p111 = scmp.eq.s32.totalorder %s22, 0
      %p112 = por %p110, %p111
      %s113 = ssub.s32 %s16, %s23
      %p114 = scmp.eq.s32.totalorder %s113, 0
      %s116 = sadd.s32 %s115, 1
      %s117 = scalar_select %p114, %s115, %s116
      %p120 = pneg %p114
      %p121 = scmp.eq.s32.totalorder %s16, 1
      %p122 = por %p120, %p121
      %p123 = scmp.ne.s32.totalorder %s115, %s118
      %p124 = scmp.eq.s32.totalorder %s16, 0
      %p125 = por %p123, %p124
      %p126 = scmp.ne.s32.totalorder %s115, %s118
      %p127 = scmp.eq.s32.totalorder %s21, 1
      %p128 = por %p126, %p127
      %p129 = scmp.ne.s32.totalorder %s118, %s119
      %p130 = scmp.eq.s32.totalorder %s21, 0
      %p131 = por %p129, %p130
      %p132 = scmp.ne.s32.totalorder %s118, %s119
      %p133 = scmp.eq.s32.totalorder %s22, 1
      %p134 = por %p132, %p133
      %p136 = scmp.ne.s32.totalorder %s119, %s135
      %p137 = scmp.eq.s32.totalorder %s22, 0
      %p138 = por %p136, %p137
      %p139 = scmp.le.s32.totalorder 1, %s16
      %p140 = scmp.lt.s32.totalorder %s16, 3
      %p141 = pnand %p139, %p140
      %p142 = pneg %p141
      // Predicated region
      $region9: #{tpu_custom_call.1} parent=5 // pred_check
        _
      $region10: #{tpu_custom_call.1} parent=5 // pred_check_branch
        %144 = sbr.rel (%p141) target = $region12
      $region11: #{tpu_custom_call.1} parent=5 // pred_region
        %s145 = ssub.s32 %s16, 1
        // Predicated region
        $region13: #{tpu_custom_call.1} parent=11 // pred_check
          %p146 = pneg %p63
        $region14: #{tpu_custom_call.1} parent=11 // pred_check_branch
          %148 = sbr.rel (%p146) target = $region16
        $region15: #{tpu_custom_call.1} parent=11 // pred_region
          _
        $region16: #{tpu_custom_call.1} parent=11 // pred_fallthru
          _
        // Predicated region
        $region17: #{tpu_custom_call.1} parent=11 // pred_check
          %p149 = pneg %p84
        $region18: #{tpu_custom_call.1} parent=11 // pred_check_branch
          %151 = sbr.rel (%p149) target = $region20
        $region19: #{tpu_custom_call.1} parent=11 // pred_region
          _
        $region20: #{tpu_custom_call.1} parent=11 // pred_fallthru
          _
        // Predicated region
        $region21: #{tpu_custom_call.1} parent=11 // pred_check
          %p152 = pneg %p105
        $region22: #{tpu_custom_call.1} parent=11 // pred_check_branch
          %154 = sbr.rel (%p152) target = $region24
        $region23: #{tpu_custom_call.1} parent=11 // pred_region
          _
        $region24: #{tpu_custom_call.1} parent=11 // pred_fallthru
          _
      $region12: #{tpu_custom_call.1} parent=5 // pred_fallthru
        _
      %p155 = scmp.lt.s32.totalorder %s16, 2
      // Predicated region
      $region25: #{tpu_custom_call.1} parent=5 // pred_check
        %p156 = pneg %p155
      $region26: #{tpu_custom_call.1} parent=5 // pred_check_branch
        %158 = sbr.rel (%p156) target = $region28
      $region27: #{tpu_custom_call.1} parent=5 // pred_region
        // Predicated region
        $region29: #{tpu_custom_call.1} parent=27 // pred_check
          %p159 = pneg %p36
        $region30: #{tpu_custom_call.1} parent=27 // pred_check_branch
          %161 = sbr.rel (%p159) target = $region32
        $region31: #{tpu_custom_call.1} parent=27 // pred_region
          %s162 = sand.u32 %s26, 1
          %s163 = scalar_lea.sflag [#allocation4], %s162
          %s164 = sand.u32 %s26, 1
          %s165 = smul.addr %s164, 256
          %s166 = scalar_lea.vmem [#allocation3], %s165
          %s168 = ssub.s32 4096, 4096
          %169 = vsyncadd %s163, %s168
          %s170 = smul.addr %s16, 32
          %s171 = smul.addr %s170, 128
          %s172 = scalar_lea.hbm %s0, %s171
          %s173 = sshll.u32 %s166, 4
          %s174 = int_to_ptr.vmem [resolvable:$true] %s173
          %179 = dma.hbm_to_vmem [thread:$0]  %s172, 4096, %s174, %s163, 128, 128, 8
        $region32: #{tpu_custom_call.1} parent=27 // pred_fallthru
          _
      $region28: #{tpu_custom_call.1} parent=5 // pred_fallthru
        _
      %p180 = scmp.le.s32.totalorder 1, %s16
      %p181 = scmp.lt.s32.totalorder %s16, 3
      %p182 = pnand %p180, %p181
      %p183 = pneg %p182
      // Predicated region
      $region33: #{tpu_custom_call.1} parent=5 // pred_check
        _
      $region34: #{tpu_custom_call.1} parent=5 // pred_check_branch
        %185 = sbr.rel (%p182) target = $region36
      $region35: #{tpu_custom_call.1} parent=5 // pred_region
        %s186 = ssub.s32 %s16, 1
        %s187 = sand.u32 %s29, 1
        %s188 = scalar_lea.sflag [#allocation4], %s187
        %s189 = sand.u32 %s29, 1
        %s190 = smul.addr %s189, 256
        %s191 = scalar_lea.vmem [#allocation3], %s190
        // Predicated region
        $region37: #{tpu_custom_call.1} parent=35 // pred_check
          %p192 = pneg %p42
        $region38: #{tpu_custom_call.1} parent=35 // pred_check_branch
          %194 = sbr.rel (%p192) target = $region40
        $region39: #{tpu_custom_call.1} parent=35 // pred_region
          %195 = dma.done %s188, 4096
        $region40: #{tpu_custom_call.1} parent=35 // pred_fallthru
          _
        %s196 = sand.u32 %s29, 1
        %s197 = scalar_lea.sflag [#allocation4], %s196
        %s198 = sand.u32 %s29, 1
        %s199 = smul.addr %s198, 256
        %s200 = scalar_lea.vmem [#allocation3], %s199
        %p201 = pneg %p42
        %p202 = pneg %p39
        %p203 = pneg %p63
        %p204 = pneg %p60
        %p205 = pneg %p84
        %p206 = pneg %p81
        %p207 = pneg %p105
        %p208 = pneg %p102
        %p209 = pneg %p131
        %p210 = pneg %p128
        %s211 = sand.u32 %s118, 1
        %s212 = scalar_lea.sflag [#allocation5], %s211
        %s213 = sand.u32 %s118, 1
        %s214 = smul.addr %s213, 128
        %s215 = scalar_lea.vmem [#allocation6], %s214
        %vm217 = vcmask 519168
        %218 = vst.msk [vmem:[#allocation2] sm:$0xf] %vm217, 0
        %219 = vst.msk [vmem:[#allocation2 + $0x4] sm:$0xf] %vm217, 0
        %vm220 = vcmask 516096
        %221 = vst.msk [vmem:[#allocation2 + $0x8] sm:$0x1] %vm220, 0
        %222 = vst.msk [vmem:[#allocation2 + $0xc] sm:$0xf] %vm217, 0
        %223 = vst.msk [vmem:[#allocation2 + $0x10] sm:$0xf] %vm217, 0
        %224 = vst.msk [vmem:[#allocation2 + $0x14] sm:$0x1] %vm220, 0
        %225 = vst.msk [vmem:[#allocation2 + $0x18] sm:$0xf] %vm217, 0
        %226 = vst.msk [vmem:[#allocation2 + $0x1c] sm:$0xf] %vm217, 0
        %227 = vst.msk [vmem:[#allocation2 + $0x20] sm:$0x1] %vm220, 0
        %228 = vst.msk [vmem:[#allocation2 + $0x24] sm:$0xf] %vm217, 0
        %229 = vst.msk [vmem:[#allocation2 + $0x28] sm:$0xf] %vm217, 0
        %230 = vst.msk [vmem:[#allocation2 + $0x2c] sm:$0x1] %vm220, 0
        %231 = vst.msk [vmem:[#allocation2 + $0x30] sm:$0xf] %vm217, 0
        %232 = vst.msk [vmem:[#allocation2 + $0x34] sm:$0xf] %vm217, 0
        %233 = vst.msk [vmem:[#allocation2 + $0x38] sm:$0x1] %vm220, 0
        %234 = vst.msk [vmem:[#allocation2 + $0x3c] sm:$0xf] %vm217, 0
        %235 = vst.msk [vmem:[#allocation2 + $0x40] sm:$0xf] %vm217, 0
        %236 = vst.msk [vmem:[#allocation2 + $0x44] sm:$0x1] %vm220, 0
        %237 = vst.msk [vmem:[#allocation2 + $0x48] sm:$0xf] %vm217, 0
        %238 = vst.msk [vmem:[#allocation2 + $0x4c] sm:$0xf] %vm217, 0
        %239 = vst.msk [vmem:[#allocation2 + $0x50] sm:$0x1] %vm220, 0
        %240 = vst.msk [vmem:[#allocation2 + $0x54] sm:$0xf] %vm217, 0
        %241 = vst.msk [vmem:[#allocation2 + $0x58] sm:$0xf] %vm217, 0
        %242 = vst.msk [vmem:[#allocation2 + $0x5c] sm:$0x1] %vm220, 0
        %243 = vst.msk [vmem:[#allocation2 + $0x60] sm:$0xf] %vm217, 0
        %244 = vst.msk [vmem:[#allocation2 + $0x64] sm:$0xf] %vm217, 0
        %245 = vst.msk [vmem:[#allocation2 + $0x68] sm:$0x1] %vm220, 0
        %246 = vst.msk [vmem:[#allocation2 + $0x6c] sm:$0xf] %vm217, 0
        %247 = vst.msk [vmem:[#allocation2 + $0x70] sm:$0xf] %vm217, 0
        %248 = vst.msk [vmem:[#allocation2 + $0x74] sm:$0x1] %vm220, 0
        %249 = vst.msk [vmem:[#allocation2 + $0x78] sm:$0xf] %vm217, 0
        %250 = vst.msk [vmem:[#allocation2 + $0x7c] sm:$0xf] %vm217, 0
        %251 = vst.msk [vmem:[#allocation2 + $0x80] sm:$0x1] %vm220, 0
        %252 = vst.msk [vmem:[#allocation2 + $0x84] sm:$0xf] %vm217, 0
        %253 = vst.msk [vmem:[#allocation2 + $0x88] sm:$0xf] %vm217, 0
        %254 = vst.msk [vmem:[#allocation2 + $0x8c] sm:$0x1] %vm220, 0
        %255 = vst.msk [vmem:[#allocation2 + $0x90] sm:$0xf] %vm217, 0
        %256 = vst.msk [vmem:[#allocation2 + $0x94] sm:$0xf] %vm217, 0
        %257 = vst.msk [vmem:[#allocation2 + $0x98] sm:$0x1] %vm220, 0
        %258 = vst.msk [vmem:[#allocation2 + $0x9c] sm:$0xf] %vm217, 0
        %259 = vst.msk [vmem:[#allocation2 + $0xa0] sm:$0xf] %vm217, 0
        %260 = vst.msk [vmem:[#allocation2 + $0xa4] sm:$0x1] %vm220, 0
        %261 = vst.msk [vmem:[#allocation2 + $0xa8] sm:$0xf] %vm217, 0
        %262 = vst.msk [vmem:[#allocation2 + $0xac] sm:$0xf] %vm217, 0
        %263 = vst.msk [vmem:[#allocation2 + $0xb0] sm:$0x1] %vm220, 0
        %264 = vst.msk [vmem:[#allocation2 + $0xb4] sm:$0xf] %vm217, 0
        %265 = vst.msk [vmem:[#allocation2 + $0xb8] sm:$0xf] %vm217, 0
        %266 = vst.msk [vmem:[#allocation2 + $0xbc] sm:$0x1] %vm220, 0
        %267 = vst.msk [vmem:[#allocation2 + $0xc0] sm:$0xf] %vm217, 0
        %268 = vst.msk [vmem:[#allocation2 + $0xc4] sm:$0xf] %vm217, 0
        %269 = vst.msk [vmem:[#allocation2 + $0xc8] sm:$0x1] %vm220, 0
        %270 = vst.msk [vmem:[#allocation2 + $0xcc] sm:$0xf] %vm217, 0
        %271 = vst.msk [vmem:[#allocation2 + $0xd0] sm:$0xf] %vm217, 0
        %272 = vst.msk [vmem:[#allocation2 + $0xd4] sm:$0x1] %vm220, 0
        %v273 = vld [vmem:[%s191] sm:$0xff]
        %v274 = vld [vmem:[%s191 + $0x8] sm:$0xff]
        %v275 = vld [vmem:[%s191 + $0x10] sm:$0xff]
        %v276 = vld [vmem:[%s191 + $0x18] sm:$0xff]
        %v277 = vld [vmem:[%s191 + $0x20] sm:$0xff]
        %v278 = vld [vmem:[%s191 + $0x28] sm:$0xff]
        %v279 = vld [vmem:[%s191 + $0x30] sm:$0xff]
        %v280 = vld [vmem:[%s191 + $0x38] sm:$0xff]
        %v281 = vld [vmem:[%s191 + $0x40] sm:$0xff]
        %v282 = vld [vmem:[%s191 + $0x48] sm:$0xff]
        %v283 = vld [vmem:[%s191 + $0x50] sm:$0xff]
        %v284 = vld [vmem:[%s191 + $0x58] sm:$0xff]
        %v285 = vld [vmem:[%s191 + $0x60] sm:$0xff]
        %v286 = vld [vmem:[%s191 + $0x68] sm:$0xff]
        %v287 = vld [vmem:[%s191 + $0x70] sm:$0xff]
        %v288 = vld [vmem:[%s191 + $0x78] sm:$0xff]
        %v289 = vld [vmem:[%s191 + $0x80] sm:$0xff]
        %v290 = vld [vmem:[%s191 + $0x88] sm:$0xff]
        %v291 = vld [vmem:[%s191 + $0x90] sm:$0xff]
        %v292 = vld [vmem:[%s191 + $0x98] sm:$0xff]
        %v293 = vld [vmem:[%s191 + $0xa0] sm:$0xff]
        %v294 = vld [vmem:[%s191 + $0xa8] sm:$0xff]
        %v295 = vld [vmem:[%s191 + $0xb0] sm:$0xff]
        %v296 = vld [vmem:[%s191 + $0xb8] sm:$0xff]
        %v297 = vld [vmem:[%s191 + $0xc0] sm:$0xff]
        %v298 = vld [vmem:[%s191 + $0xc8] sm:$0xff]
        %v299 = vld [vmem:[%s191 + $0xd0] sm:$0xff]
        %v300 = vld [vmem:[%s191 + $0xd8] sm:$0xff]
        %v301 = vld [vmem:[%s191 + $0xe0] sm:$0xff]
        %v302 = vld [vmem:[%s191 + $0xe8] sm:$0xff]
        %v303 = vld [vmem:[%s191 + $0xf0] sm:$0xff]
        %v304 = vld [vmem:[%s191 + $0xf8] sm:$0xff]
        %v305 = vpack.c.bf16 %v274, %v273
        %v306 = vpack.c.bf16 %v276, %v275
        %v307 = vpack.c.bf16 %v278, %v277
        %v308 = vpack.c.bf16 %v280, %v279
        %v309 = vpack.c.bf16 %v282, %v281
        %v310 = vpack.c.bf16 %v284, %v283
        %v311 = vpack.c.bf16 %v286, %v285
        %v312 = vpack.c.bf16 %v288, %v287
        %v313 = vpack.c.bf16 %v290, %v289
        %v314 = vpack.c.bf16 %v292, %v291
        %v315 = vpack.c.bf16 %v294, %v293
        %v316 = vpack.c.bf16 %v296, %v295
        %v317 = vpack.c.bf16 %v298, %v297
        %v318 = vpack.c.bf16 %v300, %v299
        %v319 = vpack.c.bf16 %v302, %v301
        %v320 = vpack.c.bf16 %v304, %v303
        %v337 = vunpack.c.l.b16 %v305
        %v338 = vunpack.c.h.b16 %v305
        %v339 = vunpack.c.l.b16 %v306
        %v340 = vunpack.c.h.b16 %v306
        %v341 = vunpack.c.l.b16 %v307
        %v342 = vunpack.c.h.b16 %v307
        %v343 = vunpack.c.l.b16 %v308
        %v344 = vunpack.c.h.b16 %v308
        %v345 = vunpack.c.l.b16 %v309
        %v346 = vunpack.c.h.b16 %v309
        %v347 = vunpack.c.l.b16 %v310
        %v348 = vunpack.c.h.b16 %v310
        %v349 = vunpack.c.l.b16 %v311
        %v350 = vunpack.c.h.b16 %v311
        %v351 = vunpack.c.l.b16 %v312
        %v352 = vunpack.c.h.b16 %v312
        %v353 = vunpack.c.l.b16 %v313
        %v354 = vunpack.c.h.b16 %v313
        %v355 = vunpack.c.l.b16 %v314
        %v356 = vunpack.c.h.b16 %v314
        %v357 = vunpack.c.l.b16 %v315
        %v358 = vunpack.c.h.b16 %v315
        %v359 = vunpack.c.l.b16 %v316
        %v360 = vunpack.c.h.b16 %v316
        %v361 = vunpack.c.l.b16 %v317
        %v362 = vunpack.c.h.b16 %v317
        %v363 = vunpack.c.l.b16 %v318
        %v364 = vunpack.c.h.b16 %v318
        %v365 = vunpack.c.l.b16 %v319
        %v366 = vunpack.c.h.b16 %v319
        %v367 = vunpack.c.l.b16 %v320
        %v368 = vunpack.c.h.b16 %v320
        %v369 = vpack.c.b16 %v337, %v337
        %v370 = vpack.c.b16 %v338, %v338
        %v371 = vpack.c.b16 %v339, %v339
        %v372 = vpack.c.b16 %v340, %v340
        %v373 = vpack.c.b16 %v341, %v341
        %v374 = vpack.c.b16 %v342, %v342
        %v375 = vpack.c.b16 %v343, %v343
        %v376 = vpack.c.b16 %v344, %v344
        %v377 = vpack.c.b16 %v345, %v345
        %v378 = vpack.c.b16 %v346, %v346
        %v379 = vpack.c.b16 %v347, %v347
        %v380 = vpack.c.b16 %v348, %v348
        %v381 = vpack.c.b16 %v349, %v349
        %v382 = vpack.c.b16 %v350, %v350
        %v383 = vpack.c.b16 %v351, %v351
        %v384 = vpack.c.b16 %v352, %v352
        %v385 = vpack.c.b16 %v353, %v353
        %v386 = vpack.c.b16 %v354, %v354
        %v387 = vpack.c.b16 %v355, %v355
        %v388 = vpack.c.b16 %v356, %v356
        %v389 = vpack.c.b16 %v357, %v357
        %v390 = vpack.c.b16 %v358, %v358
        %v391 = vpack.c.b16 %v359, %v359
        %v392 = vpack.c.b16 %v360, %v360
        %v393 = vpack.c.b16 %v361, %v361
        %v394 = vpack.c.b16 %v362, %v362
        %v395 = vpack.c.b16 %v363, %v363
        %v396 = vpack.c.b16 %v364, %v364
        %v397 = vpack.c.b16 %v365, %v365
        %v398 = vpack.c.b16 %v366, %v366
        %v399 = vpack.c.b16 %v367, %v367
        %v400 = vpack.c.b16 %v368, %v368
        %vm401 = vsmask.f32 256
        %vm402 = vsmask.f32 4368
        %vm403 = vmor %vm401, %vm402
        %v405 = vshrl.u32 %v369, 16
        %v407 = vrot.slane %v405, 7
        %v408 = vshll.u32 %v369, 16
        %v410 = vor.u32 %v407, %v408
        %v411 = vrot.slane %v407, 4
        %v413 = vshrl.u32 %v370, 16
        %v415 = vrot.slane %v413, 7
        %v416 = vshll.u32 %v370, 16
        %v418 = vor.u32 %v415, %v416
        %v419 = vsel %vm403, %v411, %v418
        %v420 = vrot.slane %v415, 4
        %v422 = vshrl.u32 %v371, 16
        %v424 = vrot.slane %v422, 7
        %v425 = vshll.u32 %v371, 16
        %v427 = vor.u32 %v424, %v425
        %v428 = vrot.slane %v424, 4
        %v430 = vshrl.u32 %v372, 16
        %v432 = vrot.slane %v430, 7
        %v433 = vshll.u32 %v372, 16
        %v435 = vor.u32 %v432, %v433
        %v436 = vsel %vm403, %v428, %v435
        %v437 = vrot.slane %v432, 4
        %v439 = vshrl.u32 %v373, 16
        %v441 = vrot.slane %v439, 7
        %v442 = vshll.u32 %v373, 16
        %v444 = vor.u32 %v441, %v442
        %v445 = vrot.slane %v441, 4
        %v447 = vshrl.u32 %v374, 16
        %v449 = vrot.slane %v447, 7
        %v450 = vshll.u32 %v374, 16
        %v452 = vor.u32 %v449, %v450
        %v453 = vsel %vm403, %v445, %v452
        %v454 = vrot.slane %v449, 4
        %v456 = vshrl.u32 %v375, 16
        %v458 = vrot.slane %v456, 7
        %v459 = vshll.u32 %v375, 16
        %v461 = vor.u32 %v458, %v459
        %v462 = vrot.slane %v458, 4
        %v464 = vshrl.u32 %v376, 16
        %v466 = vrot.slane %v464, 7
        %v467 = vshll.u32 %v376, 16
        %v469 = vor.u32 %v466, %v467
        %v470 = vsel %vm403, %v462, %v469
        %v471 = vrot.slane %v466, 4
        %v473 = vshrl.u32 %v377, 16
        %v475 = vrot.slane %v473, 7
        %v476 = vshll.u32 %v377, 16
        %v478 = vor.u32 %v475, %v476
        %v479 = vrot.slane %v475, 4
        %v481 = vshrl.u32 %v378, 16
        %v483 = vrot.slane %v481, 7
        %v484 = vshll.u32 %v378, 16
        %v486 = vor.u32 %v483, %v484
        %v487 = vsel %vm403, %v479, %v486
        %v488 = vrot.slane %v483, 4
        %v490 = vshrl.u32 %v379, 16
        %v492 = vrot.slane %v490, 7
        %v493 = vshll.u32 %v379, 16
        %v495 = vor.u32 %v492, %v493
        %v496 = vrot.slane %v492, 4
        %v498 = vshrl.u32 %v380, 16
        %v500 = vrot.slane %v498, 7
        %v501 = vshll.u32 %v380, 16
        %v503 = vor.u32 %v500, %v501
        %v504 = vsel %vm403, %v496, %v503
        %v505 = vrot.slane %v500, 4
        %v507 = vshrl.u32 %v381, 16
        %v509 = vrot.slane %v507, 7
        %v510 = vshll.u32 %v381, 16
        %v512 = vor.u32 %v509, %v510
        %v513 = vrot.slane %v509, 4
        %v515 = vshrl.u32 %v382, 16
        %v517 = vrot.slane %v515, 7
        %v518 = vshll.u32 %v382, 16
        %v520 = vor.u32 %v517, %v518
        %v521 = vsel %vm403, %v513, %v520
        %v522 = vrot.slane %v517, 4
        %v524 = vshrl.u32 %v383, 16
        %v526 = vrot.slane %v524, 7
        %v527 = vshll.u32 %v383, 16
        %v529 = vor.u32 %v526, %v527
        %v530 = vrot.slane %v526, 4
        %v532 = vshrl.u32 %v384, 16
        %v534 = vrot.slane %v532, 7
        %v535 = vshll.u32 %v384, 16
        %v537 = vor.u32 %v534, %v535
        %v538 = vsel %vm403, %v530, %v537
        %v539 = vrot.slane %v534, 4
        %v541 = vshrl.u32 %v385, 16
        %v543 = vrot.slane %v541, 7
        %v544 = vshll.u32 %v385, 16
        %v546 = vor.u32 %v543, %v544
        %v547 = vrot.slane %v543, 4
        %v549 = vshrl.u32 %v386, 16
        %v551 = vrot.slane %v549, 7
        %v552 = vshll.u32 %v386, 16
        %v554 = vor.u32 %v551, %v552
        %v555 = vsel %vm403, %v547, %v554
        %v556 = vrot.slane %v551, 4
        %v558 = vshrl.u32 %v387, 16
        %v560 = vrot.slane %v558, 7
        %v561 = vshll.u32 %v387, 16
        %v563 = vor.u32 %v560, %v561
        %v564 = vrot.slane %v560, 4
        %v566 = vshrl.u32 %v388, 16
        %v568 = vrot.slane %v566, 7
        %v569 = vshll.u32 %v388, 16
        %v571 = vor.u32 %v568, %v569
        %v572 = vsel %vm403, %v564, %v571
        %v573 = vrot.slane %v568, 4
        %v575 = vshrl.u32 %v389, 16
        %v577 = vrot.slane %v575, 7
        %v578 = vshll.u32 %v389, 16
        %v580 = vor.u32 %v577, %v578
        %v581 = vrot.slane %v577, 4
        %v583 = vshrl.u32 %v390, 16
        %v585 = vrot.slane %v583, 7
        %v586 = vshll.u32 %v390, 16
        %v588 = vor.u32 %v585, %v586
        %v589 = vsel %vm403, %v581, %v588
        %v590 = vrot.slane %v585, 4
        %v592 = vshrl.u32 %v391, 16
        %v594 = vrot.slane %v592, 7
        %v595 = vshll.u32 %v391, 16
        %v597 = vor.u32 %v594, %v595
        %v598 = vrot.slane %v594, 4
        %v600 = vshrl.u32 %v392, 16
        %v602 = vrot.slane %v600, 7
        %v603 = vshll.u32 %v392, 16
        %v605 = vor.u32 %v602, %v603
        %v606 = vsel %vm403, %v598, %v605
        %v607 = vrot.slane %v602, 4
        %v609 = vshrl.u32 %v393, 16
        %v611 = vrot.slane %v609, 7
        %v612 = vshll.u32 %v393, 16
        %v614 = vor.u32 %v611, %v612
        %v615 = vrot.slane %v611, 4
        %v617 = vshrl.u32 %v394, 16
        %v619 = vrot.slane %v617, 7
        %v620 = vshll.u32 %v394, 16
        %v622 = vor.u32 %v619, %v620
        %v623 = vsel %vm403, %v615, %v622
        %v624 = vrot.slane %v619, 4
        %v626 = vshrl.u32 %v395, 16
        %v628 = vrot.slane %v626, 7
        %v629 = vshll.u32 %v395, 16
        %v631 = vor.u32 %v628, %v629
        %v632 = vrot.slane %v628, 4
        %v634 = vshrl.u32 %v396, 16
        %v636 = vrot.slane %v634, 7
        %v637 = vshll.u32 %v396, 16
        %v639 = vor.u32 %v636, %v637
        %v640 = vsel %vm403, %v632, %v639
        %v641 = vrot.slane %v636, 4
        %v643 = vshrl.u32 %v397, 16
        %v645 = vrot.slane %v643, 7
        %v646 = vshll.u32 %v397, 16
        %v648 = vor.u32 %v645, %v646
        %v649 = vrot.slane %v645, 4
        %v651 = vshrl.u32 %v398, 16
        %v653 = vrot.slane %v651, 7
        %v654 = vshll.u32 %v398, 16
        %v656 = vor.u32 %v653, %v654
        %v657 = vsel %vm403, %v649, %v656
        %v658 = vrot.slane %v653, 4
        %v660 = vshrl.u32 %v399, 16
        %v662 = vrot.slane %v660, 7
        %v663 = vshll.u32 %v399, 16
        %v665 = vor.u32 %v662, %v663
        %v666 = vrot.slane %v662, 4
        %v668 = vshrl.u32 %v400, 16
        %v670 = vrot.slane %v668, 7
        %v671 = vshll.u32 %v400, 16
        %v673 = vor.u32 %v670, %v671
        %v674 = vsel %vm403, %v666, %v673
        %v675 = vrot.slane %v670, 4
        %s724 = scalar_lea.vmem [#allocation2], 12
        %vm725 = vcmask 519168
        %vm726 = vsmask.f32 7938
        %vm727 = vmand %vm725, %vm726
        %v728 = vld [vmem:[%s724] sm:$0xf]
        %v729 = vsel %vm727, %v410, %v728
        %730 = vst [vmem:[%s724] sm:$0xf] %v729
        %731 = vst.msk [vmem:[%s724 + $0x4] sm:$0xf] %vm217, %v419
        %vm732 = vcmask 516096
        %vm733 = vmand %vm732, %vm401
        %v734 = vld [vmem:[%s724 + $0x8] sm:$0x1]
        %v735 = vsel %vm733, %v420, %v734
        %736 = vst [vmem:[%s724 + $0x8] sm:$0x1] %v735
        %v737 = vld [vmem:[%s724 + $0xc] sm:$0xf]
        %v738 = vsel %vm727, %v427, %v737
        %739 = vst [vmem:[%s724 + $0xc] sm:$0xf] %v738
        %740 = vst.msk [vmem:[%s724 + $0x10] sm:$0xf] %vm217, %v436
        %v741 = vld [vmem:[%s724 + $0x14] sm:$0x1]
        %v742 = vsel %vm733, %v437, %v741
        %743 = vst [vmem:[%s724 + $0x14] sm:$0x1] %v742
        %v744 = vld [vmem:[%s724 + $0x18] sm:$0xf]
        %v745 = vsel %vm727, %v444, %v744
        %746 = vst [vmem:[%s724 + $0x18] sm:$0xf] %v745
        %747 = vst.msk [vmem:[%s724 + $0x1c] sm:$0xf] %vm217, %v453
        %v748 = vld [vmem:[%s724 + $0x20] sm:$0x1]
        %v749 = vsel %vm733, %v454, %v748
        %750 = vst [vmem:[%s724 + $0x20] sm:$0x1] %v749
        %v751 = vld [vmem:[%s724 + $0x24] sm:$0xf]
        %v752 = vsel %vm727, %v461, %v751
        %753 = vst [vmem:[%s724 + $0x24] sm:$0xf] %v752
        %754 = vst.msk [vmem:[%s724 + $0x28] sm:$0xf] %vm217, %v470
        %v755 = vld [vmem:[%s724 + $0x2c] sm:$0x1]
        %v756 = vsel %vm733, %v471, %v755
        %757 = vst [vmem:[%s724 + $0x2c] sm:$0x1] %v756
        %v758 = vld [vmem:[%s724 + $0x30] sm:$0xf]
        %v759 = vsel %vm727, %v478, %v758
        %760 = vst [vmem:[%s724 + $0x30] sm:$0xf] %v759
        %761 = vst.msk [vmem:[%s724 + $0x34] sm:$0xf] %vm217, %v487
        %v762 = vld [vmem:[%s724 + $0x38] sm:$0x1]
        %v763 = vsel %vm733, %v488, %v762
        %764 = vst [vmem:[%s724 + $0x38] sm:$0x1] %v763
        %v765 = vld [vmem:[%s724 + $0x3c] sm:$0xf]
        %v766 = vsel %vm727, %v495, %v765
        %767 = vst [vmem:[%s724 + $0x3c] sm:$0xf] %v766
        %768 = vst.msk [vmem:[%s724 + $0x40] sm:$0xf] %vm217, %v504
        %v769 = vld [vmem:[%s724 + $0x44] sm:$0x1]
        %v770 = vsel %vm733, %v505, %v769
        %771 = vst [vmem:[%s724 + $0x44] sm:$0x1] %v770
        %v772 = vld [vmem:[%s724 + $0x48] sm:$0xf]
        %v773 = vsel %vm727, %v512, %v772
        %774 = vst [vmem:[%s724 + $0x48] sm:$0xf] %v773
        %775 = vst.msk [vmem:[%s724 + $0x4c] sm:$0xf] %vm217, %v521
        %v776 = vld [vmem:[%s724 + $0x50] sm:$0x1]
        %v777 = vsel %vm733, %v522, %v776
        %778 = vst [vmem:[%s724 + $0x50] sm:$0x1] %v777
        %v779 = vld [vmem:[%s724 + $0x54] sm:$0xf]
        %v780 = vsel %vm727, %v529, %v779
        %781 = vst [vmem:[%s724 + $0x54] sm:$0xf] %v780
        %782 = vst.msk [vmem:[%s724 + $0x58] sm:$0xf] %vm217, %v538
        %v783 = vld [vmem:[%s724 + $0x5c] sm:$0x1]
        %v784 = vsel %vm733, %v539, %v783
        %785 = vst [vmem:[%s724 + $0x5c] sm:$0x1] %v784
        %v786 = vld [vmem:[%s724 + $0x60] sm:$0xf]
        %v787 = vsel %vm727, %v546, %v786
        %788 = vst [vmem:[%s724 + $0x60] sm:$0xf] %v787
        %789 = vst.msk [vmem:[%s724 + $0x64] sm:$0xf] %vm217, %v555
        %v790 = vld [vmem:[%s724 + $0x68] sm:$0x1]
        %v791 = vsel %vm733, %v556, %v790
        %792 = vst [vmem:[%s724 + $0x68] sm:$0x1] %v791
        %v793 = vld [vmem:[%s724 + $0x6c] sm:$0xf]
        %v794 = vsel %vm727, %v563, %v793
        %795 = vst [vmem:[%s724 + $0x6c] sm:$0xf] %v794
        %796 = vst.msk [vmem:[%s724 + $0x70] sm:$0xf] %vm217, %v572
        %v797 = vld [vmem:[%s724 + $0x74] sm:$0x1]
        %v798 = vsel %vm733, %v573, %v797
        %799 = vst [vmem:[%s724 + $0x74] sm:$0x1] %v798
        %v800 = vld [vmem:[%s724 + $0x78] sm:$0xf]
        %v801 = vsel %vm727, %v580, %v800
        %802 = vst [vmem:[%s724 + $0x78] sm:$0xf] %v801
        %803 = vst.msk [vmem:[%s724 + $0x7c] sm:$0xf] %vm217, %v589
        %v804 = vld [vmem:[%s724 + $0x80] sm:$0x1]
        %v805 = vsel %vm733, %v590, %v804
        %806 = vst [vmem:[%s724 + $0x80] sm:$0x1] %v805
        %v807 = vld [vmem:[%s724 + $0x84] sm:$0xf]
        %v808 = vsel %vm727, %v597, %v807
        %809 = vst [vmem:[%s724 + $0x84] sm:$0xf] %v808
        %810 = vst.msk [vmem:[%s724 + $0x88] sm:$0xf] %vm217, %v606
        %v811 = vld [vmem:[%s724 + $0x8c] sm:$0x1]
        %v812 = vsel %vm733, %v607, %v811
        %813 = vst [vmem:[%s724 + $0x8c] sm:$0x1] %v812
        %v814 = vld [vmem:[%s724 + $0x90] sm:$0xf]
        %v815 = vsel %vm727, %v614, %v814
        %816 = vst [vmem:[%s724 + $0x90] sm:$0xf] %v815
        %817 = vst.msk [vmem:[%s724 + $0x94] sm:$0xf] %vm217, %v623
        %v818 = vld [vmem:[%s724 + $0x98] sm:$0x1]
        %v819 = vsel %vm733, %v624, %v818
        %820 = vst [vmem:[%s724 + $0x98] sm:$0x1] %v819
        %v821 = vld [vmem:[%s724 + $0x9c] sm:$0xf]
        %v822 = vsel %vm727, %v631, %v821
        %823 = vst [vmem:[%s724 + $0x9c] sm:$0xf] %v822
        %824 = vst.msk [vmem:[%s724 + $0xa0] sm:$0xf] %vm217, %v640
        %v825 = vld [vmem:[%s724 + $0xa4] sm:$0x1]
        %v826 = vsel %vm733, %v641, %v825
        %827 = vst [vmem:[%s724 + $0xa4] sm:$0x1] %v826
        %v828 = vld [vmem:[%s724 + $0xa8] sm:$0xf]
        %v829 = vsel %vm727, %v648, %v828
        %830 = vst [vmem:[%s724 + $0xa8] sm:$0xf] %v829
        %831 = vst.msk [vmem:[%s724 + $0xac] sm:$0xf] %vm217, %v657
        %v832 = vld [vmem:[%s724 + $0xb0] sm:$0x1]
        %v833 = vsel %vm733, %v658, %v832
        %834 = vst [vmem:[%s724 + $0xb0] sm:$0x1] %v833
        %v835 = vld [vmem:[%s724 + $0xb4] sm:$0xf]
        %v836 = vsel %vm727, %v665, %v835
        %837 = vst [vmem:[%s724 + $0xb4] sm:$0xf] %v836
        %838 = vst.msk [vmem:[%s724 + $0xb8] sm:$0xf] %vm217, %v674
        %v839 = vld [vmem:[%s724 + $0xbc] sm:$0x1]
        %v840 = vsel %vm733, %v675, %v839
        %841 = vst [vmem:[%s724 + $0xbc] sm:$0x1] %v840
        %v842 = vld [vmem:[#allocation2] sm:$0xf]
        %v843 = vld [vmem:[#allocation2 + $0x4] sm:$0xf]
        %v844 = vld [vmem:[#allocation2 + $0xc] sm:$0xf]
        %v845 = vld [vmem:[#allocation2 + $0x10] sm:$0xf]
        %v846 = vld [vmem:[#allocation2 + $0x18] sm:$0xf]
        %v847 = vld [vmem:[#allocation2 + $0x1c] sm:$0xf]
        %v848 = vld [vmem:[#allocation2 + $0x24] sm:$0xf]
        %v849 = vld [vmem:[#allocation2 + $0x28] sm:$0xf]
        %v850 = vld [vmem:[#allocation2 + $0x30] sm:$0xf]
        %v851 = vld [vmem:[#allocation2 + $0x34] sm:$0xf]
        %v852 = vld [vmem:[#allocation2 + $0x3c] sm:$0xf]
        %v853 = vld [vmem:[#allocation2 + $0x40] sm:$0xf]
        %v854 = vld [vmem:[#allocation2 + $0x48] sm:$0xf]
        %v855 = vld [vmem:[#allocation2 + $0x4c] sm:$0xf]
        %v856 = vld [vmem:[#allocation2 + $0x54] sm:$0xf]
        %v857 = vld [vmem:[#allocation2 + $0x58] sm:$0xf]
        %v858 = vld [vmem:[#allocation2 + $0x60] sm:$0xf]
        %v859 = vld [vmem:[#allocation2 + $0x64] sm:$0xf]
        %v860 = vld [vmem:[#allocation2 + $0x6c] sm:$0xf]
        %v861 = vld [vmem:[#allocation2 + $0x70] sm:$0xf]
        %v862 = vld [vmem:[#allocation2 + $0x78] sm:$0xf]
        %v863 = vld [vmem:[#allocation2 + $0x7c] sm:$0xf]
        %v864 = vld [vmem:[#allocation2 + $0x84] sm:$0xf]
        %v865 = vld [vmem:[#allocation2 + $0x88] sm:$0xf]
        %v866 = vld [vmem:[#allocation2 + $0x90] sm:$0xf]
        %v867 = vld [vmem:[#allocation2 + $0x94] sm:$0xf]
        %v868 = vld [vmem:[#allocation2 + $0x9c] sm:$0xf]
        %v869 = vld [vmem:[#allocation2 + $0xa0] sm:$0xf]
        %v870 = vld [vmem:[#allocation2 + $0xa8] sm:$0xf]
        %v871 = vld [vmem:[#allocation2 + $0xac] sm:$0xf]
        %v872 = vld [vmem:[#allocation2 + $0xb4] sm:$0xf]
        %v873 = vld [vmem:[#allocation2 + $0xb8] sm:$0xf]
        %v874 = vld [vmem:[%s1] sm:$0xf]
        %v875 = vld [vmem:[%s1 + $0x4] sm:$0xf]
        %v876 = vld [vmem:[%s1 + $0x8] sm:$0xf]
        %v877 = vld [vmem:[%s1 + $0xc] sm:$0xf]
        %v878 = vld [vmem:[%s1 + $0x10] sm:$0xf]
        %v879 = vld [vmem:[%s1 + $0x14] sm:$0xf]
        %v880 = vld [vmem:[%s1 + $0x18] sm:$0xf]
        %v881 = vld [vmem:[%s1 + $0x1c] sm:$0xf]
        %v882 = vld [vmem:[#allocation2 + $0x8] sm:$0x1]
        %v883 = vld [vmem:[#allocation2 + $0x14] sm:$0x1]
        %v884 = vld [vmem:[#allocation2 + $0x20] sm:$0x1]
        %v885 = vld [vmem:[#allocation2 + $0x2c] sm:$0x1]
        %v886 = vld [vmem:[#allocation2 + $0x38] sm:$0x1]
        %v887 = vld [vmem:[#allocation2 + $0x44] sm:$0x1]
        %v888 = vld [vmem:[#allocation2 + $0x50] sm:$0x1]
        %v889 = vld [vmem:[#allocation2 + $0x5c] sm:$0x1]
        %v890 = vld [vmem:[#allocation2 + $0x68] sm:$0x1]
        %v891 = vld [vmem:[#allocation2 + $0x74] sm:$0x1]
        %v892 = vld [vmem:[#allocation2 + $0x80] sm:$0x1]
        %v893 = vld [vmem:[#allocation2 + $0x8c] sm:$0x1]
        %v894 = vld [vmem:[#allocation2 + $0x98] sm:$0x1]
        %v895 = vld [vmem:[#allocation2 + $0xa4] sm:$0x1]
        %v896 = vld [vmem:[#allocation2 + $0xb0] sm:$0x1]
        %v897 = vld [vmem:[#allocation2 + $0xbc] sm:$0x1]
        %vm898 = vsmask.f32 3328
        %vm899 = vsmask.f32 7440
        %vm900 = vmor %vm898, %vm899
        %v902 = vshrl.u32 %v842, 16
        %v904 = vrot.slane %v902, 4
        %v905 = vshll.u32 %v842, 16
        %v907 = vrot.slane %v905, 5
        %v908 = vor.u32 %v904, %v907
        %v909 = vrot.slane %v908, 4
        %v911 = vshll.u32 %v843, 16
        %v913 = vrot.slane %v911, 5
        %v914 = vsel %vm900, %v909, %v913
        %v915 = vshrl.u32 %v843, 16
        %v917 = vrot.slane %v915, 4
        %v918 = vor.u32 %v917, %v913
        %v919 = vrot.slane %v918, 4
        %v921 = vshll.u32 %v882, 16
        %v923 = vrot.slane %v921, 5
        %v924 = vsel %vm900, %v919, %v923
        %v926 = vshrl.u32 %v844, 16
        %v928 = vrot.slane %v926, 4
        %v929 = vshll.u32 %v844, 16
        %v931 = vrot.slane %v929, 5
        %v932 = vor.u32 %v928, %v931
        %v933 = vrot.slane %v932, 4
        %v935 = vshll.u32 %v845, 16
        %v937 = vrot.slane %v935, 5
        %v938 = vsel %vm900, %v933, %v937
        %v939 = vshrl.u32 %v845, 16
        %v941 = vrot.slane %v939, 4
        %v942 = vor.u32 %v941, %v937
        %v943 = vrot.slane %v942, 4
        %v945 = vshll.u32 %v883, 16
        %v947 = vrot.slane %v945, 5
        %v948 = vsel %vm900, %v943, %v947
        %v950 = vshrl.u32 %v846, 16
        %v952 = vrot.slane %v950, 4
        %v953 = vshll.u32 %v846, 16
        %v955 = vrot.slane %v953, 5
        %v956 = vor.u32 %v952, %v955
        %v957 = vrot.slane %v956, 4
        %v959 = vshll.u32 %v847, 16
        %v961 = vrot.slane %v959, 5
        %v962 = vsel %vm900, %v957, %v961
        %v963 = vshrl.u32 %v847, 16
        %v965 = vrot.slane %v963, 4
        %v966 = vor.u32 %v965, %v961
        %v967 = vrot.slane %v966, 4
        %v969 = vshll.u32 %v884, 16
        %v971 = vrot.slane %v969, 5
        %v972 = vsel %vm900, %v967, %v971
        %v974 = vshrl.u32 %v848, 16
        %v976 = vrot.slane %v974, 4
        %v977 = vshll.u32 %v848, 16
        %v979 = vrot.slane %v977, 5
        %v980 = vor.u32 %v976, %v979
        %v981 = vrot.slane %v980, 4
        %v983 = vshll.u32 %v849, 16
        %v985 = vrot.slane %v983, 5
        %v986 = vsel %vm900, %v981, %v985
        %v987 = vshrl.u32 %v849, 16
        %v989 = vrot.slane %v987, 4
        %v990 = vor.u32 %v989, %v985
        %v991 = vrot.slane %v990, 4
        %v993 = vshll.u32 %v885, 16
        %v995 = vrot.slane %v993, 5
        %v996 = vsel %vm900, %v991, %v995
        %v998 = vshrl.u32 %v850, 16
        %v1000 = vrot.slane %v998, 4
        %v1001 = vshll.u32 %v850, 16
        %v1003 = vrot.slane %v1001, 5
        %v1004 = vor.u32 %v1000, %v1003
        %v1005 = vrot.slane %v1004, 4
        %v1007 = vshll.u32 %v851, 16
        %v1009 = vrot.slane %v1007, 5
        %v1010 = vsel %vm900, %v1005, %v1009
        %v1011 = vshrl.u32 %v851, 16
        %v1013 = vrot.slane %v1011, 4
        %v1014 = vor.u32 %v1013, %v1009
        %v1015 = vrot.slane %v1014, 4
        %v1017 = vshll.u32 %v886, 16
        %v1019 = vrot.slane %v1017, 5
        %v1020 = vsel %vm900, %v1015, %v1019
        %v1022 = vshrl.u32 %v852, 16
        %v1024 = vrot.slane %v1022, 4
        %v1025 = vshll.u32 %v852, 16
        %v1027 = vrot.slane %v1025, 5
        %v1028 = vor.u32 %v1024, %v1027
        %v1029 = vrot.slane %v1028, 4
        %v1031 = vshll.u32 %v853, 16
        %v1033 = vrot.slane %v1031, 5
        %v1034 = vsel %vm900, %v1029, %v1033
        %v1035 = vshrl.u32 %v853, 16
        %v1037 = vrot.slane %v1035, 4
        %v1038 = vor.u32 %v1037, %v1033
        %v1039 = vrot.slane %v1038, 4
        %v1041 = vshll.u32 %v887, 16
        %v1043 = vrot.slane %v1041, 5
        %v1044 = vsel %vm900, %v1039, %v1043
        %v1046 = vshrl.u32 %v854, 16
        %v1048 = vrot.slane %v1046, 4
        %v1049 = vshll.u32 %v854, 16
        %v1051 = vrot.slane %v1049, 5
        %v1052 = vor.u32 %v1048, %v1051
        %v1053 = vrot.slane %v1052, 4
        %v1055 = vshll.u32 %v855, 16
        %v1057 = vrot.slane %v1055, 5
        %v1058 = vsel %vm900, %v1053, %v1057
        %v1059 = vshrl.u32 %v855, 16
        %v1061 = vrot.slane %v1059, 4
        %v1062 = vor.u32 %v1061, %v1057
        %v1063 = vrot.slane %v1062, 4
        %v1065 = vshll.u32 %v888, 16
        %v1067 = vrot.slane %v1065, 5
        %v1068 = vsel %vm900, %v1063, %v1067
        %v1070 = vshrl.u32 %v856, 16
        %v1072 = vrot.slane %v1070, 4
        %v1073 = vshll.u32 %v856, 16
        %v1075 = vrot.slane %v1073, 5
        %v1076 = vor.u32 %v1072, %v1075
        %v1077 = vrot.slane %v1076, 4
        %v1079 = vshll.u32 %v857, 16
        %v1081 = vrot.slane %v1079, 5
        %v1082 = vsel %vm900, %v1077, %v1081
        %v1083 = vshrl.u32 %v857, 16
        %v1085 = vrot.slane %v1083, 4
        %v1086 = vor.u32 %v1085, %v1081
        %v1087 = vrot.slane %v1086, 4
        %v1089 = vshll.u32 %v889, 16
        %v1091 = vrot.slane %v1089, 5
        %v1092 = vsel %vm900, %v1087, %v1091
        %v1094 = vshrl.u32 %v858, 16
        %v1096 = vrot.slane %v1094, 4
        %v1097 = vshll.u32 %v858, 16
        %v1099 = vrot.slane %v1097, 5
        %v1100 = vor.u32 %v1096, %v1099
        %v1101 = vrot.slane %v1100, 4
        %v1103 = vshll.u32 %v859, 16
        %v1105 = vrot.slane %v1103, 5
        %v1106 = vsel %vm900, %v1101, %v1105
        %v1107 = vshrl.u32 %v859, 16
        %v1109 = vrot.slane %v1107, 4
        %v1110 = vor.u32 %v1109, %v1105
        %v1111 = vrot.slane %v1110, 4
        %v1113 = vshll.u32 %v890, 16
        %v1115 = vrot.slane %v1113, 5
        %v1116 = vsel %vm900, %v1111, %v1115
        %v1118 = vshrl.u32 %v860, 16
        %v1120 = vrot.slane %v1118, 4
        %v1121 = vshll.u32 %v860, 16
        %v1123 = vrot.slane %v1121, 5
        %v1124 = vor.u32 %v1120, %v1123
        %v1125 = vrot.slane %v1124, 4
        %v1127 = vshll.u32 %v861, 16
        %v1129 = vrot.slane %v1127, 5
        %v1130 = vsel %vm900, %v1125, %v1129
        %v1131 = vshrl.u32 %v861, 16
        %v1133 = vrot.slane %v1131, 4
        %v1134 = vor.u32 %v1133, %v1129
        %v1135 = vrot.slane %v1134, 4
        %v1137 = vshll.u32 %v891, 16
        %v1139 = vrot.slane %v1137, 5
        %v1140 = vsel %vm900, %v1135, %v1139
        %v1142 = vshrl.u32 %v862, 16
        %v1144 = vrot.slane %v1142, 4
        %v1145 = vshll.u32 %v862, 16
        %v1147 = vrot.slane %v1145, 5
        %v1148 = vor.u32 %v1144, %v1147
        %v1149 = vrot.slane %v1148, 4
        %v1151 = vshll.u32 %v863, 16
        %v1153 = vrot.slane %v1151, 5
        %v1154 = vsel %vm900, %v1149, %v1153
        %v1155 = vshrl.u32 %v863, 16
        %v1157 = vrot.slane %v1155, 4
        %v1158 = vor.u32 %v1157, %v1153
        %v1159 = vrot.slane %v1158, 4
        %v1161 = vshll.u32 %v892, 16
        %v1163 = vrot.slane %v1161, 5
        %v1164 = vsel %vm900, %v1159, %v1163
        %v1166 = vshrl.u32 %v864, 16
        %v1168 = vrot.slane %v1166, 4
        %v1169 = vshll.u32 %v864, 16
        %v1171 = vrot.slane %v1169, 5
        %v1172 = vor.u32 %v1168, %v1171
        %v1173 = vrot.slane %v1172, 4
        %v1175 = vshll.u32 %v865, 16
        %v1177 = vrot.slane %v1175, 5
        %v1178 = vsel %vm900, %v1173, %v1177
        %v1179 = vshrl.u32 %v865, 16
        %v1181 = vrot.slane %v1179, 4
        %v1182 = vor.u32 %v1181, %v1177
        %v1183 = vrot.slane %v1182, 4
        %v1185 = vshll.u32 %v893, 16
        %v1187 = vrot.slane %v1185, 5
        %v1188 = vsel %vm900, %v1183, %v1187
        %v1190 = vshrl.u32 %v866, 16
        %v1192 = vrot.slane %v1190, 4
        %v1193 = vshll.u32 %v866, 16
        %v1195 = vrot.slane %v1193, 5
        %v1196 = vor.u32 %v1192, %v1195
        %v1197 = vrot.slane %v1196, 4
        %v1199 = vshll.u32 %v867, 16
        %v1201 = vrot.slane %v1199, 5
        %v1202 = vsel %vm900, %v1197, %v1201
        %v1203 = vshrl.u32 %v867, 16
        %v1205 = vrot.slane %v1203, 4
        %v1206 = vor.u32 %v1205, %v1201
        %v1207 = vrot.slane %v1206, 4
        %v1209 = vshll.u32 %v894, 16
        %v1211 = vrot.slane %v1209, 5
        %v1212 = vsel %vm900, %v1207, %v1211
        %v1214 = vshrl.u32 %v868, 16
        %v1216 = vrot.slane %v1214, 4
        %v1217 = vshll.u32 %v868, 16
        %v1219 = vrot.slane %v1217, 5
        %v1220 = vor.u32 %v1216, %v1219
        %v1221 = vrot.slane %v1220, 4
        %v1223 = vshll.u32 %v869, 16
        %v1225 = vrot.slane %v1223, 5
        %v1226 = vsel %vm900, %v1221, %v1225
        %v1227 = vshrl.u32 %v869, 16
        %v1229 = vrot.slane %v1227, 4
        %v1230 = vor.u32 %v1229, %v1225
        %v1231 = vrot.slane %v1230, 4
        %v1233 = vshll.u32 %v895, 16
        %v1235 = vrot.slane %v1233, 5
        %v1236 = vsel %vm900, %v1231, %v1235
        %v1238 = vshrl.u32 %v870, 16
        %v1240 = vrot.slane %v1238, 4
        %v1241 = vshll.u32 %v870, 16
        %v1243 = vrot.slane %v1241, 5
        %v1244 = vor.u32 %v1240, %v1243
        %v1245 = vrot.slane %v1244, 4
        %v1247 = vshll.u32 %v871, 16
        %v1249 = vrot.slane %v1247, 5
        %v1250 = vsel %vm900, %v1245, %v1249
        %v1251 = vshrl.u32 %v871, 16
        %v1253 = vrot.slane %v1251, 4
        %v1254 = vor.u32 %v1253, %v1249
        %v1255 = vrot.slane %v1254, 4
        %v1257 = vshll.u32 %v896, 16
        %v1259 = vrot.slane %v1257, 5
        %v1260 = vsel %vm900, %v1255, %v1259
        %v1262 = vshrl.u32 %v872, 16
        %v1264 = vrot.slane %v1262, 4
        %v1265 = vshll.u32 %v872, 16
        %v1267 = vrot.slane %v1265, 5
        %v1268 = vor.u32 %v1264, %v1267
        %v1269 = vrot.slane %v1268, 4
        %v1271 = vshll.u32 %v873, 16
        %v1273 = vrot.slane %v1271, 5
        %v1274 = vsel %vm900, %v1269, %v1273
        %v1275 = vshrl.u32 %v873, 16
        %v1277 = vrot.slane %v1275, 4
        %v1278 = vor.u32 %v1277, %v1273
        %v1279 = vrot.slane %v1278, 4
        %v1281 = vshll.u32 %v897, 16
        %v1283 = vrot.slane %v1281, 5
        %v1284 = vsel %vm900, %v1279, %v1283
        %s1285 = scalar_lea.vmem %s1, 32
        %v1286 = vld [vmem:[%s1285] sm:$0xf]
        %v1287 = vld [vmem:[%s1285 + $0x4] sm:$0xf]
        %v1288 = vld [vmem:[%s1285 + $0x8] sm:$0xf]
        %v1289 = vld [vmem:[%s1285 + $0xc] sm:$0xf]
        %v1290 = vld [vmem:[%s1285 + $0x10] sm:$0xf]
        %v1291 = vld [vmem:[%s1285 + $0x14] sm:$0xf]
        %v1292 = vld [vmem:[%s1285 + $0x18] sm:$0xf]
        %v1293 = vld [vmem:[%s1285 + $0x1c] sm:$0xf]
        %v1294 = vunpack.c.l.b16 %v914
        %v1295 = vunpack.c.l.b16 %v924
        %v1296 = vunpack.c.l.b16 %v938
        %v1297 = vunpack.c.l.b16 %v948
        %v1298 = vunpack.c.l.b16 %v962
        %v1299 = vunpack.c.l.b16 %v972
        %v1300 = vunpack.c.l.b16 %v986
        %v1301 = vunpack.c.l.b16 %v996
        %v1302 = vunpack.c.l.b16 %v1010
        %v1303 = vunpack.c.l.b16 %v1020
        %v1304 = vunpack.c.l.b16 %v1034
        %v1305 = vunpack.c.l.b16 %v1044
        %v1306 = vunpack.c.l.b16 %v1058
        %v1307 = vunpack.c.l.b16 %v1068
        %v1308 = vunpack.c.l.b16 %v1082
        %v1309 = vunpack.c.l.b16 %v1092
        %v1310 = vunpack.c.l.b16 %v1106
        %v1311 = vunpack.c.l.b16 %v1116
        %v1312 = vunpack.c.l.b16 %v1130
        %v1313 = vunpack.c.l.b16 %v1140
        %v1314 = vunpack.c.l.b16 %v1154
        %v1315 = vunpack.c.l.b16 %v1164
        %v1316 = vunpack.c.l.b16 %v1178
        %v1317 = vunpack.c.l.b16 %v1188
        %v1318 = vunpack.c.l.b16 %v1202
        %v1319 = vunpack.c.l.b16 %v1212
        %v1320 = vunpack.c.l.b16 %v1226
        %v1321 = vunpack.c.l.b16 %v1236
        %v1322 = vunpack.c.l.b16 %v1250
        %v1323 = vunpack.c.l.b16 %v1260
        %v1324 = vunpack.c.l.b16 %v1274
        %v1325 = vunpack.c.l.b16 %v1284
        %v1326 = vpack.c.b16 %v1295, %v1294
        %v1327 = vpack.c.b16 %v1297, %v1296
        %v1328 = vpack.c.b16 %v1299, %v1298
        %v1329 = vpack.c.b16 %v1301, %v1300
        %v1330 = vpack.c.b16 %v1303, %v1302
        %v1331 = vpack.c.b16 %v1305, %v1304
        %v1332 = vpack.c.b16 %v1307, %v1306
        %v1333 = vpack.c.b16 %v1309, %v1308
        %v1334 = vpack.c.b16 %v1311, %v1310
        %v1335 = vpack.c.b16 %v1313, %v1312
        %v1336 = vpack.c.b16 %v1315, %v1314
        %v1337 = vpack.c.b16 %v1317, %v1316
        %v1338 = vpack.c.b16 %v1319, %v1318
        %v1339 = vpack.c.b16 %v1321, %v1320
        %v1340 = vpack.c.b16 %v1323, %v1322
        %v1341 = vpack.c.b16 %v1325, %v1324
        %v1350 = vunpack.c.l.b16 %v1286
        %v1351 = vunpack.c.l.b16 %v1287
        %v1352 = vunpack.c.l.b16 %v1288
        %v1353 = vunpack.c.l.b16 %v1289
        %v1354 = vunpack.c.l.b16 %v1290
        %v1355 = vunpack.c.l.b16 %v1291
        %v1356 = vunpack.c.l.b16 %v1292
        %v1357 = vunpack.c.l.b16 %v1293
        %v1358 = vpack.c.b16 %v1351, %v1350
        %v1359 = vpack.c.b16 %v1353, %v1352
        %v1360 = vpack.c.b16 %v1355, %v1354
        %v1361 = vpack.c.b16 %v1357, %v1356
        %vm1366 = vcmask 523264
        %v1368 = vsel %vm1366, %v1326, 0
        %v1371 = vsel %vm1366, %v1327, 0
        %v1374 = vsel %vm1366, %v1328, 0
        %v1377 = vsel %vm1366, %v1329, 0
        %v1380 = vsel %vm1366, %v1330, 0
        %v1383 = vsel %vm1366, %v1331, 0
        %v1386 = vsel %vm1366, %v1332, 0
        %v1389 = vsel %vm1366, %v1333, 0
        %v1392 = vsel %vm1366, %v1334, 0
        %v1395 = vsel %vm1366, %v1335, 0
        %v1398 = vsel %vm1366, %v1336, 0
        %v1401 = vsel %vm1366, %v1337, 0
        %v1404 = vsel %vm1366, %v1338, 0
        %v1407 = vsel %vm1366, %v1339, 0
        %v1410 = vsel %vm1366, %v1340, 0
        %v1413 = vsel %vm1366, %v1341, 0
        %1415 = vmatprep.subr.bf16.mxu0 0
        %1416 = vmatpush1.bf16.msra.mxu0 %v1358
        %1417 = vmatprep.subr.bf16.mxu0 0
        %1418 = vmatpush1.bf16.msra.mxu0 %v1359
        %1419 = vmatprep.subr.bf16.mxu0 0
        %1420 = vmatpush1.bf16.msra.mxu0 %v1360
        %1421 = vmatprep.subr.bf16.mxu0 0
        %1422 = vmatpush1.bf16.msra.mxu0 %v1361
        %1423 = vmatprep.subr.bf16.mxu0 0
        %1424 = vmatpush1.bf16.msra.mxu0 0
        %1425 = vmatprep.subr.bf16.mxu0 0
        %1426 = vmatpush1.bf16.msra.mxu0 0
        %1427 = vmatprep.subr.bf16.mxu0 0
        %1428 = vmatpush1.bf16.msra.mxu0 0
        %1429 = vmatprep.subr.bf16.mxu0 0
        %1430 = vmatpush1.bf16.msra.mxu0 0
        %1431 = vmatprep.subr.bf16.mxu0 0
        %1432 = vmatpush1.bf16.msra.mxu0 0
        %1433 = vmatprep.subr.bf16.mxu0 0
        %1434 = vmatpush1.bf16.msra.mxu0 0
        %1435 = vmatprep.subr.bf16.mxu0 0
        %1436 = vmatpush1.bf16.msra.mxu0 0
        %1437 = vmatprep.subr.bf16.mxu0 0
        %1438 = vmatpush1.bf16.msra.mxu0 0
        %1439 = vmatprep.subr.bf16.mxu0 0
        %1440 = vmatpush1.bf16.msra.mxu0 0
        %1441 = vmatprep.subr.bf16.mxu0 0
        %1442 = vmatpush1.bf16.msra.mxu0 0
        %1443 = vmatprep.subr.bf16.mxu0 0
        %1444 = vmatpush1.bf16.msra.mxu0 0
        %1445 = vmatprep.subr.bf16.mxu0 0
        %1446 = vmatpush1.bf16.msra.mxu0 0
        %1447 = vmatprep.mubr.bf16.mxu0 0
        %1448 = vmatmul.mubr.bf16.gmra.mrb[0].mxu0 %v1368
        %v1449 = vpop.f32.mrb[0].mxu0
        %v1450 = vadd.f32 0.0, %v1449
        %v1451 = vpop.f32.mrb[0].mxu0
        %v1452 = vpop.f32.mrb[0].mxu0
        %v1453 = vadd.f32 0.0, %v1452
        %v1454 = vpop.f32.mrb[0].mxu0
        %1455 = vmatprep.mubr.bf16.mxu0 0
        %1456 = vmatmul.mubr.bf16.gmra.mrb[0].mxu0 %v1371
        %v1457 = vpop.f32.mrb[0].mxu0
        %v1458 = vadd.f32 0.0, %v1457
        %v1459 = vpop.f32.mrb[0].mxu0
        %v1460 = vpop.f32.mrb[0].mxu0
        %v1461 = vadd.f32 0.0, %v1460
        %v1462 = vpop.f32.mrb[0].mxu0
        %1463 = vmatprep.mubr.bf16.mxu0 0
        %1464 = vmatmul.mubr.bf16.gmra.mrb[0].mxu0 %v1374
        %v1465 = vpop.f32.mrb[0].mxu0
        %v1466 = vadd.f32 0.0, %v1465
        %v1467 = vpop.f32.mrb[0].mxu0
        %v1468 = vpop.f32.mrb[0].mxu0
        %v1469 = vadd.f32 0.0, %v1468
        %v1470 = vpop.f32.mrb[0].mxu0
        %1471 = vmatprep.mubr.bf16.mxu0 0
        %1472 = vmatmul.mubr.bf16.gmra.mrb[0].mxu0 %v1377
        %v1473 = vpop.f32.mrb[0].mxu0
        %v1474 = vadd.f32 0.0, %v1473
        %v1475 = vpop.f32.mrb[0].mxu0
        %v1476 = vpop.f32.mrb[0].mxu0
        %v1477 = vadd.f32 0.0, %v1476
        %v1478 = vpop.f32.mrb[0].mxu0
        %1479 = vmatprep.mubr.bf16.mxu0 0
        %1480 = vmatmul.mubr.bf16.gmra.mrb[0].mxu0 %v1380
        %v1481 = vpop.f32.mrb[0].mxu0
        %v1482 = vadd.f32 0.0, %v1481
        %v1483 = vpop.f32.mrb[0].mxu0
        %v1484 = vpop.f32.mrb[0].mxu0
        %v1485 = vadd.f32 0.0, %v1484
        %v1486 = vpop.f32.mrb[0].mxu0
        %1487 = vmatprep.mubr.bf16.mxu0 0
        %1488 = vmatmul.mubr.bf16.gmra.mrb[0].mxu0 %v1383
        %v1489 = vpop.f32.mrb[0].mxu0
        %v1490 = vadd.f32 0.0, %v1489
        %v1491 = vpop.f32.mrb[0].mxu0
        %v1492 = vpop.f32.mrb[0].mxu0
        %v1493 = vadd.f32 0.0, %v1492
        %v1494 = vpop.f32.mrb[0].mxu0
        %1495 = vmatprep.mubr.bf16.mxu0 0
        %1496 = vmatmul.mubr.bf16.gmra.mrb[0].mxu0 %v1386
        %v1497 = vpop.f32.mrb[0].mxu0
        %v1498 = vadd.f32 0.0, %v1497
        %v1499 = vpop.f32.mrb[0].mxu0
        %v1500 = vpop.f32.mrb[0].mxu0
        %v1501 = vadd.f32 0.0, %v1500
        %v1502 = vpop.f32.mrb[0].mxu0
        %1503 = vmatprep.mubr.bf16.mxu0 0
        %1504 = vmatmul.mubr.bf16.gmra.mrb[0].mxu0 %v1389
        %v1505 = vpop.f32.mrb[0].mxu0
        %v1506 = vadd.f32 0.0, %v1505
        %v1507 = vpop.f32.mrb[0].mxu0
        %v1508 = vpop.f32.mrb[0].mxu0
        %v1509 = vadd.f32 0.0, %v1508
        %v1510 = vpop.f32.mrb[0].mxu0
        %1511 = vmatprep.mubr.bf16.mxu0 0
        %1512 = vmatmul.mubr.bf16.gmra.mrb[0].mxu0 %v1392
        %v1513 = vpop.f32.mrb[0].mxu0
        %v1514 = vadd.f32 0.0, %v1513
        %v1515 = vpop.f32.mrb[0].mxu0
        %v1516 = vpop.f32.mrb[0].mxu0
        %v1517 = vadd.f32 0.0, %v1516
        %v1518 = vpop.f32.mrb[0].mxu0
        %1519 = vmatprep.mubr.bf16.mxu0 0
        %1520 = vmatmul.mubr.bf16.gmra.mrb[0].mxu0 %v1395
        %v1521 = vpop.f32.mrb[0].mxu0
        %v1522 = vadd.f32 0.0, %v1521
        %v1523 = vpop.f32.mrb[0].mxu0
        %v1524 = vpop.f32.mrb[0].mxu0
        %v1525 = vadd.f32 0.0, %v1524
        %v1526 = vpop.f32.mrb[0].mxu0
        %1527 = vmatprep.mubr.bf16.mxu0 0
        %1528 = vmatmul.mubr.bf16.gmra.mrb[0].mxu0 %v1398
        %v1529 = vpop.f32.mrb[0].mxu0
        %v1530 = vadd.f32 0.0, %v1529
        %v1531 = vpop.f32.mrb[0].mxu0
        %v1532 = vpop.f32.mrb[0].mxu0
        %v1533 = vadd.f32 0.0, %v1532
        %v1534 = vpop.f32.mrb[0].mxu0
        %1535 = vmatprep.mubr.bf16.mxu0 0
        %1536 = vmatmul.mubr.bf16.gmra.mrb[0].mxu0 %v1401
        %v1537 = vpop.f32.mrb[0].mxu0
        %v1538 = vadd.f32 0.0, %v1537
        %v1539 = vpop.f32.mrb[0].mxu0
        %v1540 = vpop.f32.mrb[0].mxu0
        %v1541 = vadd.f32 0.0, %v1540
        %v1542 = vpop.f32.mrb[0].mxu0
        %1543 = vmatprep.mubr.bf16.mxu0 0
        %1544 = vmatmul.mubr.bf16.gmra.mrb[0].mxu0 %v1404
        %v1545 = vpop.f32.mrb[0].mxu0
        %v1546 = vadd.f32 0.0, %v1545
        %v1547 = vpop.f32.mrb[0].mxu0
        %v1548 = vpop.f32.mrb[0].mxu0
        %v1549 = vadd.f32 0.0, %v1548
        %v1550 = vpop.f32.mrb[0].mxu0
        %1551 = vmatprep.mubr.bf16.mxu0 0
        %1552 = vmatmul.mubr.bf16.gmra.mrb[0].mxu0 %v1407
        %v1553 = vpop.f32.mrb[0].mxu0
        %v1554 = vadd.f32 0.0, %v1553
        %v1555 = vpop.f32.mrb[0].mxu0
        %v1556 = vpop.f32.mrb[0].mxu0
        %v1557 = vadd.f32 0.0, %v1556
        %v1558 = vpop.f32.mrb[0].mxu0
        %1559 = vmatprep.mubr.bf16.mxu0 0
        %1560 = vmatmul.mubr.bf16.gmra.mrb[0].mxu0 %v1410
        %v1561 = vpop.f32.mrb[0].mxu0
        %v1562 = vadd.f32 0.0, %v1561
        %v1563 = vpop.f32.mrb[0].mxu0
        %v1564 = vpop.f32.mrb[0].mxu0
        %v1565 = vadd.f32 0.0, %v1564
        %v1566 = vpop.f32.mrb[0].mxu0
        %1567 = vmatprep.mubr.bf16.mxu0 0
        %1568 = vmatmul.mubr.bf16.gmra.mrb[0].mxu0 %v1413
        %v1569 = vpop.f32.mrb[0].mxu0
        %v1570 = vadd.f32 0.0, %v1569
        %v1571 = vpop.f32.mrb[0].mxu0
        %v1572 = vpop.f32.mrb[0].mxu0
        %v1573 = vadd.f32 0.0, %v1572
        %v1574 = vpop.f32.mrb[0].mxu0
        %1575 = vdwg.mxu0
        %v1608 = vunpack.c.l.b16 %v842
        %v1609 = vunpack.c.l.b16 %v843
        %v1610 = vunpack.c.l.b16 %v844
        %v1611 = vunpack.c.l.b16 %v845
        %v1612 = vunpack.c.l.b16 %v846
        %v1613 = vunpack.c.l.b16 %v847
        %v1614 = vunpack.c.l.b16 %v848
        %v1615 = vunpack.c.l.b16 %v849
        %v1616 = vunpack.c.l.b16 %v850
        %v1617 = vunpack.c.l.b16 %v851
        %v1618 = vunpack.c.l.b16 %v852
        %v1619 = vunpack.c.l.b16 %v853
        %v1620 = vunpack.c.l.b16 %v854
        %v1621 = vunpack.c.l.b16 %v855
        %v1622 = vunpack.c.l.b16 %v856
        %v1623 = vunpack.c.l.b16 %v857
        %v1624 = vunpack.c.l.b16 %v858
        %v1625 = vunpack.c.l.b16 %v859
        %v1626 = vunpack.c.l.b16 %v860
        %v1627 = vunpack.c.l.b16 %v861
        %v1628 = vunpack.c.l.b16 %v862
        %v1629 = vunpack.c.l.b16 %v863
        %v1630 = vunpack.c.l.b16 %v864
        %v1631 = vunpack.c.l.b16 %v865
        %v1632 = vunpack.c.l.b16 %v866
        %v1633 = vunpack.c.l.b16 %v867
        %v1634 = vunpack.c.l.b16 %v868
        %v1635 = vunpack.c.l.b16 %v869
        %v1636 = vunpack.c.l.b16 %v870
        %v1637 = vunpack.c.l.b16 %v871
        %v1638 = vunpack.c.l.b16 %v872
        %v1639 = vunpack.c.l.b16 %v873
        %v1640 = vpack.c.b16 %v1609, %v1608
        %v1641 = vpack.c.b16 %v1611, %v1610
        %v1642 = vpack.c.b16 %v1613, %v1612
        %v1643 = vpack.c.b16 %v1615, %v1614
        %v1644 = vpack.c.b16 %v1617, %v1616
        %v1645 = vpack.c.b16 %v1619, %v1618
        %v1646 = vpack.c.b16 %v1621, %v1620
        %v1647 = vpack.c.b16 %v1623, %v1622
        %v1648 = vpack.c.b16 %v1625, %v1624
        %v1649 = vpack.c.b16 %v1627, %v1626
        %v1650 = vpack.c.b16 %v1629, %v1628
        %v1651 = vpack.c.b16 %v1631, %v1630
        %v1652 = vpack.c.b16 %v1633, %v1632
        %v1653 = vpack.c.b16 %v1635, %v1634
        %v1654 = vpack.c.b16 %v1637, %v1636
        %v1655 = vpack.c.b16 %v1639, %v1638
        %v1664 = vunpack.c.l.b16 %v874
        %v1665 = vunpack.c.l.b16 %v875
        %v1666 = vunpack.c.l.b16 %v876
        %v1667 = vunpack.c.l.b16 %v877
        %v1668 = vunpack.c.l.b16 %v878
        %v1669 = vunpack.c.l.b16 %v879
        %v1670 = vunpack.c.l.b16 %v880
        %v1671 = vunpack.c.l.b16 %v881
        %v1672 = vpack.c.b16 %v1665, %v1664
        %v1673 = vpack.c.b16 %v1667, %v1666
        %v1674 = vpack.c.b16 %v1669, %v1668
        %v1675 = vpack.c.b16 %v1671, %v1670
        %v1681 = vsel %vm1366, %v1640, 0
        %v1684 = vsel %vm1366, %v1641, 0
        %v1687 = vsel %vm1366, %v1642, 0
        %v1690 = vsel %vm1366, %v1643, 0
        %v1693 = vsel %vm1366, %v1644, 0
        %v1696 = vsel %vm1366, %v1645, 0
        %v1699 = vsel %vm1366, %v1646, 0
        %v1702 = vsel %vm1366, %v1647, 0
        %v1705 = vsel %vm1366, %v1648, 0
        %v1708 = vsel %vm1366, %v1649, 0
        %v1711 = vsel %vm1366, %v1650, 0
        %v1714 = vsel %vm1366, %v1651, 0
        %v1717 = vsel %vm1366, %v1652, 0
        %v1720 = vsel %vm1366, %v1653, 0
        %v1723 = vsel %vm1366, %v1654, 0
        %v1726 = vsel %vm1366, %v1655, 0
        %1728 = vmatprep.subr.bf16.mxu0 0
        %1729 = vmatpush1.bf16.msra.mxu0 %v1672
        %1730 = vmatprep.subr.bf16.mxu0 0
        %1731 = vmatpush1.bf16.msra.mxu0 %v1673
        %1732 = vmatprep.subr.bf16.mxu0 0
        %1733 = vmatpush1.bf16.msra.mxu0 %v1674
        %1734 = vmatprep.subr.bf16.mxu0 0
        %1735 = vmatpush1.bf16.msra.mxu0 %v1675
        %1736 = vmatprep.subr.bf16.mxu0 0
        %1737 = vmatpush1.bf16.msra.mxu0 0
        %1738 = vmatprep.subr.bf16.mxu0 0
        %1739 = vmatpush1.bf16.msra.mxu0 0
        %1740 = vmatprep.subr.bf16.mxu0 0
        %1741 = vmatpush1.bf16.msra.mxu0 0
        %1742 = vmatprep.subr.bf16.mxu0 0
        %1743 = vmatpush1.bf16.msra.mxu0 0
        %1744 = vmatprep.subr.bf16.mxu0 0
        %1745 = vmatpush1.bf16.msra.mxu0 0
        %1746 = vmatprep.subr.bf16.mxu0 0
        %1747 = vmatpush1.bf16.msra.mxu0 0
        %1748 = vmatprep.subr.bf16.mxu0 0
        %1749 = vmatpush1.bf16.msra.mxu0 0
        %1750 = vmatprep.subr.bf16.mxu0 0
        %1751 = vmatpush1.bf16.msra.mxu0 0
        %1752 = vmatprep.subr.bf16.mxu0 0
        %1753 = vmatpush1.bf16.msra.mxu0 0
        %1754 = vmatprep.subr.bf16.mxu0 0
        %1755 = vmatpush1.bf16.msra.mxu0 0
        %1756 = vmatprep.subr.bf16.mxu0 0
        %1757 = vmatpush1.bf16.msra.mxu0 0
        %1758 = vmatprep.subr.bf16.mxu0 0
        %1759 = vmatpush1.bf16.msra.mxu0 0
        %1760 = vmatprep.mubr.bf16.mxu0 0
        %1761 = vmatmul.mubr.bf16.gmra.mrb[0].mxu0 %v1681
        %v1762 = vpop.f32.mrb[0].mxu0
        %v1763 = vadd.f32 %v1450, %v1762
        %v1764 = vpop.f32.mrb[0].mxu0
        %v1765 = vpop.f32.mrb[0].mxu0
        %v1766 = vadd.f32 %v1453, %v1765
        %v1767 = vpop.f32.mrb[0].mxu0
        %1768 = vmatprep.mubr.bf16.mxu0 0
        %1769 = vmatmul.mubr.bf16.gmra.mrb[0].mxu0 %v1684
        %v1770 = vpop.f32.mrb[0].mxu0
        %v1771 = vadd.f32 %v1458, %v1770
        %v1772 = vpop.f32.mrb[0].mxu0
        %v1773 = vpop.f32.mrb[0].mxu0
        %v1774 = vadd.f32 %v1461, %v1773
        %v1775 = vpop.f32.mrb[0].mxu0
        %1776 = vmatprep.mubr.bf16.mxu0 0
        %1777 = vmatmul.mubr.bf16.gmra.mrb[0].mxu0 %v1687
        %v1778 = vpop.f32.mrb[0].mxu0
        %v1779 = vadd.f32 %v1466, %v1778
        %v1780 = vpop.f32.mrb[0].mxu0
        %v1781 = vpop.f32.mrb[0].mxu0
        %v1782 = vadd.f32 %v1469, %v1781
        %v1783 = vpop.f32.mrb[0].mxu0
        %1784 = vmatprep.mubr.bf16.mxu0 0
        %1785 = vmatmul.mubr.bf16.gmra.mrb[0].mxu0 %v1690
        %v1786 = vpop.f32.mrb[0].mxu0
        %v1787 = vadd.f32 %v1474, %v1786
        %v1788 = vpop.f32.mrb[0].mxu0
        %v1789 = vpop.f32.mrb[0].mxu0
        %v1790 = vadd.f32 %v1477, %v1789
        %v1791 = vpop.f32.mrb[0].mxu0
        %1792 = vmatprep.mubr.bf16.mxu0 0
        %1793 = vmatmul.mubr.bf16.gmra.mrb[0].mxu0 %v1693
        %v1794 = vpop.f32.mrb[0].mxu0
        %v1795 = vadd.f32 %v1482, %v1794
        %v1796 = vpop.f32.mrb[0].mxu0
        %v1797 = vpop.f32.mrb[0].mxu0
        %v1798 = vadd.f32 %v1485, %v1797
        %v1799 = vpop.f32.mrb[0].mxu0
        %1800 = vmatprep.mubr.bf16.mxu0 0
        %1801 = vmatmul.mubr.bf16.gmra.mrb[0].mxu0 %v1696
        %v1802 = vpop.f32.mrb[0].mxu0
        %v1803 = vadd.f32 %v1490, %v1802
        %v1804 = vpop.f32.mrb[0].mxu0
        %v1805 = vpop.f32.mrb[0].mxu0
        %v1806 = vadd.f32 %v1493, %v1805
        %v1807 = vpop.f32.mrb[0].mxu0
        %1808 = vmatprep.mubr.bf16.mxu0 0
        %1809 = vmatmul.mubr.bf16.gmra.mrb[0].mxu0 %v1699
        %v1810 = vpop.f32.mrb[0].mxu0
        %v1811 = vadd.f32 %v1498, %v1810
        %v1812 = vpop.f32.mrb[0].mxu0
        %v1813 = vpop.f32.mrb[0].mxu0
        %v1814 = vadd.f32 %v1501, %v1813
        %v1815 = vpop.f32.mrb[0].mxu0
        %1816 = vmatprep.mubr.bf16.mxu0 0
        %1817 = vmatmul.mubr.bf16.gmra.mrb[0].mxu0 %v1702
        %v1818 = vpop.f32.mrb[0].mxu0
        %v1819 = vadd.f32 %v1506, %v1818
        %v1820 = vpop.f32.mrb[0].mxu0
        %v1821 = vpop.f32.mrb[0].mxu0
        %v1822 = vadd.f32 %v1509, %v1821
        %v1823 = vpop.f32.mrb[0].mxu0
        %1824 = vmatprep.mubr.bf16.mxu0 0
        %1825 = vmatmul.mubr.bf16.gmra.mrb[0].mxu0 %v1705
        %v1826 = vpop.f32.mrb[0].mxu0
        %v1827 = vadd.f32 %v1514, %v1826
        %v1828 = vpop.f32.mrb[0].mxu0
        %v1829 = vpop.f32.mrb[0].mxu0
        %v1830 = vadd.f32 %v1517, %v1829
        %v1831 = vpop.f32.mrb[0].mxu0
        %1832 = vmatprep.mubr.bf16.mxu0 0
        %1833 = vmatmul.mubr.bf16.gmra.mrb[0].mxu0 %v1708
        %v1834 = vpop.f32.mrb[0].mxu0
        %v1835 = vadd.f32 %v1522, %v1834
        %v1836 = vpop.f32.mrb[0].mxu0
        %v1837 = vpop.f32.mrb[0].mxu0
        %v1838 = vadd.f32 %v1525, %v1837
        %v1839 = vpop.f32.mrb[0].mxu0
        %1840 = vmatprep.mubr.bf16.mxu0 0
        %1841 = vmatmul.mubr.bf16.gmra.mrb[0].mxu0 %v1711
        %v1842 = vpop.f32.mrb[0].mxu0
        %v1843 = vadd.f32 %v1530, %v1842
        %v1844 = vpop.f32.mrb[0].mxu0
        %v1845 = vpop.f32.mrb[0].mxu0
        %v1846 = vadd.f32 %v1533, %v1845
        %v1847 = vpop.f32.mrb[0].mxu0
        %1848 = vmatprep.mubr.bf16.mxu0 0
        %1849 = vmatmul.mubr.bf16.gmra.mrb[0].mxu0 %v1714
        %v1850 = vpop.f32.mrb[0].mxu0
        %v1851 = vadd.f32 %v1538, %v1850
        %v1852 = vpop.f32.mrb[0].mxu0
        %v1853 = vpop.f32.mrb[0].mxu0
        %v1854 = vadd.f32 %v1541, %v1853
        %v1855 = vpop.f32.mrb[0].mxu0
        %1856 = vmatprep.mubr.bf16.mxu0 0
        %1857 = vmatmul.mubr.bf16.gmra.mrb[0].mxu0 %v1717
        %v1858 = vpop.f32.mrb[0].mxu0
        %v1859 = vadd.f32 %v1546, %v1858
        %v1860 = vpop.f32.mrb[0].mxu0
        %v1861 = vpop.f32.mrb[0].mxu0
        %v1862 = vadd.f32 %v1549, %v1861
        %v1863 = vpop.f32.mrb[0].mxu0
        %1864 = vmatprep.mubr.bf16.mxu0 0
        %1865 = vmatmul.mubr.bf16.gmra.mrb[0].mxu0 %v1720
        %v1866 = vpop.f32.mrb[0].mxu0
        %v1867 = vadd.f32 %v1554, %v1866
        %v1868 = vpop.f32.mrb[0].mxu0
        %v1869 = vpop.f32.mrb[0].mxu0
        %v1870 = vadd.f32 %v1557, %v1869
        %v1871 = vpop.f32.mrb[0].mxu0
        %1872 = vmatprep.mubr.bf16.mxu0 0
        %1873 = vmatmul.mubr.bf16.gmra.mrb[0].mxu0 %v1723
        %v1874 = vpop.f32.mrb[0].mxu0
        %v1875 = vadd.f32 %v1562, %v1874
        %v1876 = vpop.f32.mrb[0].mxu0
        %v1877 = vpop.f32.mrb[0].mxu0
        %v1878 = vadd.f32 %v1565, %v1877
        %v1879 = vpop.f32.mrb[0].mxu0
        %1880 = vmatprep.mubr.bf16.mxu0 0
        %1881 = vmatmul.mubr.bf16.gmra.mrb[0].mxu0 %v1726
        %v1882 = vpop.f32.mrb[0].mxu0
        %v1883 = vadd.f32 %v1570, %v1882
        %v1884 = vpop.f32.mrb[0].mxu0
        %v1885 = vpop.f32.mrb[0].mxu0
        %v1886 = vadd.f32 %v1573, %v1885
        %v1887 = vpop.f32.mrb[0].mxu0
        %1888 = vdwg.mxu0
        %v1889 = vld [vmem:[#allocation2] sm:$0xe]
        %v1890 = vld [vmem:[#allocation2 + $0xc] sm:$0xe]
        %v1891 = vld [vmem:[#allocation2 + $0x18] sm:$0xe]
        %v1892 = vld [vmem:[#allocation2 + $0x24] sm:$0xe]
        %v1893 = vld [vmem:[#allocation2 + $0x30] sm:$0xe]
        %v1894 = vld [vmem:[#allocation2 + $0x3c] sm:$0xe]
        %v1895 = vld [vmem:[#allocation2 + $0x48] sm:$0xe]
        %v1896 = vld [vmem:[#allocation2 + $0x54] sm:$0xe]
        %v1897 = vld [vmem:[#allocation2 + $0x60] sm:$0xe]
        %v1898 = vld [vmem:[#allocation2 + $0x6c] sm:$0xe]
        %v1899 = vld [vmem:[#allocation2 + $0x78] sm:$0xe]
        %v1900 = vld [vmem:[#allocation2 + $0x84] sm:$0xe]
        %v1901 = vld [vmem:[#allocation2 + $0x90] sm:$0xe]
        %v1902 = vld [vmem:[#allocation2 + $0x9c] sm:$0xe]
        %v1903 = vld [vmem:[#allocation2 + $0xa8] sm:$0xe]
        %v1904 = vld [vmem:[#allocation2 + $0xb4] sm:$0xe]
        %vm1937 = vcmask 1042432
        %vm1938 = vcmask 1046532
        %vm1939 = vmor %vm1937, %vm1938
        %v1940 = vrot.slane %v1889, 5
        %v1941 = vrot.slane %v1940, 4
        %v1942 = vrot.slane %v843, 5
        %v1943 = vsel %vm1939, %v1941, %v1942
        %v1944 = vrot.slane %v1942, 4
        %v1945 = vrot.slane %v882, 5
        %v1946 = vsel %vm1939, %v1944, %v1945
        %v1947 = vrot.slane %v1890, 5
        %v1948 = vrot.slane %v1947, 4
        %v1949 = vrot.slane %v845, 5
        %v1950 = vsel %vm1939, %v1948, %v1949
        %v1951 = vrot.slane %v1949, 4
        %v1952 = vrot.slane %v883, 5
        %v1953 = vsel %vm1939, %v1951, %v1952
        %v1954 = vrot.slane %v1891, 5
        %v1955 = vrot.slane %v1954, 4
        %v1956 = vrot.slane %v847, 5
        %v1957 = vsel %vm1939, %v1955, %v1956
        %v1958 = vrot.slane %v1956, 4
        %v1959 = vrot.slane %v884, 5
        %v1960 = vsel %vm1939, %v1958, %v1959
        %v1961 = vrot.slane %v1892, 5
        %v1962 = vrot.slane %v1961, 4
        %v1963 = vrot.slane %v849, 5
        %v1964 = vsel %vm1939, %v1962, %v1963
        %v1965 = vrot.slane %v1963, 4
        %v1966 = vrot.slane %v885, 5
        %v1967 = vsel %vm1939, %v1965, %v1966
        %v1968 = vrot.slane %v1893, 5
        %v1969 = vrot.slane %v1968, 4
        %v1970 = vrot.slane %v851, 5
        %v1971 = vsel %vm1939, %v1969, %v1970
        %v1972 = vrot.slane %v1970, 4
        %v1973 = vrot.slane %v886, 5
        %v1974 = vsel %vm1939, %v1972, %v1973
        %v1975 = vrot.slane %v1894, 5
        %v1976 = vrot.slane %v1975, 4
        %v1977 = vrot.slane %v853, 5
        %v1978 = vsel %vm1939, %v1976, %v1977
        %v1979 = vrot.slane %v1977, 4
        %v1980 = vrot.slane %v887, 5
        %v1981 = vsel %vm1939, %v1979, %v1980
        %v1982 = vrot.slane %v1895, 5
        %v1983 = vrot.slane %v1982, 4
        %v1984 = vrot.slane %v855, 5
        %v1985 = vsel %vm1939, %v1983, %v1984
        %v1986 = vrot.slane %v1984, 4
        %v1987 = vrot.slane %v888, 5
        %v1988 = vsel %vm1939, %v1986, %v1987
        %v1989 = vrot.slane %v1896, 5
        %v1990 = vrot.slane %v1989, 4
        %v1991 = vrot.slane %v857, 5
        %v1992 = vsel %vm1939, %v1990, %v1991
        %v1993 = vrot.slane %v1991, 4
        %v1994 = vrot.slane %v889, 5
        %v1995 = vsel %vm1939, %v1993, %v1994
        %v1996 = vrot.slane %v1897, 5
        %v1997 = vrot.slane %v1996, 4
        %v1998 = vrot.slane %v859, 5
        %v1999 = vsel %vm1939, %v1997, %v1998
        %v2000 = vrot.slane %v1998, 4
        %v2001 = vrot.slane %v890, 5
        %v2002 = vsel %vm1939, %v2000, %v2001
        %v2003 = vrot.slane %v1898, 5
        %v2004 = vrot.slane %v2003, 4
        %v2005 = vrot.slane %v861, 5
        %v2006 = vsel %vm1939, %v2004, %v2005
        %v2007 = vrot.slane %v2005, 4
        %v2008 = vrot.slane %v891, 5
        %v2009 = vsel %vm1939, %v2007, %v2008
        %v2010 = vrot.slane %v1899, 5
        %v2011 = vrot.slane %v2010, 4
        %v2012 = vrot.slane %v863, 5
        %v2013 = vsel %vm1939, %v2011, %v2012
        %v2014 = vrot.slane %v2012, 4
        %v2015 = vrot.slane %v892, 5
        %v2016 = vsel %vm1939, %v2014, %v2015
        %v2017 = vrot.slane %v1900, 5
        %v2018 = vrot.slane %v2017, 4
        %v2019 = vrot.slane %v865, 5
        %v2020 = vsel %vm1939, %v2018, %v2019
        %v2021 = vrot.slane %v2019, 4
        %v2022 = vrot.slane %v893, 5
        %v2023 = vsel %vm1939, %v2021, %v2022
        %v2024 = vrot.slane %v1901, 5
        %v2025 = vrot.slane %v2024, 4
        %v2026 = vrot.slane %v867, 5
        %v2027 = vsel %vm1939, %v2025, %v2026
        %v2028 = vrot.slane %v2026, 4
        %v2029 = vrot.slane %v894, 5
        %v2030 = vsel %vm1939, %v2028, %v2029
        %v2031 = vrot.slane %v1902, 5
        %v2032 = vrot.slane %v2031, 4
        %v2033 = vrot.slane %v869, 5
        %v2034 = vsel %vm1939, %v2032, %v2033
        %v2035 = vrot.slane %v2033, 4
        %v2036 = vrot.slane %v895, 5
        %v2037 = vsel %vm1939, %v2035, %v2036
        %v2038 = vrot.slane %v1903, 5
        %v2039 = vrot.slane %v2038, 4
        %v2040 = vrot.slane %v871, 5
        %v2041 = vsel %vm1939, %v2039, %v2040
        %v2042 = vrot.slane %v2040, 4
        %v2043 = vrot.slane %v896, 5
        %v2044 = vsel %vm1939, %v2042, %v2043
        %v2045 = vrot.slane %v1904, 5
        %v2046 = vrot.slane %v2045, 4
        %v2047 = vrot.slane %v873, 5
        %v2048 = vsel %vm1939, %v2046, %v2047
        %v2049 = vrot.slane %v2047, 4
        %v2050 = vrot.slane %v897, 5
        %v2051 = vsel %vm1939, %v2049, %v2050
        %s2052 = scalar_lea.vmem %s1, 64
        %v2053 = vld [vmem:[%s2052] sm:$0xf]
        %v2054 = vld [vmem:[%s2052 + $0x4] sm:$0xf]
        %v2055 = vld [vmem:[%s2052 + $0x8] sm:$0xf]
        %v2056 = vld [vmem:[%s2052 + $0xc] sm:$0xf]
        %v2057 = vld [vmem:[%s2052 + $0x10] sm:$0xf]
        %v2058 = vld [vmem:[%s2052 + $0x14] sm:$0xf]
        %v2059 = vld [vmem:[%s2052 + $0x18] sm:$0xf]
        %v2060 = vld [vmem:[%s2052 + $0x1c] sm:$0xf]
        %v2061 = vunpack.c.l.b16 %v1943
        %v2062 = vunpack.c.l.b16 %v1946
        %v2063 = vunpack.c.l.b16 %v1950
        %v2064 = vunpack.c.l.b16 %v1953
        %v2065 = vunpack.c.l.b16 %v1957
        %v2066 = vunpack.c.l.b16 %v1960
        %v2067 = vunpack.c.l.b16 %v1964
        %v2068 = vunpack.c.l.b16 %v1967
        %v2069 = vunpack.c.l.b16 %v1971
        %v2070 = vunpack.c.l.b16 %v1974
        %v2071 = vunpack.c.l.b16 %v1978
        %v2072 = vunpack.c.l.b16 %v1981
        %v2073 = vunpack.c.l.b16 %v1985
        %v2074 = vunpack.c.l.b16 %v1988
        %v2075 = vunpack.c.l.b16 %v1992
        %v2076 = vunpack.c.l.b16 %v1995
        %v2077 = vunpack.c.l.b16 %v1999
        %v2078 = vunpack.c.l.b16 %v2002
        %v2079 = vunpack.c.l.b16 %v2006
        %v2080 = vunpack.c.l.b16 %v2009
        %v2081 = vunpack.c.l.b16 %v2013
        %v2082 = vunpack.c.l.b16 %v2016
        %v2083 = vunpack.c.l.b16 %v2020
        %v2084 = vunpack.c.l.b16 %v2023
        %v2085 = vunpack.c.l.b16 %v2027
        %v2086 = vunpack.c.l.b16 %v2030
        %v2087 = vunpack.c.l.b16 %v2034
        %v2088 = vunpack.c.l.b16 %v2037
        %v2089 = vunpack.c.l.b16 %v2041
        %v2090 = vunpack.c.l.b16 %v2044
        %v2091 = vunpack.c.l.b16 %v2048
        %v2092 = vunpack.c.l.b16 %v2051
        %v2093 = vpack.c.b16 %v2062, %v2061
        %v2094 = vpack.c.b16 %v2064, %v2063
        %v2095 = vpack.c.b16 %v2066, %v2065
        %v2096 = vpack.c.b16 %v2068, %v2067
        %v2097 = vpack.c.b16 %v2070, %v2069
        %v2098 = vpack.c.b16 %v2072, %v2071
        %v2099 = vpack.c.b16 %v2074, %v2073
        %v2100 = vpack.c.b16 %v2076, %v2075
        %v2101 = vpack.c.b16 %v2078, %v2077
        %v2102 = vpack.c.b16 %v2080, %v2079
        %v2103 = vpack.c.b16 %v2082, %v2081
        %v2104 = vpack.c.b16 %v2084, %v2083
        %v2105 = vpack.c.b16 %v2086, %v2085
        %v2106 = vpack.c.b16 %v2088, %v2087
        %v2107 = vpack.c.b16 %v2090, %v2089
        %v2108 = vpack.c.b16 %v2092, %v2091
        %v2117 = vunpack.c.l.b16 %v2053
        %v2118 = vunpack.c.l.b16 %v2054
        %v2119 = vunpack.c.l.b16 %v2055
        %v2120 = vunpack.c.l.b16 %v2056
        %v2121 = vunpack.c.l.b16 %v2057
        %v2122 = vunpack.c.l.b16 %v2058
        %v2123 = vunpack.c.l.b16 %v2059
        %v2124 = vunpack.c.l.b16 %v2060
        %v2125 = vpack.c.b16 %v2118, %v2117
        %v2126 = vpack.c.b16 %v2120, %v2119
        %v2127 = vpack.c.b16 %v2122, %v2121
        %v2128 = vpack.c.b16 %v2124, %v2123
        %v2134 = vsel %vm1366, %v2093, 0
        %v2137 = vsel %vm1366, %v2094, 0
        %v2140 = vsel %vm1366, %v2095, 0
        %v2143 = vsel %vm1366, %v2096, 0
        %v2146 = vsel %vm1366, %v2097, 0
        %v2149 = vsel %vm1366, %v2098, 0
        %v2152 = vsel %vm1366, %v2099, 0
        %v2155 = vsel %vm1366, %v2100, 0
        %v2158 = vsel %vm1366, %v2101, 0
        %v2161 = vsel %vm1366, %v2102, 0
        %v2164 = vsel %vm1366, %v2103, 0
        %v2167 = vsel %vm1366, %v2104, 0
        %v2170 = vsel %vm1366, %v2105, 0
        %v2173 = vsel %vm1366, %v2106, 0
        %v2176 = vsel %vm1366, %v2107, 0
        %v2179 = vsel %vm1366, %v2108, 0
        %2181 = vmatprep.subr.bf16.mxu0 0
        %2182 = vmatpush1.bf16.msra.mxu0 %v2125
        %2183 = vmatprep.subr.bf16.mxu0 0
        %2184 = vmatpush1.bf16.msra.mxu0 %v2126
        %2185 = vmatprep.subr.bf16.mxu0 0
        %2186 = vmatpush1.bf16.msra.mxu0 %v2127
        %2187 = vmatprep.subr.bf16.mxu0 0
        %2188 = vmatpush1.bf16.msra.mxu0 %v2128
        %2189 = vmatprep.subr.bf16.mxu0 0
        %2190 = vmatpush1.bf16.msra.mxu0 0
        %2191 = vmatprep.subr.bf16.mxu0 0
        %2192 = vmatpush1.bf16.msra.mxu0 0
        %2193 = vmatprep.subr.bf16.mxu0 0
        %2194 = vmatpush1.bf16.msra.mxu0 0
        %2195 = vmatprep.subr.bf16.mxu0 0
        %2196 = vmatpush1.bf16.msra.mxu0 0
        %2197 = vmatprep.subr.bf16.mxu0 0
        %2198 = vmatpush1.bf16.msra.mxu0 0
        %2199 = vmatprep.subr.bf16.mxu0 0
        %2200 = vmatpush1.bf16.msra.mxu0 0
        %2201 = vmatprep.subr.bf16.mxu0 0
        %2202 = vmatpush1.bf16.msra.mxu0 0
        %2203 = vmatprep.subr.bf16.mxu0 0
        %2204 = vmatpush1.bf16.msra.mxu0 0
        %2205 = vmatprep.subr.bf16.mxu0 0
        %2206 = vmatpush1.bf16.msra.mxu0 0
        %2207 = vmatprep.subr.bf16.mxu0 0
        %2208 = vmatpush1.bf16.msra.mxu0 0
        %2209 = vmatprep.subr.bf16.mxu0 0
        %2210 = vmatpush1.bf16.msra.mxu0 0
        %2211 = vmatprep.subr.bf16.mxu0 0
        %2212 = vmatpush1.bf16.msra.mxu0 0
        %2213 = vmatprep.mubr.bf16.mxu0 0
        %2214 = vmatmul.mubr.bf16.gmra.mrb[0].mxu0 %v2134
        %v2215 = vpop.f32.mrb[0].mxu0
        %v2216 = vadd.f32 0.0, %v2215
        %v2217 = vpop.f32.mrb[0].mxu0
        %v2218 = vpop.f32.mrb[0].mxu0
        %v2219 = vadd.f32 0.0, %v2218
        %v2220 = vpop.f32.mrb[0].mxu0
        %2221 = vmatprep.mubr.bf16.mxu0 0
        %2222 = vmatmul.mubr.bf16.gmra.mrb[0].mxu0 %v2137
        %v2223 = vpop.f32.mrb[0].mxu0
        %v2224 = vadd.f32 0.0, %v2223
        %v2225 = vpop.f32.mrb[0].mxu0
        %v2226 = vpop.f32.mrb[0].mxu0
        %v2227 = vadd.f32 0.0, %v2226
        %v2228 = vpop.f32.mrb[0].mxu0
        %2229 = vmatprep.mubr.bf16.mxu0 0
        %2230 = vmatmul.mubr.bf16.gmra.mrb[0].mxu0 %v2140
        %v2231 = vpop.f32.mrb[0].mxu0
        %v2232 = vadd.f32 0.0, %v2231
        %v2233 = vpop.f32.mrb[0].mxu0
        %v2234 = vpop.f32.mrb[0].mxu0
        %v2235 = vadd.f32 0.0, %v2234
        %v2236 = vpop.f32.mrb[0].mxu0
        %2237 = vmatprep.mubr.bf16.mxu0 0
        %2238 = vmatmul.mubr.bf16.gmra.mrb[0].mxu0 %v2143
        %v2239 = vpop.f32.mrb[0].mxu0
        %v2240 = vadd.f32 0.0, %v2239
        %v2241 = vpop.f32.mrb[0].mxu0
        %v2242 = vpop.f32.mrb[0].mxu0
        %v2243 = vadd.f32 0.0, %v2242
        %v2244 = vpop.f32.mrb[0].mxu0
        %2245 = vmatprep.mubr.bf16.mxu0 0
        %2246 = vmatmul.mubr.bf16.gmra.mrb[0].mxu0 %v2146
        %v2247 = vpop.f32.mrb[0].mxu0
        %v2248 = vadd.f32 0.0, %v2247
        %v2249 = vpop.f32.mrb[0].mxu0
        %v2250 = vpop.f32.mrb[0].mxu0
        %v2251 = vadd.f32 0.0, %v2250
        %v2252 = vpop.f32.mrb[0].mxu0
        %2253 = vmatprep.mubr.bf16.mxu0 0
        %2254 = vmatmul.mubr.bf16.gmra.mrb[0].mxu0 %v2149
        %v2255 = vpop.f32.mrb[0].mxu0
        %v2256 = vadd.f32 0.0, %v2255
        %v2257 = vpop.f32.mrb[0].mxu0
        %v2258 = vpop.f32.mrb[0].mxu0
        %v2259 = vadd.f32 0.0, %v2258
        %v2260 = vpop.f32.mrb[0].mxu0
        %2261 = vmatprep.mubr.bf16.mxu0 0
        %2262 = vmatmul.mubr.bf16.gmra.mrb[0].mxu0 %v2152
        %v2263 = vpop.f32.mrb[0].mxu0
        %v2264 = vadd.f32 0.0, %v2263
        %v2265 = vpop.f32.mrb[0].mxu0
        %v2266 = vpop.f32.mrb[0].mxu0
        %v2267 = vadd.f32 0.0, %v2266
        %v2268 = vpop.f32.mrb[0].mxu0
        %2269 = vmatprep.mubr.bf16.mxu0 0
        %2270 = vmatmul.mubr.bf16.gmra.mrb[0].mxu0 %v2155
        %v2271 = vpop.f32.mrb[0].mxu0
        %v2272 = vadd.f32 0.0, %v2271
        %v2273 = vpop.f32.mrb[0].mxu0
        %v2274 = vpop.f32.mrb[0].mxu0
        %v2275 = vadd.f32 0.0, %v2274
        %v2276 = vpop.f32.mrb[0].mxu0
        %2277 = vmatprep.mubr.bf16.mxu0 0
        %2278 = vmatmul.mubr.bf16.gmra.mrb[0].mxu0 %v2158
        %v2279 = vpop.f32.mrb[0].mxu0
        %v2280 = vadd.f32 0.0, %v2279
        %v2281 = vpop.f32.mrb[0].mxu0
        %v2282 = vpop.f32.mrb[0].mxu0
        %v2283 = vadd.f32 0.0, %v2282
        %v2284 = vpop.f32.mrb[0].mxu0
        %2285 = vmatprep.mubr.bf16.mxu0 0
        %2286 = vmatmul.mubr.bf16.gmra.mrb[0].mxu0 %v2161
        %v2287 = vpop.f32.mrb[0].mxu0
        %v2288 = vadd.f32 0.0, %v2287
        %v2289 = vpop.f32.mrb[0].mxu0
        %v2290 = vpop.f32.mrb[0].mxu0
        %v2291 = vadd.f32 0.0, %v2290
        %v2292 = vpop.f32.mrb[0].mxu0
        %2293 = vmatprep.mubr.bf16.mxu0 0
        %2294 = vmatmul.mubr.bf16.gmra.mrb[0].mxu0 %v2164
        %v2295 = vpop.f32.mrb[0].mxu0
        %v2296 = vadd.f32 0.0, %v2295
        %v2297 = vpop.f32.mrb[0].mxu0
        %v2298 = vpop.f32.mrb[0].mxu0
        %v2299 = vadd.f32 0.0, %v2298
        %v2300 = vpop.f32.mrb[0].mxu0
        %2301 = vmatprep.mubr.bf16.mxu0 0
        %2302 = vmatmul.mubr.bf16.gmra.mrb[0].mxu0 %v2167
        %v2303 = vpop.f32.mrb[0].mxu0
        %v2304 = vadd.f32 0.0, %v2303
        %v2305 = vpop.f32.mrb[0].mxu0
        %v2306 = vpop.f32.mrb[0].mxu0
        %v2307 = vadd.f32 0.0, %v2306
        %v2308 = vpop.f32.mrb[0].mxu0
        %2309 = vmatprep.mubr.bf16.mxu0 0
        %2310 = vmatmul.mubr.bf16.gmra.mrb[0].mxu0 %v2170
        %v2311 = vpop.f32.mrb[0].mxu0
        %v2312 = vadd.f32 0.0, %v2311
        %v2313 = vpop.f32.mrb[0].mxu0
        %v2314 = vpop.f32.mrb[0].mxu0
        %v2315 = vadd.f32 0.0, %v2314
        %v2316 = vpop.f32.mrb[0].mxu0
        %2317 = vmatprep.mubr.bf16.mxu0 0
        %2318 = vmatmul.mubr.bf16.gmra.mrb[0].mxu0 %v2173
        %v2319 = vpop.f32.mrb[0].mxu0
        %v2320 = vadd.f32 0.0, %v2319
        %v2321 = vpop.f32.mrb[0].mxu0
        %v2322 = vpop.f32.mrb[0].mxu0
        %v2323 = vadd.f32 0.0, %v2322
        %v2324 = vpop.f32.mrb[0].mxu0
        %2325 = vmatprep.mubr.bf16.mxu0 0
        %2326 = vmatmul.mubr.bf16.gmra.mrb[0].mxu0 %v2176
        %v2327 = vpop.f32.mrb[0].mxu0
        %v2328 = vadd.f32 0.0, %v2327
        %v2329 = vpop.f32.mrb[0].mxu0
        %v2330 = vpop.f32.mrb[0].mxu0
        %v2331 = vadd.f32 0.0, %v2330
        %v2332 = vpop.f32.mrb[0].mxu0
        %2333 = vmatprep.mubr.bf16.mxu0 0
        %2334 = vmatmul.mubr.bf16.gmra.mrb[0].mxu0 %v2179
        %v2335 = vpop.f32.mrb[0].mxu0
        %v2336 = vadd.f32 0.0, %v2335
        %v2337 = vpop.f32.mrb[0].mxu0
        %v2338 = vpop.f32.mrb[0].mxu0
        %v2339 = vadd.f32 0.0, %v2338
        %v2340 = vpop.f32.mrb[0].mxu0
        %2341 = vdwg.mxu0
        %v2342 = vadd.f32 %v1763, %v2216
        %v2343 = vadd.f32 %v1766, %v2219
        %v2344 = vadd.f32 %v1771, %v2224
        %v2345 = vadd.f32 %v1774, %v2227
        %v2346 = vadd.f32 %v1779, %v2232
        %v2347 = vadd.f32 %v1782, %v2235
        %v2348 = vadd.f32 %v1787, %v2240
        %v2349 = vadd.f32 %v1790, %v2243
        %v2350 = vadd.f32 %v1795, %v2248
        %v2351 = vadd.f32 %v1798, %v2251
        %v2352 = vadd.f32 %v1803, %v2256
        %v2353 = vadd.f32 %v1806, %v2259
        %v2354 = vadd.f32 %v1811, %v2264
        %v2355 = vadd.f32 %v1814, %v2267
        %v2356 = vadd.f32 %v1819, %v2272
        %v2357 = vadd.f32 %v1822, %v2275
        %v2358 = vadd.f32 %v1827, %v2280
        %v2359 = vadd.f32 %v1830, %v2283
        %v2360 = vadd.f32 %v1835, %v2288
        %v2361 = vadd.f32 %v1838, %v2291
        %v2362 = vadd.f32 %v1843, %v2296
        %v2363 = vadd.f32 %v1846, %v2299
        %v2364 = vadd.f32 %v1851, %v2304
        %v2365 = vadd.f32 %v1854, %v2307
        %v2366 = vadd.f32 %v1859, %v2312
        %v2367 = vadd.f32 %v1862, %v2315
        %v2368 = vadd.f32 %v1867, %v2320
        %v2369 = vadd.f32 %v1870, %v2323
        %v2370 = vadd.f32 %v1875, %v2328
        %v2371 = vadd.f32 %v1878, %v2331
        %v2372 = vadd.f32 %v1883, %v2336
        %v2373 = vadd.f32 %v1886, %v2339
        %v2374 = vld [vmem:[%s724] sm:$0xf]
        %v2375 = vld [vmem:[%s724 + $0x4] sm:$0xf]
        %v2376 = vld [vmem:[%s724 + $0xc] sm:$0xf]
        %v2377 = vld [vmem:[%s724 + $0x10] sm:$0xf]
        %v2378 = vld [vmem:[%s724 + $0x18] sm:$0xf]
        %v2379 = vld [vmem:[%s724 + $0x1c] sm:$0xf]
        %v2380 = vld [vmem:[%s724 + $0x24] sm:$0xf]
        %v2381 = vld [vmem:[%s724 + $0x28] sm:$0xf]
        %v2382 = vld [vmem:[%s724 + $0x30] sm:$0xf]
        %v2383 = vld [vmem:[%s724 + $0x34] sm:$0xf]
        %v2384 = vld [vmem:[%s724 + $0x3c] sm:$0xf]
        %v2385 = vld [vmem:[%s724 + $0x40] sm:$0xf]
        %v2386 = vld [vmem:[%s724 + $0x48] sm:$0xf]
        %v2387 = vld [vmem:[%s724 + $0x4c] sm:$0xf]
        %v2388 = vld [vmem:[%s724 + $0x54] sm:$0xf]
        %v2389 = vld [vmem:[%s724 + $0x58] sm:$0xf]
        %v2390 = vld [vmem:[%s724 + $0x60] sm:$0xf]
        %v2391 = vld [vmem:[%s724 + $0x64] sm:$0xf]
        %v2392 = vld [vmem:[%s724 + $0x6c] sm:$0xf]
        %v2393 = vld [vmem:[%s724 + $0x70] sm:$0xf]
        %v2394 = vld [vmem:[%s724 + $0x78] sm:$0xf]
        %v2395 = vld [vmem:[%s724 + $0x7c] sm:$0xf]
        %v2396 = vld [vmem:[%s724 + $0x84] sm:$0xf]
        %v2397 = vld [vmem:[%s724 + $0x88] sm:$0xf]
        %v2398 = vld [vmem:[%s724 + $0x90] sm:$0xf]
        %v2399 = vld [vmem:[%s724 + $0x94] sm:$0xf]
        %v2400 = vld [vmem:[%s724 + $0x9c] sm:$0xf]
        %v2401 = vld [vmem:[%s724 + $0xa0] sm:$0xf]
        %v2402 = vld [vmem:[%s724 + $0xa8] sm:$0xf]
        %v2403 = vld [vmem:[%s724 + $0xac] sm:$0xf]
        %v2404 = vld [vmem:[%s724 + $0xb4] sm:$0xf]
        %v2405 = vld [vmem:[%s724 + $0xb8] sm:$0xf]
        %s2406 = scalar_lea.vmem %s1, 96
        %v2407 = vld [vmem:[%s2406] sm:$0xf]
        %v2408 = vld [vmem:[%s2406 + $0x4] sm:$0xf]
        %v2409 = vld [vmem:[%s2406 + $0x8] sm:$0xf]
        %v2410 = vld [vmem:[%s2406 + $0xc] sm:$0xf]
        %v2411 = vld [vmem:[%s2406 + $0x10] sm:$0xf]
        %v2412 = vld [vmem:[%s2406 + $0x14] sm:$0xf]
        %v2413 = vld [vmem:[%s2406 + $0x18] sm:$0xf]
        %v2414 = vld [vmem:[%s2406 + $0x1c] sm:$0xf]
        %v2447 = vunpack.c.l.b16 %v2374
        %v2448 = vunpack.c.l.b16 %v2375
        %v2449 = vunpack.c.l.b16 %v2376
        %v2450 = vunpack.c.l.b16 %v2377
        %v2451 = vunpack.c.l.b16 %v2378
        %v2452 = vunpack.c.l.b16 %v2379
        %v2453 = vunpack.c.l.b16 %v2380
        %v2454 = vunpack.c.l.b16 %v2381
        %v2455 = vunpack.c.l.b16 %v2382
        %v2456 = vunpack.c.l.b16 %v2383
        %v2457 = vunpack.c.l.b16 %v2384
        %v2458 = vunpack.c.l.b16 %v2385
        %v2459 = vunpack.c.l.b16 %v2386
        %v2460 = vunpack.c.l.b16 %v2387
        %v2461 = vunpack.c.l.b16 %v2388
        %v2462 = vunpack.c.l.b16 %v2389
        %v2463 = vunpack.c.l.b16 %v2390
        %v2464 = vunpack.c.l.b16 %v2391
        %v2465 = vunpack.c.l.b16 %v2392
        %v2466 = vunpack.c.l.b16 %v2393
        %v2467 = vunpack.c.l.b16 %v2394
        %v2468 = vunpack.c.l.b16 %v2395
        %v2469 = vunpack.c.l.b16 %v2396
        %v2470 = vunpack.c.l.b16 %v2397
        %v2471 = vunpack.c.l.b16 %v2398
        %v2472 = vunpack.c.l.b16 %v2399
        %v2473 = vunpack.c.l.b16 %v2400
        %v2474 = vunpack.c.l.b16 %v2401
        %v2475 = vunpack.c.l.b16 %v2402
        %v2476 = vunpack.c.l.b16 %v2403
        %v2477 = vunpack.c.l.b16 %v2404
        %v2478 = vunpack.c.l.b16 %v2405
        %v2479 = vpack.c.b16 %v2448, %v2447
        %v2480 = vpack.c.b16 %v2450, %v2449
        %v2481 = vpack.c.b16 %v2452, %v2451
        %v2482 = vpack.c.b16 %v2454, %v2453
        %v2483 = vpack.c.b16 %v2456, %v2455
        %v2484 = vpack.c.b16 %v2458, %v2457
        %v2485 = vpack.c.b16 %v2460, %v2459
        %v2486 = vpack.c.b16 %v2462, %v2461
        %v2487 = vpack.c.b16 %v2464, %v2463
        %v2488 = vpack.c.b16 %v2466, %v2465
        %v2489 = vpack.c.b16 %v2468, %v2467
        %v2490 = vpack.c.b16 %v2470, %v2469
        %v2491 = vpack.c.b16 %v2472, %v2471
        %v2492 = vpack.c.b16 %v2474, %v2473
        %v2493 = vpack.c.b16 %v2476, %v2475
        %v2494 = vpack.c.b16 %v2478, %v2477
        %v2503 = vunpack.c.l.b16 %v2407
        %v2504 = vunpack.c.l.b16 %v2408
        %v2505 = vunpack.c.l.b16 %v2409
        %v2506 = vunpack.c.l.b16 %v2410
        %v2507 = vunpack.c.l.b16 %v2411
        %v2508 = vunpack.c.l.b16 %v2412
        %v2509 = vunpack.c.l.b16 %v2413
        %v2510 = vunpack.c.l.b16 %v2414
        %v2511 = vpack.c.b16 %v2504, %v2503
        %v2512 = vpack.c.b16 %v2506, %v2505
        %v2513 = vpack.c.b16 %v2508, %v2507
        %v2514 = vpack.c.b16 %v2510, %v2509
        %v2520 = vsel %vm1366, %v2479, 0
        %v2523 = vsel %vm1366, %v2480, 0
        %v2526 = vsel %vm1366, %v2481, 0
        %v2529 = vsel %vm1366, %v2482, 0
        %v2532 = vsel %vm1366, %v2483, 0
        %v2535 = vsel %vm1366, %v2484, 0
        %v2538 = vsel %vm1366, %v2485, 0
        %v2541 = vsel %vm1366, %v2486, 0
        %v2544 = vsel %vm1366, %v2487, 0
        %v2547 = vsel %vm1366, %v2488, 0
        %v2550 = vsel %vm1366, %v2489, 0
        %v2553 = vsel %vm1366, %v2490, 0
        %v2556 = vsel %vm1366, %v2491, 0
        %v2559 = vsel %vm1366, %v2492, 0
        %v2562 = vsel %vm1366, %v2493, 0
        %v2565 = vsel %vm1366, %v2494, 0
        %2567 = vmatprep.subr.bf16.mxu0 0
        %2568 = vmatpush1.bf16.msra.mxu0 %v2511
        %2569 = vmatprep.subr.bf16.mxu0 0
        %2570 = vmatpush1.bf16.msra.mxu0 %v2512
        %2571 = vmatprep.subr.bf16.mxu0 0
        %2572 = vmatpush1.bf16.msra.mxu0 %v2513
        %2573 = vmatprep.subr.bf16.mxu0 0
        %2574 = vmatpush1.bf16.msra.mxu0 %v2514
        %2575 = vmatprep.subr.bf16.mxu0 0
        %2576 = vmatpush1.bf16.msra.mxu0 0
        %2577 = vmatprep.subr.bf16.mxu0 0
        %2578 = vmatpush1.bf16.msra.mxu0 0
        %2579 = vmatprep.subr.bf16.mxu0 0
        %2580 = vmatpush1.bf16.msra.mxu0 0
        %2581 = vmatprep.subr.bf16.mxu0 0
        %2582 = vmatpush1.bf16.msra.mxu0 0
        %2583 = vmatprep.subr.bf16.mxu0 0
        %2584 = vmatpush1.bf16.msra.mxu0 0
        %2585 = vmatprep.subr.bf16.mxu0 0
        %2586 = vmatpush1.bf16.msra.mxu0 0
        %2587 = vmatprep.subr.bf16.mxu0 0
        %2588 = vmatpush1.bf16.msra.mxu0 0
        %2589 = vmatprep.subr.bf16.mxu0 0
        %2590 = vmatpush1.bf16.msra.mxu0 0
        %2591 = vmatprep.subr.bf16.mxu0 0
        %2592 = vmatpush1.bf16.msra.mxu0 0
        %2593 = vmatprep.subr.bf16.mxu0 0
        %2594 = vmatpush1.bf16.msra.mxu0 0
        %2595 = vmatprep.subr.bf16.mxu0 0
        %2596 = vmatpush1.bf16.msra.mxu0 0
        %2597 = vmatprep.subr.bf16.mxu0 0
        %2598 = vmatpush1.bf16.msra.mxu0 0
        %2599 = vmatprep.mubr.bf16.mxu0 0
        %2600 = vmatmul.mubr.bf16.gmra.mrb[0].mxu0 %v2520
        %v2601 = vpop.f32.mrb[0].mxu0
        %v2602 = vadd.f32 0.0, %v2601
        %v2603 = vpop.f32.mrb[0].mxu0
        %v2604 = vpop.f32.mrb[0].mxu0
        %v2605 = vadd.f32 0.0, %v2604
        %v2606 = vpop.f32.mrb[0].mxu0
        %2607 = vmatprep.mubr.bf16.mxu0 0
        %2608 = vmatmul.mubr.bf16.gmra.mrb[0].mxu0 %v2523
        %v2609 = vpop.f32.mrb[0].mxu0
        %v2610 = vadd.f32 0.0, %v2609
        %v2611 = vpop.f32.mrb[0].mxu0
        %v2612 = vpop.f32.mrb[0].mxu0
        %v2613 = vadd.f32 0.0, %v2612
        %v2614 = vpop.f32.mrb[0].mxu0
        %2615 = vmatprep.mubr.bf16.mxu0 0
        %2616 = vmatmul.mubr.bf16.gmra.mrb[0].mxu0 %v2526
        %v2617 = vpop.f32.mrb[0].mxu0
        %v2618 = vadd.f32 0.0, %v2617
        %v2619 = vpop.f32.mrb[0].mxu0
        %v2620 = vpop.f32.mrb[0].mxu0
        %v2621 = vadd.f32 0.0, %v2620
        %v2622 = vpop.f32.mrb[0].mxu0
        %2623 = vmatprep.mubr.bf16.mxu0 0
        %2624 = vmatmul.mubr.bf16.gmra.mrb[0].mxu0 %v2529
        %v2625 = vpop.f32.mrb[0].mxu0
        %v2626 = vadd.f32 0.0, %v2625
        %v2627 = vpop.f32.mrb[0].mxu0
        %v2628 = vpop.f32.mrb[0].mxu0
        %v2629 = vadd.f32 0.0, %v2628
        %v2630 = vpop.f32.mrb[0].mxu0
        %2631 = vmatprep.mubr.bf16.mxu0 0
        %2632 = vmatmul.mubr.bf16.gmra.mrb[0].mxu0 %v2532
        %v2633 = vpop.f32.mrb[0].mxu0
        %v2634 = vadd.f32 0.0, %v2633
        %v2635 = vpop.f32.mrb[0].mxu0
        %v2636 = vpop.f32.mrb[0].mxu0
        %v2637 = vadd.f32 0.0, %v2636
        %v2638 = vpop.f32.mrb[0].mxu0
        %2639 = vmatprep.mubr.bf16.mxu0 0
        %2640 = vmatmul.mubr.bf16.gmra.mrb[0].mxu0 %v2535
        %v2641 = vpop.f32.mrb[0].mxu0
        %v2642 = vadd.f32 0.0, %v2641
        %v2643 = vpop.f32.mrb[0].mxu0
        %v2644 = vpop.f32.mrb[0].mxu0
        %v2645 = vadd.f32 0.0, %v2644
        %v2646 = vpop.f32.mrb[0].mxu0
        %2647 = vmatprep.mubr.bf16.mxu0 0
        %2648 = vmatmul.mubr.bf16.gmra.mrb[0].mxu0 %v2538
        %v2649 = vpop.f32.mrb[0].mxu0
        %v2650 = vadd.f32 0.0, %v2649
        %v2651 = vpop.f32.mrb[0].mxu0
        %v2652 = vpop.f32.mrb[0].mxu0
        %v2653 = vadd.f32 0.0, %v2652
        %v2654 = vpop.f32.mrb[0].mxu0
        %2655 = vmatprep.mubr.bf16.mxu0 0
        %2656 = vmatmul.mubr.bf16.gmra.mrb[0].mxu0 %v2541
        %v2657 = vpop.f32.mrb[0].mxu0
        %v2658 = vadd.f32 0.0, %v2657
        %v2659 = vpop.f32.mrb[0].mxu0
        %v2660 = vpop.f32.mrb[0].mxu0
        %v2661 = vadd.f32 0.0, %v2660
        %v2662 = vpop.f32.mrb[0].mxu0
        %2663 = vmatprep.mubr.bf16.mxu0 0
        %2664 = vmatmul.mubr.bf16.gmra.mrb[0].mxu0 %v2544
        %v2665 = vpop.f32.mrb[0].mxu0
        %v2666 = vadd.f32 0.0, %v2665
        %v2667 = vpop.f32.mrb[0].mxu0
        %v2668 = vpop.f32.mrb[0].mxu0
        %v2669 = vadd.f32 0.0, %v2668
        %v2670 = vpop.f32.mrb[0].mxu0
        %2671 = vmatprep.mubr.bf16.mxu0 0
        %2672 = vmatmul.mubr.bf16.gmra.mrb[0].mxu0 %v2547
        %v2673 = vpop.f32.mrb[0].mxu0
        %v2674 = vadd.f32 0.0, %v2673
        %v2675 = vpop.f32.mrb[0].mxu0
        %v2676 = vpop.f32.mrb[0].mxu0
        %v2677 = vadd.f32 0.0, %v2676
        %v2678 = vpop.f32.mrb[0].mxu0
        %2679 = vmatprep.mubr.bf16.mxu0 0
        %2680 = vmatmul.mubr.bf16.gmra.mrb[0].mxu0 %v2550
        %v2681 = vpop.f32.mrb[0].mxu0
        %v2682 = vadd.f32 0.0, %v2681
        %v2683 = vpop.f32.mrb[0].mxu0
        %v2684 = vpop.f32.mrb[0].mxu0
        %v2685 = vadd.f32 0.0, %v2684
        %v2686 = vpop.f32.mrb[0].mxu0
        %2687 = vmatprep.mubr.bf16.mxu0 0
        %2688 = vmatmul.mubr.bf16.gmra.mrb[0].mxu0 %v2553
        %v2689 = vpop.f32.mrb[0].mxu0
        %v2690 = vadd.f32 0.0, %v2689
        %v2691 = vpop.f32.mrb[0].mxu0
        %v2692 = vpop.f32.mrb[0].mxu0
        %v2693 = vadd.f32 0.0, %v2692
        %v2694 = vpop.f32.mrb[0].mxu0
        %2695 = vmatprep.mubr.bf16.mxu0 0
        %2696 = vmatmul.mubr.bf16.gmra.mrb[0].mxu0 %v2556
        %v2697 = vpop.f32.mrb[0].mxu0
        %v2698 = vadd.f32 0.0, %v2697
        %v2699 = vpop.f32.mrb[0].mxu0
        %v2700 = vpop.f32.mrb[0].mxu0
        %v2701 = vadd.f32 0.0, %v2700
        %v2702 = vpop.f32.mrb[0].mxu0
        %2703 = vmatprep.mubr.bf16.mxu0 0
        %2704 = vmatmul.mubr.bf16.gmra.mrb[0].mxu0 %v2559
        %v2705 = vpop.f32.mrb[0].mxu0
        %v2706 = vadd.f32 0.0, %v2705
        %v2707 = vpop.f32.mrb[0].mxu0
        %v2708 = vpop.f32.mrb[0].mxu0
        %v2709 = vadd.f32 0.0, %v2708
        %v2710 = vpop.f32.mrb[0].mxu0
        %2711 = vmatprep.mubr.bf16.mxu0 0
        %2712 = vmatmul.mubr.bf16.gmra.mrb[0].mxu0 %v2562
        %v2713 = vpop.f32.mrb[0].mxu0
        %v2714 = vadd.f32 0.0, %v2713
        %v2715 = vpop.f32.mrb[0].mxu0
        %v2716 = vpop.f32.mrb[0].mxu0
        %v2717 = vadd.f32 0.0, %v2716
        %v2718 = vpop.f32.mrb[0].mxu0
        %2719 = vmatprep.mubr.bf16.mxu0 0
        %2720 = vmatmul.mubr.bf16.gmra.mrb[0].mxu0 %v2565
        %v2721 = vpop.f32.mrb[0].mxu0
        %v2722 = vadd.f32 0.0, %v2721
        %v2723 = vpop.f32.mrb[0].mxu0
        %v2724 = vpop.f32.mrb[0].mxu0
        %v2725 = vadd.f32 0.0, %v2724
        %v2726 = vpop.f32.mrb[0].mxu0
        %2727 = vdwg.mxu0
        %v2728 = vadd.f32 %v2342, %v2602
        %v2729 = vadd.f32 %v2343, %v2605
        %v2730 = vadd.f32 %v2344, %v2610
        %v2731 = vadd.f32 %v2345, %v2613
        %v2732 = vadd.f32 %v2346, %v2618
        %v2733 = vadd.f32 %v2347, %v2621
        %v2734 = vadd.f32 %v2348, %v2626
        %v2735 = vadd.f32 %v2349, %v2629
        %v2736 = vadd.f32 %v2350, %v2634
        %v2737 = vadd.f32 %v2351, %v2637
        %v2738 = vadd.f32 %v2352, %v2642
        %v2739 = vadd.f32 %v2353, %v2645
        %v2740 = vadd.f32 %v2354, %v2650
        %v2741 = vadd.f32 %v2355, %v2653
        %v2742 = vadd.f32 %v2356, %v2658
        %v2743 = vadd.f32 %v2357, %v2661
        %v2744 = vadd.f32 %v2358, %v2666
        %v2745 = vadd.f32 %v2359, %v2669
        %v2746 = vadd.f32 %v2360, %v2674
        %v2747 = vadd.f32 %v2361, %v2677
        %v2748 = vadd.f32 %v2362, %v2682
        %v2749 = vadd.f32 %v2363, %v2685
        %v2750 = vadd.f32 %v2364, %v2690
        %v2751 = vadd.f32 %v2365, %v2693
        %v2752 = vadd.f32 %v2366, %v2698
        %v2753 = vadd.f32 %v2367, %v2701
        %v2754 = vadd.f32 %v2368, %v2706
        %v2755 = vadd.f32 %v2369, %v2709
        %v2756 = vadd.f32 %v2370, %v2714
        %v2757 = vadd.f32 %v2371, %v2717
        %v2758 = vadd.f32 %v2372, %v2722
        %v2759 = vadd.f32 %v2373, %v2725
        %v2760 = vld [vmem:[%s724] sm:$0xf]
        %v2761 = vld [vmem:[%s724 + $0x4] sm:$0xf]
        %v2762 = vld [vmem:[%s724 + $0x8] sm:$0x1]
        %v2763 = vld [vmem:[%s724 + $0xc] sm:$0xf]
        %v2764 = vld [vmem:[%s724 + $0x10] sm:$0xf]
        %v2765 = vld [vmem:[%s724 + $0x14] sm:$0x1]
        %v2766 = vld [vmem:[%s724 + $0x18] sm:$0xf]
        %v2767 = vld [vmem:[%s724 + $0x1c] sm:$0xf]
        %v2768 = vld [vmem:[%s724 + $0x20] sm:$0x1]
        %v2769 = vld [vmem:[%s724 + $0x24] sm:$0xf]
        %v2770 = vld [vmem:[%s724 + $0x28] sm:$0xf]
        %v2771 = vld [vmem:[%s724 + $0x2c] sm:$0x1]
        %v2772 = vld [vmem:[%s724 + $0x30] sm:$0xf]
        %v2773 = vld [vmem:[%s724 + $0x34] sm:$0xf]
        %v2774 = vld [vmem:[%s724 + $0x38] sm:$0x1]
        %v2775 = vld [vmem:[%s724 + $0x3c] sm:$0xf]
        %v2776 = vld [vmem:[%s724 + $0x40] sm:$0xf]
        %v2777 = vld [vmem:[%s724 + $0x44] sm:$0x1]
        %v2778 = vld [vmem:[%s724 + $0x48] sm:$0xf]
        %v2779 = vld [vmem:[%s724 + $0x4c] sm:$0xf]
        %v2780 = vld [vmem:[%s724 + $0x50] sm:$0x1]
        %v2781 = vld [vmem:[%s724 + $0x54] sm:$0xf]
        %v2782 = vld [vmem:[%s724 + $0x58] sm:$0xf]
        %v2783 = vld [vmem:[%s724 + $0x5c] sm:$0x1]
        %v2784 = vld [vmem:[%s724 + $0x60] sm:$0xf]
        %v2785 = vld [vmem:[%s724 + $0x64] sm:$0xf]
        %v2786 = vld [vmem:[%s724 + $0x68] sm:$0x1]
        %v2787 = vld [vmem:[%s724 + $0x6c] sm:$0xf]
        %v2788 = vld [vmem:[%s724 + $0x70] sm:$0xf]
        %v2789 = vld [vmem:[%s724 + $0x74] sm:$0x1]
        %v2790 = vld [vmem:[%s724 + $0x78] sm:$0xf]
        %v2791 = vld [vmem:[%s724 + $0x7c] sm:$0xf]
        %v2792 = vld [vmem:[%s724 + $0x80] sm:$0x1]
        %v2793 = vld [vmem:[%s724 + $0x84] sm:$0xf]
        %v2794 = vld [vmem:[%s724 + $0x88] sm:$0xf]
        %v2795 = vld [vmem:[%s724 + $0x8c] sm:$0x1]
        %v2796 = vld [vmem:[%s724 + $0x90] sm:$0xf]
        %v2797 = vld [vmem:[%s724 + $0x94] sm:$0xf]
        %v2798 = vld [vmem:[%s724 + $0x98] sm:$0x1]
        %v2799 = vld [vmem:[%s724 + $0x9c] sm:$0xf]
        %v2800 = vld [vmem:[%s724 + $0xa0] sm:$0xf]
        %v2801 = vld [vmem:[%s724 + $0xa4] sm:$0x1]
        %v2802 = vld [vmem:[%s724 + $0xa8] sm:$0xf]
        %v2803 = vld [vmem:[%s724 + $0xac] sm:$0xf]
        %v2804 = vld [vmem:[%s724 + $0xb0] sm:$0x1]
        %v2805 = vld [vmem:[%s724 + $0xb4] sm:$0xf]
        %v2806 = vld [vmem:[%s724 + $0xb8] sm:$0xf]
        %v2807 = vld [vmem:[%s724 + $0xbc] sm:$0x1]
        %v2809 = vshrl.u32 %v2760, 16
        %v2811 = vrot.slane %v2809, 4
        %v2812 = vshll.u32 %v2760, 16
        %v2814 = vrot.slane %v2812, 5
        %v2815 = vor.u32 %v2811, %v2814
        %v2816 = vrot.slane %v2815, 4
        %v2818 = vshll.u32 %v2761, 16
        %v2820 = vrot.slane %v2818, 5
        %v2821 = vsel %vm900, %v2816, %v2820
        %v2822 = vshrl.u32 %v2761, 16
        %v2824 = vrot.slane %v2822, 4
        %v2825 = vor.u32 %v2824, %v2820
        %v2826 = vrot.slane %v2825, 4
        %v2828 = vshll.u32 %v2762, 16
        %v2830 = vrot.slane %v2828, 5
        %v2831 = vsel %vm900, %v2826, %v2830
        %v2833 = vshrl.u32 %v2763, 16
        %v2835 = vrot.slane %v2833, 4
        %v2836 = vshll.u32 %v2763, 16
        %v2838 = vrot.slane %v2836, 5
        %v2839 = vor.u32 %v2835, %v2838
        %v2840 = vrot.slane %v2839, 4
        %v2842 = vshll.u32 %v2764, 16
        %v2844 = vrot.slane %v2842, 5
        %v2845 = vsel %vm900, %v2840, %v2844
        %v2846 = vshrl.u32 %v2764, 16
        %v2848 = vrot.slane %v2846, 4
        %v2849 = vor.u32 %v2848, %v2844
        %v2850 = vrot.slane %v2849, 4
        %v2852 = vshll.u32 %v2765, 16
        %v2854 = vrot.slane %v2852, 5
        %v2855 = vsel %vm900, %v2850, %v2854
        %v2857 = vshrl.u32 %v2766, 16
        %v2859 = vrot.slane %v2857, 4
        %v2860 = vshll.u32 %v2766, 16
        %v2862 = vrot.slane %v2860, 5
        %v2863 = vor.u32 %v2859, %v2862
        %v2864 = vrot.slane %v2863, 4
        %v2866 = vshll.u32 %v2767, 16
        %v2868 = vrot.slane %v2866, 5
        %v2869 = vsel %vm900, %v2864, %v2868
        %v2870 = vshrl.u32 %v2767, 16
        %v2872 = vrot.slane %v2870, 4
        %v2873 = vor.u32 %v2872, %v2868
        %v2874 = vrot.slane %v2873, 4
        %v2876 = vshll.u32 %v2768, 16
        %v2878 = vrot.slane %v2876, 5
        %v2879 = vsel %vm900, %v2874, %v2878
        %v2881 = vshrl.u32 %v2769, 16
        %v2883 = vrot.slane %v2881, 4
        %v2884 = vshll.u32 %v2769, 16
        %v2886 = vrot.slane %v2884, 5
        %v2887 = vor.u32 %v2883, %v2886
        %v2888 = vrot.slane %v2887, 4
        %v2890 = vshll.u32 %v2770, 16
        %v2892 = vrot.slane %v2890, 5
        %v2893 = vsel %vm900, %v2888, %v2892
        %v2894 = vshrl.u32 %v2770, 16
        %v2896 = vrot.slane %v2894, 4
        %v2897 = vor.u32 %v2896, %v2892
        %v2898 = vrot.slane %v2897, 4
        %v2900 = vshll.u32 %v2771, 16
        %v2902 = vrot.slane %v2900, 5
        %v2903 = vsel %vm900, %v2898, %v2902
        %v2905 = vshrl.u32 %v2772, 16
        %v2907 = vrot.slane %v2905, 4
        %v2908 = vshll.u32 %v2772, 16
        %v2910 = vrot.slane %v2908, 5
        %v2911 = vor.u32 %v2907, %v2910
        %v2912 = vrot.slane %v2911, 4
        %v2914 = vshll.u32 %v2773, 16
        %v2916 = vrot.slane %v2914, 5
        %v2917 = vsel %vm900, %v2912, %v2916
        %v2918 = vshrl.u32 %v2773, 16
        %v2920 = vrot.slane %v2918, 4
        %v2921 = vor.u32 %v2920, %v2916
        %v2922 = vrot.slane %v2921, 4
        %v2924 = vshll.u32 %v2774, 16
        %v2926 = vrot.slane %v2924, 5
        %v2927 = vsel %vm900, %v2922, %v2926
        %v2929 = vshrl.u32 %v2775, 16
        %v2931 = vrot.slane %v2929, 4
        %v2932 = vshll.u32 %v2775, 16
        %v2934 = vrot.slane %v2932, 5
        %v2935 = vor.u32 %v2931, %v2934
        %v2936 = vrot.slane %v2935, 4
        %v2938 = vshll.u32 %v2776, 16
        %v2940 = vrot.slane %v2938, 5
        %v2941 = vsel %vm900, %v2936, %v2940
        %v2942 = vshrl.u32 %v2776, 16
        %v2944 = vrot.slane %v2942, 4
        %v2945 = vor.u32 %v2944, %v2940
        %v2946 = vrot.slane %v2945, 4
        %v2948 = vshll.u32 %v2777, 16
        %v2950 = vrot.slane %v2948, 5
        %v2951 = vsel %vm900, %v2946, %v2950
        %v2953 = vshrl.u32 %v2778, 16
        %v2955 = vrot.slane %v2953, 4
        %v2956 = vshll.u32 %v2778, 16
        %v2958 = vrot.slane %v2956, 5
        %v2959 = vor.u32 %v2955, %v2958
        %v2960 = vrot.slane %v2959, 4
        %v2962 = vshll.u32 %v2779, 16
        %v2964 = vrot.slane %v2962, 5
        %v2965 = vsel %vm900, %v2960, %v2964
        %v2966 = vshrl.u32 %v2779, 16
        %v2968 = vrot.slane %v2966, 4
        %v2969 = vor.u32 %v2968, %v2964
        %v2970 = vrot.slane %v2969, 4
        %v2972 = vshll.u32 %v2780, 16
        %v2974 = vrot.slane %v2972, 5
        %v2975 = vsel %vm900, %v2970, %v2974
        %v2977 = vshrl.u32 %v2781, 16
        %v2979 = vrot.slane %v2977, 4
        %v2980 = vshll.u32 %v2781, 16
        %v2982 = vrot.slane %v2980, 5
        %v2983 = vor.u32 %v2979, %v2982
        %v2984 = vrot.slane %v2983, 4
        %v2986 = vshll.u32 %v2782, 16
        %v2988 = vrot.slane %v2986, 5
        %v2989 = vsel %vm900, %v2984, %v2988
        %v2990 = vshrl.u32 %v2782, 16
        %v2992 = vrot.slane %v2990, 4
        %v2993 = vor.u32 %v2992, %v2988
        %v2994 = vrot.slane %v2993, 4
        %v2996 = vshll.u32 %v2783, 16
        %v2998 = vrot.slane %v2996, 5
        %v2999 = vsel %vm900, %v2994, %v2998
        %v3001 = vshrl.u32 %v2784, 16
        %v3003 = vrot.slane %v3001, 4
        %v3004 = vshll.u32 %v2784, 16
        %v3006 = vrot.slane %v3004, 5
        %v3007 = vor.u32 %v3003, %v3006
        %v3008 = vrot.slane %v3007, 4
        %v3010 = vshll.u32 %v2785, 16
        %v3012 = vrot.slane %v3010, 5
        %v3013 = vsel %vm900, %v3008, %v3012
        %v3014 = vshrl.u32 %v2785, 16
        %v3016 = vrot.slane %v3014, 4
        %v3017 = vor.u32 %v3016, %v3012
        %v3018 = vrot.slane %v3017, 4
        %v3020 = vshll.u32 %v2786, 16
        %v3022 = vrot.slane %v3020, 5
        %v3023 = vsel %vm900, %v3018, %v3022
        %v3025 = vshrl.u32 %v2787, 16
        %v3027 = vrot.slane %v3025, 4
        %v3028 = vshll.u32 %v2787, 16
        %v3030 = vrot.slane %v3028, 5
        %v3031 = vor.u32 %v3027, %v3030
        %v3032 = vrot.slane %v3031, 4
        %v3034 = vshll.u32 %v2788, 16
        %v3036 = vrot.slane %v3034, 5
        %v3037 = vsel %vm900, %v3032, %v3036
        %v3038 = vshrl.u32 %v2788, 16
        %v3040 = vrot.slane %v3038, 4
        %v3041 = vor.u32 %v3040, %v3036
        %v3042 = vrot.slane %v3041, 4
        %v3044 = vshll.u32 %v2789, 16
        %v3046 = vrot.slane %v3044, 5
        %v3047 = vsel %vm900, %v3042, %v3046
        %v3049 = vshrl.u32 %v2790, 16
        %v3051 = vrot.slane %v3049, 4
        %v3052 = vshll.u32 %v2790, 16
        %v3054 = vrot.slane %v3052, 5
        %v3055 = vor.u32 %v3051, %v3054
        %v3056 = vrot.slane %v3055, 4
        %v3058 = vshll.u32 %v2791, 16
        %v3060 = vrot.slane %v3058, 5
        %v3061 = vsel %vm900, %v3056, %v3060
        %v3062 = vshrl.u32 %v2791, 16
        %v3064 = vrot.slane %v3062, 4
        %v3065 = vor.u32 %v3064, %v3060
        %v3066 = vrot.slane %v3065, 4
        %v3068 = vshll.u32 %v2792, 16
        %v3070 = vrot.slane %v3068, 5
        %v3071 = vsel %vm900, %v3066, %v3070
        %v3073 = vshrl.u32 %v2793, 16
        %v3075 = vrot.slane %v3073, 4
        %v3076 = vshll.u32 %v2793, 16
        %v3078 = vrot.slane %v3076, 5
        %v3079 = vor.u32 %v3075, %v3078
        %v3080 = vrot.slane %v3079, 4
        %v3082 = vshll.u32 %v2794, 16
        %v3084 = vrot.slane %v3082, 5
        %v3085 = vsel %vm900, %v3080, %v3084
        %v3086 = vshrl.u32 %v2794, 16
        %v3088 = vrot.slane %v3086, 4
        %v3089 = vor.u32 %v3088, %v3084
        %v3090 = vrot.slane %v3089, 4
        %v3092 = vshll.u32 %v2795, 16
        %v3094 = vrot.slane %v3092, 5
        %v3095 = vsel %vm900, %v3090, %v3094
        %v3097 = vshrl.u32 %v2796, 16
        %v3099 = vrot.slane %v3097, 4
        %v3100 = vshll.u32 %v2796, 16
        %v3102 = vrot.slane %v3100, 5
        %v3103 = vor.u32 %v3099, %v3102
        %v3104 = vrot.slane %v3103, 4
        %v3106 = vshll.u32 %v2797, 16
        %v3108 = vrot.slane %v3106, 5
        %v3109 = vsel %vm900, %v3104, %v3108
        %v3110 = vshrl.u32 %v2797, 16
        %v3112 = vrot.slane %v3110, 4
        %v3113 = vor.u32 %v3112, %v3108
        %v3114 = vrot.slane %v3113, 4
        %v3116 = vshll.u32 %v2798, 16
        %v3118 = vrot.slane %v3116, 5
        %v3119 = vsel %vm900, %v3114, %v3118
        %v3121 = vshrl.u32 %v2799, 16
        %v3123 = vrot.slane %v3121, 4
        %v3124 = vshll.u32 %v2799, 16
        %v3126 = vrot.slane %v3124, 5
        %v3127 = vor.u32 %v3123, %v3126
        %v3128 = vrot.slane %v3127, 4
        %v3130 = vshll.u32 %v2800, 16
        %v3132 = vrot.slane %v3130, 5
        %v3133 = vsel %vm900, %v3128, %v3132
        %v3134 = vshrl.u32 %v2800, 16
        %v3136 = vrot.slane %v3134, 4
        %v3137 = vor.u32 %v3136, %v3132
        %v3138 = vrot.slane %v3137, 4
        %v3140 = vshll.u32 %v2801, 16
        %v3142 = vrot.slane %v3140, 5
        %v3143 = vsel %vm900, %v3138, %v3142
        %v3145 = vshrl.u32 %v2802, 16
        %v3147 = vrot.slane %v3145, 4
        %v3148 = vshll.u32 %v2802, 16
        %v3150 = vrot.slane %v3148, 5
        %v3151 = vor.u32 %v3147, %v3150
        %v3152 = vrot.slane %v3151, 4
        %v3154 = vshll.u32 %v2803, 16
        %v3156 = vrot.slane %v3154, 5
        %v3157 = vsel %vm900, %v3152, %v3156
        %v3158 = vshrl.u32 %v2803, 16
        %v3160 = vrot.slane %v3158, 4
        %v3161 = vor.u32 %v3160, %v3156
        %v3162 = vrot.slane %v3161, 4
        %v3164 = vshll.u32 %v2804, 16
        %v3166 = vrot.slane %v3164, 5
        %v3167 = vsel %vm900, %v3162, %v3166
        %v3169 = vshrl.u32 %v2805, 16
        %v3171 = vrot.slane %v3169, 4
        %v3172 = vshll.u32 %v2805, 16
        %v3174 = vrot.slane %v3172, 5
        %v3175 = vor.u32 %v3171, %v3174
        %v3176 = vrot.slane %v3175, 4
        %v3178 = vshll.u32 %v2806, 16
        %v3180 = vrot.slane %v3178, 5
        %v3181 = vsel %vm900, %v3176, %v3180
        %v3182 = vshrl.u32 %v2806, 16
        %v3184 = vrot.slane %v3182, 4
        %v3185 = vor.u32 %v3184, %v3180
        %v3186 = vrot.slane %v3185, 4
        %v3188 = vshll.u32 %v2807, 16
        %v3190 = vrot.slane %v3188, 5
        %v3191 = vsel %vm900, %v3186, %v3190
        %s3192 = scalar_lea.vmem %s1, 128
        %v3193 = vld [vmem:[%s3192] sm:$0xf]
        %v3194 = vld [vmem:[%s3192 + $0x4] sm:$0xf]
        %v3195 = vld [vmem:[%s3192 + $0x8] sm:$0xf]
        %v3196 = vld [vmem:[%s3192 + $0xc] sm:$0xf]
        %v3197 = vld [vmem:[%s3192 + $0x10] sm:$0xf]
        %v3198 = vld [vmem:[%s3192 + $0x14] sm:$0xf]
        %v3199 = vld [vmem:[%s3192 + $0x18] sm:$0xf]
        %v3200 = vld [vmem:[%s3192 + $0x1c] sm:$0xf]
        %v3201 = vunpack.c.l.b16 %v2821
        %v3202 = vunpack.c.l.b16 %v2831
        %v3203 = vunpack.c.l.b16 %v2845
        %v3204 = vunpack.c.l.b16 %v2855
        %v3205 = vunpack.c.l.b16 %v2869
        %v3206 = vunpack.c.l.b16 %v2879
        %v3207 = vunpack.c.l.b16 %v2893
        %v3208 = vunpack.c.l.b16 %v2903
        %v3209 = vunpack.c.l.b16 %v2917
        %v3210 = vunpack.c.l.b16 %v2927
        %v3211 = vunpack.c.l.b16 %v2941
        %v3212 = vunpack.c.l.b16 %v2951
        %v3213 = vunpack.c.l.b16 %v2965
        %v3214 = vunpack.c.l.b16 %v2975
        %v3215 = vunpack.c.l.b16 %v2989
        %v3216 = vunpack.c.l.b16 %v2999
        %v3217 = vunpack.c.l.b16 %v3013
        %v3218 = vunpack.c.l.b16 %v3023
        %v3219 = vunpack.c.l.b16 %v3037
        %v3220 = vunpack.c.l.b16 %v3047
        %v3221 = vunpack.c.l.b16 %v3061
        %v3222 = vunpack.c.l.b16 %v3071
        %v3223 = vunpack.c.l.b16 %v3085
        %v3224 = vunpack.c.l.b16 %v3095
        %v3225 = vunpack.c.l.b16 %v3109
        %v3226 = vunpack.c.l.b16 %v3119
        %v3227 = vunpack.c.l.b16 %v3133
        %v3228 = vunpack.c.l.b16 %v3143
        %v3229 = vunpack.c.l.b16 %v3157
        %v3230 = vunpack.c.l.b16 %v3167
        %v3231 = vunpack.c.l.b16 %v3181
        %v3232 = vunpack.c.l.b16 %v3191
        %v3233 = vpack.c.b16 %v3202, %v3201
        %v3234 = vpack.c.b16 %v3204, %v3203
        %v3235 = vpack.c.b16 %v3206, %v3205
        %v3236 = vpack.c.b16 %v3208, %v3207
        %v3237 = vpack.c.b16 %v3210, %v3209
        %v3238 = vpack.c.b16 %v3212, %v3211
        %v3239 = vpack.c.b16 %v3214, %v3213
        %v3240 = vpack.c.b16 %v3216, %v3215
        %v3241 = vpack.c.b16 %v3218, %v3217
        %v3242 = vpack.c.b16 %v3220, %v3219
        %v3243 = vpack.c.b16 %v3222, %v3221
        %v3244 = vpack.c.b16 %v3224, %v3223
        %v3245 = vpack.c.b16 %v3226, %v3225
        %v3246 = vpack.c.b16 %v3228, %v3227
        %v3247 = vpack.c.b16 %v3230, %v3229
        %v3248 = vpack.c.b16 %v3232, %v3231
        %v3257 = vunpack.c.l.b16 %v3193
        %v3258 = vunpack.c.l.b16 %v3194
        %v3259 = vunpack.c.l.b16 %v3195
        %v3260 = vunpack.c.l.b16 %v3196
        %v3261 = vunpack.c.l.b16 %v3197
        %v3262 = vunpack.c.l.b16 %v3198
        %v3263 = vunpack.c.l.b16 %v3199
        %v3264 = vunpack.c.l.b16 %v3200
        %v3265 = vpack.c.b16 %v3258, %v3257
        %v3266 = vpack.c.b16 %v3260, %v3259
        %v3267 = vpack.c.b16 %v3262, %v3261
        %v3268 = vpack.c.b16 %v3264, %v3263
        %v3274 = vsel %vm1366, %v3233, 0
        %v3277 = vsel %vm1366, %v3234, 0
        %v3280 = vsel %vm1366, %v3235, 0
        %v3283 = vsel %vm1366, %v3236, 0
        %v3286 = vsel %vm1366, %v3237, 0
        %v3289 = vsel %vm1366, %v3238, 0
        %v3292 = vsel %vm1366, %v3239, 0
        %v3295 = vsel %vm1366, %v3240, 0
        %v3298 = vsel %vm1366, %v3241, 0
        %v3301 = vsel %vm1366, %v3242, 0
        %v3304 = vsel %vm1366, %v3243, 0
        %v3307 = vsel %vm1366, %v3244, 0
        %v3310 = vsel %vm1366, %v3245, 0
        %v3313 = vsel %vm1366, %v3246, 0
        %v3316 = vsel %vm1366, %v3247, 0
        %v3319 = vsel %vm1366, %v3248, 0
        %3321 = vmatprep.subr.bf16.mxu0 0
        %3322 = vmatpush1.bf16.msra.mxu0 %v3265
        %3323 = vmatprep.subr.bf16.mxu0 0
        %3324 = vmatpush1.bf16.msra.mxu0 %v3266
        %3325 = vmatprep.subr.bf16.mxu0 0
        %3326 = vmatpush1.bf16.msra.mxu0 %v3267
        %3327 = vmatprep.subr.bf16.mxu0 0
        %3328 = vmatpush1.bf16.msra.mxu0 %v3268
        %3329 = vmatprep.subr.bf16.mxu0 0
        %3330 = vmatpush1.bf16.msra.mxu0 0
        %3331 = vmatprep.subr.bf16.mxu0 0
        %3332 = vmatpush1.bf16.msra.mxu0 0
        %3333 = vmatprep.subr.bf16.mxu0 0
        %3334 = vmatpush1.bf16.msra.mxu0 0
        %3335 = vmatprep.subr.bf16.mxu0 0
        %3336 = vmatpush1.bf16.msra.mxu0 0
        %3337 = vmatprep.subr.bf16.mxu0 0
        %3338 = vmatpush1.bf16.msra.mxu0 0
        %3339 = vmatprep.subr.bf16.mxu0 0
        %3340 = vmatpush1.bf16.msra.mxu0 0
        %3341 = vmatprep.subr.bf16.mxu0 0
        %3342 = vmatpush1.bf16.msra.mxu0 0
        %3343 = vmatprep.subr.bf16.mxu0 0
        %3344 = vmatpush1.bf16.msra.mxu0 0
        %3345 = vmatprep.subr.bf16.mxu0 0
        %3346 = vmatpush1.bf16.msra.mxu0 0
        %3347 = vmatprep.subr.bf16.mxu0 0
        %3348 = vmatpush1.bf16.msra.mxu0 0
        %3349 = vmatprep.subr.bf16.mxu0 0
        %3350 = vmatpush1.bf16.msra.mxu0 0
        %3351 = vmatprep.subr.bf16.mxu0 0
        %3352 = vmatpush1.bf16.msra.mxu0 0
        %3353 = vmatprep.mubr.bf16.mxu0 0
        %3354 = vmatmul.mubr.bf16.gmra.mrb[0].mxu0 %v3274
        %v3355 = vpop.f32.mrb[0].mxu0
        %v3356 = vadd.f32 0.0, %v3355
        %v3357 = vpop.f32.mrb[0].mxu0
        %v3358 = vpop.f32.mrb[0].mxu0
        %v3359 = vadd.f32 0.0, %v3358
        %v3360 = vpop.f32.mrb[0].mxu0
        %3361 = vmatprep.mubr.bf16.mxu0 0
        %3362 = vmatmul.mubr.bf16.gmra.mrb[0].mxu0 %v3277
        %v3363 = vpop.f32.mrb[0].mxu0
        %v3364 = vadd.f32 0.0, %v3363
        %v3365 = vpop.f32.mrb[0].mxu0
        %v3366 = vpop.f32.mrb[0].mxu0
        %v3367 = vadd.f32 0.0, %v3366
        %v3368 = vpop.f32.mrb[0].mxu0
        %3369 = vmatprep.mubr.bf16.mxu0 0
        %3370 = vmatmul.mubr.bf16.gmra.mrb[0].mxu0 %v3280
        %v3371 = vpop.f32.mrb[0].mxu0
        %v3372 = vadd.f32 0.0, %v3371
        %v3373 = vpop.f32.mrb[0].mxu0
        %v3374 = vpop.f32.mrb[0].mxu0
        %v3375 = vadd.f32 0.0, %v3374
        %v3376 = vpop.f32.mrb[0].mxu0
        %3377 = vmatprep.mubr.bf16.mxu0 0
        %3378 = vmatmul.mubr.bf16.gmra.mrb[0].mxu0 %v3283
        %v3379 = vpop.f32.mrb[0].mxu0
        %v3380 = vadd.f32 0.0, %v3379
        %v3381 = vpop.f32.mrb[0].mxu0
        %v3382 = vpop.f32.mrb[0].mxu0
        %v3383 = vadd.f32 0.0, %v3382
        %v3384 = vpop.f32.mrb[0].mxu0
        %3385 = vmatprep.mubr.bf16.mxu0 0
        %3386 = vmatmul.mubr.bf16.gmra.mrb[0].mxu0 %v3286
        %v3387 = vpop.f32.mrb[0].mxu0
        %v3388 = vadd.f32 0.0, %v3387
        %v3389 = vpop.f32.mrb[0].mxu0
        %v3390 = vpop.f32.mrb[0].mxu0
        %v3391 = vadd.f32 0.0, %v3390
        %v3392 = vpop.f32.mrb[0].mxu0
        %3393 = vmatprep.mubr.bf16.mxu0 0
        %3394 = vmatmul.mubr.bf16.gmra.mrb[0].mxu0 %v3289
        %v3395 = vpop.f32.mrb[0].mxu0
        %v3396 = vadd.f32 0.0, %v3395
        %v3397 = vpop.f32.mrb[0].mxu0
        %v3398 = vpop.f32.mrb[0].mxu0
        %v3399 = vadd.f32 0.0, %v3398
        %v3400 = vpop.f32.mrb[0].mxu0
        %3401 = vmatprep.mubr.bf16.mxu0 0
        %3402 = vmatmul.mubr.bf16.gmra.mrb[0].mxu0 %v3292
        %v3403 = vpop.f32.mrb[0].mxu0
        %v3404 = vadd.f32 0.0, %v3403
        %v3405 = vpop.f32.mrb[0].mxu0
        %v3406 = vpop.f32.mrb[0].mxu0
        %v3407 = vadd.f32 0.0, %v3406
        %v3408 = vpop.f32.mrb[0].mxu0
        %3409 = vmatprep.mubr.bf16.mxu0 0
        %3410 = vmatmul.mubr.bf16.gmra.mrb[0].mxu0 %v3295
        %v3411 = vpop.f32.mrb[0].mxu0
        %v3412 = vadd.f32 0.0, %v3411
        %v3413 = vpop.f32.mrb[0].mxu0
        %v3414 = vpop.f32.mrb[0].mxu0
        %v3415 = vadd.f32 0.0, %v3414
        %v3416 = vpop.f32.mrb[0].mxu0
        %3417 = vmatprep.mubr.bf16.mxu0 0
        %3418 = vmatmul.mubr.bf16.gmra.mrb[0].mxu0 %v3298
        %v3419 = vpop.f32.mrb[0].mxu0
        %v3420 = vadd.f32 0.0, %v3419
        %v3421 = vpop.f32.mrb[0].mxu0
        %v3422 = vpop.f32.mrb[0].mxu0
        %v3423 = vadd.f32 0.0, %v3422
        %v3424 = vpop.f32.mrb[0].mxu0
        %3425 = vmatprep.mubr.bf16.mxu0 0
        %3426 = vmatmul.mubr.bf16.gmra.mrb[0].mxu0 %v3301
        %v3427 = vpop.f32.mrb[0].mxu0
        %v3428 = vadd.f32 0.0, %v3427
        %v3429 = vpop.f32.mrb[0].mxu0
        %v3430 = vpop.f32.mrb[0].mxu0
        %v3431 = vadd.f32 0.0, %v3430
        %v3432 = vpop.f32.mrb[0].mxu0
        %3433 = vmatprep.mubr.bf16.mxu0 0
        %3434 = vmatmul.mubr.bf16.gmra.mrb[0].mxu0 %v3304
        %v3435 = vpop.f32.mrb[0].mxu0
        %v3436 = vadd.f32 0.0, %v3435
        %v3437 = vpop.f32.mrb[0].mxu0
        %v3438 = vpop.f32.mrb[0].mxu0
        %v3439 = vadd.f32 0.0, %v3438
        %v3440 = vpop.f32.mrb[0].mxu0
        %3441 = vmatprep.mubr.bf16.mxu0 0
        %3442 = vmatmul.mubr.bf16.gmra.mrb[0].mxu0 %v3307
        %v3443 = vpop.f32.mrb[0].mxu0
        %v3444 = vadd.f32 0.0, %v3443
        %v3445 = vpop.f32.mrb[0].mxu0
        %v3446 = vpop.f32.mrb[0].mxu0
        %v3447 = vadd.f32 0.0, %v3446
        %v3448 = vpop.f32.mrb[0].mxu0
        %3449 = vmatprep.mubr.bf16.mxu0 0
        %3450 = vmatmul.mubr.bf16.gmra.mrb[0].mxu0 %v3310
        %v3451 = vpop.f32.mrb[0].mxu0
        %v3452 = vadd.f32 0.0, %v3451
        %v3453 = vpop.f32.mrb[0].mxu0
        %v3454 = vpop.f32.mrb[0].mxu0
        %v3455 = vadd.f32 0.0, %v3454
        %v3456 = vpop.f32.mrb[0].mxu0
        %3457 = vmatprep.mubr.bf16.mxu0 0
        %3458 = vmatmul.mubr.bf16.gmra.mrb[0].mxu0 %v3313
        %v3459 = vpop.f32.mrb[0].mxu0
        %v3460 = vadd.f32 0.0, %v3459
        %v3461 = vpop.f32.mrb[0].mxu0
        %v3462 = vpop.f32.mrb[0].mxu0
        %v3463 = vadd.f32 0.0, %v3462
        %v3464 = vpop.f32.mrb[0].mxu0
        %3465 = vmatprep.mubr.bf16.mxu0 0
        %3466 = vmatmul.mubr.bf16.gmra.mrb[0].mxu0 %v3316
        %v3467 = vpop.f32.mrb[0].mxu0
        %v3468 = vadd.f32 0.0, %v3467
        %v3469 = vpop.f32.mrb[0].mxu0
        %v3470 = vpop.f32.mrb[0].mxu0
        %v3471 = vadd.f32 0.0, %v3470
        %v3472 = vpop.f32.mrb[0].mxu0
        %3473 = vmatprep.mubr.bf16.mxu0 0
        %3474 = vmatmul.mubr.bf16.gmra.mrb[0].mxu0 %v3319
        %v3475 = vpop.f32.mrb[0].mxu0
        %v3476 = vadd.f32 0.0, %v3475
        %v3477 = vpop.f32.mrb[0].mxu0
        %v3478 = vpop.f32.mrb[0].mxu0
        %v3479 = vadd.f32 0.0, %v3478
        %v3480 = vpop.f32.mrb[0].mxu0
        %3481 = vdwg.mxu0
        %v3482 = vadd.f32 %v2728, %v3356
        %v3483 = vadd.f32 %v2729, %v3359
        %v3484 = vadd.f32 %v2730, %v3364
        %v3485 = vadd.f32 %v2731, %v3367
        %v3486 = vadd.f32 %v2732, %v3372
        %v3487 = vadd.f32 %v2733, %v3375
        %v3488 = vadd.f32 %v2734, %v3380
        %v3489 = vadd.f32 %v2735, %v3383
        %v3490 = vadd.f32 %v2736, %v3388
        %v3491 = vadd.f32 %v2737, %v3391
        %v3492 = vadd.f32 %v2738, %v3396
        %v3493 = vadd.f32 %v2739, %v3399
        %v3494 = vadd.f32 %v2740, %v3404
        %v3495 = vadd.f32 %v2741, %v3407
        %v3496 = vadd.f32 %v2742, %v3412
        %v3497 = vadd.f32 %v2743, %v3415
        %v3498 = vadd.f32 %v2744, %v3420
        %v3499 = vadd.f32 %v2745, %v3423
        %v3500 = vadd.f32 %v2746, %v3428
        %v3501 = vadd.f32 %v2747, %v3431
        %v3502 = vadd.f32 %v2748, %v3436
        %v3503 = vadd.f32 %v2749, %v3439
        %v3504 = vadd.f32 %v2750, %v3444
        %v3505 = vadd.f32 %v2751, %v3447
        %v3506 = vadd.f32 %v2752, %v3452
        %v3507 = vadd.f32 %v2753, %v3455
        %v3508 = vadd.f32 %v2754, %v3460
        %v3509 = vadd.f32 %v2755, %v3463
        %v3510 = vadd.f32 %v2756, %v3468
        %v3511 = vadd.f32 %v2757, %v3471
        %v3512 = vadd.f32 %v2758, %v3476
        %v3513 = vadd.f32 %v2759, %v3479
        %v3514 = vld [vmem:[%s724] sm:$0xe]
        %v3515 = vld [vmem:[%s724 + $0xc] sm:$0xe]
        %v3516 = vld [vmem:[%s724 + $0x18] sm:$0xe]
        %v3517 = vld [vmem:[%s724 + $0x24] sm:$0xe]
        %v3518 = vld [vmem:[%s724 + $0x30] sm:$0xe]
        %v3519 = vld [vmem:[%s724 + $0x3c] sm:$0xe]
        %v3520 = vld [vmem:[%s724 + $0x48] sm:$0xe]
        %v3521 = vld [vmem:[%s724 + $0x54] sm:$0xe]
        %v3522 = vld [vmem:[%s724 + $0x60] sm:$0xe]
        %v3523 = vld [vmem:[%s724 + $0x6c] sm:$0xe]
        %v3524 = vld [vmem:[%s724 + $0x78] sm:$0xe]
        %v3525 = vld [vmem:[%s724 + $0x84] sm:$0xe]
        %v3526 = vld [vmem:[%s724 + $0x90] sm:$0xe]
        %v3527 = vld [vmem:[%s724 + $0x9c] sm:$0xe]
        %v3528 = vld [vmem:[%s724 + $0xa8] sm:$0xe]
        %v3529 = vld [vmem:[%s724 + $0xb4] sm:$0xe]
        %v3578 = vrot.slane %v3514, 5
        %v3579 = vrot.slane %v3578, 4
        %v3580 = vrot.slane %v2761, 5
        %v3581 = vsel %vm1939, %v3579, %v3580
        %v3582 = vrot.slane %v3580, 4
        %v3583 = vrot.slane %v2762, 5
        %v3584 = vsel %vm1939, %v3582, %v3583
        %v3585 = vrot.slane %v3515, 5
        %v3586 = vrot.slane %v3585, 4
        %v3587 = vrot.slane %v2764, 5
        %v3588 = vsel %vm1939, %v3586, %v3587
        %v3589 = vrot.slane %v3587, 4
        %v3590 = vrot.slane %v2765, 5
        %v3591 = vsel %vm1939, %v3589, %v3590
        %v3592 = vrot.slane %v3516, 5
        %v3593 = vrot.slane %v3592, 4
        %v3594 = vrot.slane %v2767, 5
        %v3595 = vsel %vm1939, %v3593, %v3594
        %v3596 = vrot.slane %v3594, 4
        %v3597 = vrot.slane %v2768, 5
        %v3598 = vsel %vm1939, %v3596, %v3597
        %v3599 = vrot.slane %v3517, 5
        %v3600 = vrot.slane %v3599, 4
        %v3601 = vrot.slane %v2770, 5
        %v3602 = vsel %vm1939, %v3600, %v3601
        %v3603 = vrot.slane %v3601, 4
        %v3604 = vrot.slane %v2771, 5
        %v3605 = vsel %vm1939, %v3603, %v3604
        %v3606 = vrot.slane %v3518, 5
        %v3607 = vrot.slane %v3606, 4
        %v3608 = vrot.slane %v2773, 5
        %v3609 = vsel %vm1939, %v3607, %v3608
        %v3610 = vrot.slane %v3608, 4
        %v3611 = vrot.slane %v2774, 5
        %v3612 = vsel %vm1939, %v3610, %v3611
        %v3613 = vrot.slane %v3519, 5
        %v3614 = vrot.slane %v3613, 4
        %v3615 = vrot.slane %v2776, 5
        %v3616 = vsel %vm1939, %v3614, %v3615
        %v3617 = vrot.slane %v3615, 4
        %v3618 = vrot.slane %v2777, 5
        %v3619 = vsel %vm1939, %v3617, %v3618
        %v3620 = vrot.slane %v3520, 5
        %v3621 = vrot.slane %v3620, 4
        %v3622 = vrot.slane %v2779, 5
        %v3623 = vsel %vm1939, %v3621, %v3622
        %v3624 = vrot.slane %v3622, 4
        %v3625 = vrot.slane %v2780, 5
        %v3626 = vsel %vm1939, %v3624, %v3625
        %v3627 = vrot.slane %v3521, 5
        %v3628 = vrot.slane %v3627, 4
        %v3629 = vrot.slane %v2782, 5
        %v3630 = vsel %vm1939, %v3628, %v3629
        %v3631 = vrot.slane %v3629, 4
        %v3632 = vrot.slane %v2783, 5
        %v3633 = vsel %vm1939, %v3631, %v3632
        %v3634 = vrot.slane %v3522, 5
        %v3635 = vrot.slane %v3634, 4
        %v3636 = vrot.slane %v2785, 5
        %v3637 = vsel %vm1939, %v3635, %v3636
        %v3638 = vrot.slane %v3636, 4
        %v3639 = vrot.slane %v2786, 5
        %v3640 = vsel %vm1939, %v3638, %v3639
        %v3641 = vrot.slane %v3523, 5
        %v3642 = vrot.slane %v3641, 4
        %v3643 = vrot.slane %v2788, 5
        %v3644 = vsel %vm1939, %v3642, %v3643
        %v3645 = vrot.slane %v3643, 4
        %v3646 = vrot.slane %v2789, 5
        %v3647 = vsel %vm1939, %v3645, %v3646
        %v3648 = vrot.slane %v3524, 5
        %v3649 = vrot.slane %v3648, 4
        %v3650 = vrot.slane %v2791, 5
        %v3651 = vsel %vm1939, %v3649, %v3650
        %v3652 = vrot.slane %v3650, 4
        %v3653 = vrot.slane %v2792, 5
        %v3654 = vsel %vm1939, %v3652, %v3653
        %v3655 = vrot.slane %v3525, 5
        %v3656 = vrot.slane %v3655, 4
        %v3657 = vrot.slane %v2794, 5
        %v3658 = vsel %vm1939, %v3656, %v3657
        %v3659 = vrot.slane %v3657, 4
        %v3660 = vrot.slane %v2795, 5
        %v3661 = vsel %vm1939, %v3659, %v3660
        %v3662 = vrot.slane %v3526, 5
        %v3663 = vrot.slane %v3662, 4
        %v3664 = vrot.slane %v2797, 5
        %v3665 = vsel %vm1939, %v3663, %v3664
        %v3666 = vrot.slane %v3664, 4
        %v3667 = vrot.slane %v2798, 5
        %v3668 = vsel %vm1939, %v3666, %v3667
        %v3669 = vrot.slane %v3527, 5
        %v3670 = vrot.slane %v3669, 4
        %v3671 = vrot.slane %v2800, 5
        %v3672 = vsel %vm1939, %v3670, %v3671
        %v3673 = vrot.slane %v3671, 4
        %v3674 = vrot.slane %v2801, 5
        %v3675 = vsel %vm1939, %v3673, %v3674
        %v3676 = vrot.slane %v3528, 5
        %v3677 = vrot.slane %v3676, 4
        %v3678 = vrot.slane %v2803, 5
        %v3679 = vsel %vm1939, %v3677, %v3678
        %v3680 = vrot.slane %v3678, 4
        %v3681 = vrot.slane %v2804, 5
        %v3682 = vsel %vm1939, %v3680, %v3681
        %v3683 = vrot.slane %v3529, 5
        %v3684 = vrot.slane %v3683, 4
        %v3685 = vrot.slane %v2806, 5
        %v3686 = vsel %vm1939, %v3684, %v3685
        %v3687 = vrot.slane %v3685, 4
        %v3688 = vrot.slane %v2807, 5
        %v3689 = vsel %vm1939, %v3687, %v3688
        %s3690 = scalar_lea.vmem %s1, 160
        %v3691 = vld [vmem:[%s3690] sm:$0xf]
        %v3692 = vld [vmem:[%s3690 + $0x4] sm:$0xf]
        %v3693 = vld [vmem:[%s3690 + $0x8] sm:$0xf]
        %v3694 = vld [vmem:[%s3690 + $0xc] sm:$0xf]
        %v3695 = vld [vmem:[%s3690 + $0x10] sm:$0xf]
        %v3696 = vld [vmem:[%s3690 + $0x14] sm:$0xf]
        %v3697 = vld [vmem:[%s3690 + $0x18] sm:$0xf]
        %v3698 = vld [vmem:[%s3690 + $0x1c] sm:$0xf]
        %v3699 = vunpack.c.l.b16 %v3581
        %v3700 = vunpack.c.l.b16 %v3584
        %v3701 = vunpack.c.l.b16 %v3588
        %v3702 = vunpack.c.l.b16 %v3591
        %v3703 = vunpack.c.l.b16 %v3595
        %v3704 = vunpack.c.l.b16 %v3598
        %v3705 = vunpack.c.l.b16 %v3602
        %v3706 = vunpack.c.l.b16 %v3605
        %v3707 = vunpack.c.l.b16 %v3609
        %v3708 = vunpack.c.l.b16 %v3612
        %v3709 = vunpack.c.l.b16 %v3616
        %v3710 = vunpack.c.l.b16 %v3619
        %v3711 = vunpack.c.l.b16 %v3623
        %v3712 = vunpack.c.l.b16 %v3626
        %v3713 = vunpack.c.l.b16 %v3630
        %v3714 = vunpack.c.l.b16 %v3633
        %v3715 = vunpack.c.l.b16 %v3637
        %v3716 = vunpack.c.l.b16 %v3640
        %v3717 = vunpack.c.l.b16 %v3644
        %v3718 = vunpack.c.l.b16 %v3647
        %v3719 = vunpack.c.l.b16 %v3651
        %v3720 = vunpack.c.l.b16 %v3654
        %v3721 = vunpack.c.l.b16 %v3658
        %v3722 = vunpack.c.l.b16 %v3661
        %v3723 = vunpack.c.l.b16 %v3665
        %v3724 = vunpack.c.l.b16 %v3668
        %v3725 = vunpack.c.l.b16 %v3672
        %v3726 = vunpack.c.l.b16 %v3675
        %v3727 = vunpack.c.l.b16 %v3679
        %v3728 = vunpack.c.l.b16 %v3682
        %v3729 = vunpack.c.l.b16 %v3686
        %v3730 = vunpack.c.l.b16 %v3689
        %v3731 = vpack.c.b16 %v3700, %v3699
        %v3732 = vpack.c.b16 %v3702, %v3701
        %v3733 = vpack.c.b16 %v3704, %v3703
        %v3734 = vpack.c.b16 %v3706, %v3705
        %v3735 = vpack.c.b16 %v3708, %v3707
        %v3736 = vpack.c.b16 %v3710, %v3709
        %v3737 = vpack.c.b16 %v3712, %v3711
        %v3738 = vpack.c.b16 %v3714, %v3713
        %v3739 = vpack.c.b16 %v3716, %v3715
        %v3740 = vpack.c.b16 %v3718, %v3717
        %v3741 = vpack.c.b16 %v3720, %v3719
        %v3742 = vpack.c.b16 %v3722, %v3721
        %v3743 = vpack.c.b16 %v3724, %v3723
        %v3744 = vpack.c.b16 %v3726, %v3725
        %v3745 = vpack.c.b16 %v3728, %v3727
        %v3746 = vpack.c.b16 %v3730, %v3729
        %v3755 = vunpack.c.l.b16 %v3691
        %v3756 = vunpack.c.l.b16 %v3692
        %v3757 = vunpack.c.l.b16 %v3693
        %v3758 = vunpack.c.l.b16 %v3694
        %v3759 = vunpack.c.l.b16 %v3695
        %v3760 = vunpack.c.l.b16 %v3696
        %v3761 = vunpack.c.l.b16 %v3697
        %v3762 = vunpack.c.l.b16 %v3698
        %v3763 = vpack.c.b16 %v3756, %v3755
        %v3764 = vpack.c.b16 %v3758, %v3757
        %v3765 = vpack.c.b16 %v3760, %v3759
        %v3766 = vpack.c.b16 %v3762, %v3761
        %v3772 = vsel %vm1366, %v3731, 0
        %v3775 = vsel %vm1366, %v3732, 0
        %v3778 = vsel %vm1366, %v3733, 0
        %v3781 = vsel %vm1366, %v3734, 0
        %v3784 = vsel %vm1366, %v3735, 0
        %v3787 = vsel %vm1366, %v3736, 0
        %v3790 = vsel %vm1366, %v3737, 0
        %v3793 = vsel %vm1366, %v3738, 0
        %v3796 = vsel %vm1366, %v3739, 0
        %v3799 = vsel %vm1366, %v3740, 0
        %v3802 = vsel %vm1366, %v3741, 0
        %v3805 = vsel %vm1366, %v3742, 0
        %v3808 = vsel %vm1366, %v3743, 0
        %v3811 = vsel %vm1366, %v3744, 0
        %v3814 = vsel %vm1366, %v3745, 0
        %v3817 = vsel %vm1366, %v3746, 0
        %3819 = vmatprep.subr.bf16.mxu0 0
        %3820 = vmatpush1.bf16.msra.mxu0 %v3763
        %3821 = vmatprep.subr.bf16.mxu0 0
        %3822 = vmatpush1.bf16.msra.mxu0 %v3764
        %3823 = vmatprep.subr.bf16.mxu0 0
        %3824 = vmatpush1.bf16.msra.mxu0 %v3765
        %3825 = vmatprep.subr.bf16.mxu0 0
        %3826 = vmatpush1.bf16.msra.mxu0 %v3766
        %3827 = vmatprep.subr.bf16.mxu0 0
        %3828 = vmatpush1.bf16.msra.mxu0 0
        %3829 = vmatprep.subr.bf16.mxu0 0
        %3830 = vmatpush1.bf16.msra.mxu0 0
        %3831 = vmatprep.subr.bf16.mxu0 0
        %3832 = vmatpush1.bf16.msra.mxu0 0
        %3833 = vmatprep.subr.bf16.mxu0 0
        %3834 = vmatpush1.bf16.msra.mxu0 0
        %3835 = vmatprep.subr.bf16.mxu0 0
        %3836 = vmatpush1.bf16.msra.mxu0 0
        %3837 = vmatprep.subr.bf16.mxu0 0
        %3838 = vmatpush1.bf16.msra.mxu0 0
        %3839 = vmatprep.subr.bf16.mxu0 0
        %3840 = vmatpush1.bf16.msra.mxu0 0
        %3841 = vmatprep.subr.bf16.mxu0 0
        %3842 = vmatpush1.bf16.msra.mxu0 0
        %3843 = vmatprep.subr.bf16.mxu0 0
        %3844 = vmatpush1.bf16.msra.mxu0 0
        %3845 = vmatprep.subr.bf16.mxu0 0
        %3846 = vmatpush1.bf16.msra.mxu0 0
        %3847 = vmatprep.subr.bf16.mxu0 0
        %3848 = vmatpush1.bf16.msra.mxu0 0
        %3849 = vmatprep.subr.bf16.mxu0 0
        %3850 = vmatpush1.bf16.msra.mxu0 0
        %3851 = vmatprep.mubr.bf16.mxu0 0
        %3852 = vmatmul.mubr.bf16.gmra.mrb[0].mxu0 %v3772
        %v3853 = vpop.f32.mrb[0].mxu0
        %v3854 = vadd.f32 0.0, %v3853
        %v3855 = vpop.f32.mrb[0].mxu0
        %v3856 = vpop.f32.mrb[0].mxu0
        %v3857 = vadd.f32 0.0, %v3856
        %v3858 = vpop.f32.mrb[0].mxu0
        %3859 = vmatprep.mubr.bf16.mxu0 0
        %3860 = vmatmul.mubr.bf16.gmra.mrb[0].mxu0 %v3775
        %v3861 = vpop.f32.mrb[0].mxu0
        %v3862 = vadd.f32 0.0, %v3861
        %v3863 = vpop.f32.mrb[0].mxu0
        %v3864 = vpop.f32.mrb[0].mxu0
        %v3865 = vadd.f32 0.0, %v3864
        %v3866 = vpop.f32.mrb[0].mxu0
        %3867 = vmatprep.mubr.bf16.mxu0 0
        %3868 = vmatmul.mubr.bf16.gmra.mrb[0].mxu0 %v3778
        %v3869 = vpop.f32.mrb[0].mxu0
        %v3870 = vadd.f32 0.0, %v3869
        %v3871 = vpop.f32.mrb[0].mxu0
        %v3872 = vpop.f32.mrb[0].mxu0
        %v3873 = vadd.f32 0.0, %v3872
        %v3874 = vpop.f32.mrb[0].mxu0
        %3875 = vmatprep.mubr.bf16.mxu0 0
        %3876 = vmatmul.mubr.bf16.gmra.mrb[0].mxu0 %v3781
        %v3877 = vpop.f32.mrb[0].mxu0
        %v3878 = vadd.f32 0.0, %v3877
        %v3879 = vpop.f32.mrb[0].mxu0
        %v3880 = vpop.f32.mrb[0].mxu0
        %v3881 = vadd.f32 0.0, %v3880
        %v3882 = vpop.f32.mrb[0].mxu0
        %3883 = vmatprep.mubr.bf16.mxu0 0
        %3884 = vmatmul.mubr.bf16.gmra.mrb[0].mxu0 %v3784
        %v3885 = vpop.f32.mrb[0].mxu0
        %v3886 = vadd.f32 0.0, %v3885
        %v3887 = vpop.f32.mrb[0].mxu0
        %v3888 = vpop.f32.mrb[0].mxu0
        %v3889 = vadd.f32 0.0, %v3888
        %v3890 = vpop.f32.mrb[0].mxu0
        %3891 = vmatprep.mubr.bf16.mxu0 0
        %3892 = vmatmul.mubr.bf16.gmra.mrb[0].mxu0 %v3787
        %v3893 = vpop.f32.mrb[0].mxu0
        %v3894 = vadd.f32 0.0, %v3893
        %v3895 = vpop.f32.mrb[0].mxu0
        %v3896 = vpop.f32.mrb[0].mxu0
        %v3897 = vadd.f32 0.0, %v3896
        %v3898 = vpop.f32.mrb[0].mxu0
        %3899 = vmatprep.mubr.bf16.mxu0 0
        %3900 = vmatmul.mubr.bf16.gmra.mrb[0].mxu0 %v3790
        %v3901 = vpop.f32.mrb[0].mxu0
        %v3902 = vadd.f32 0.0, %v3901
        %v3903 = vpop.f32.mrb[0].mxu0
        %v3904 = vpop.f32.mrb[0].mxu0
        %v3905 = vadd.f32 0.0, %v3904
        %v3906 = vpop.f32.mrb[0].mxu0
        %3907 = vmatprep.mubr.bf16.mxu0 0
        %3908 = vmatmul.mubr.bf16.gmra.mrb[0].mxu0 %v3793
        %v3909 = vpop.f32.mrb[0].mxu0
        %v3910 = vadd.f32 0.0, %v3909
        %v3911 = vpop.f32.mrb[0].mxu0
        %v3912 = vpop.f32.mrb[0].mxu0
        %v3913 = vadd.f32 0.0, %v3912
        %v3914 = vpop.f32.mrb[0].mxu0
        %3915 = vmatprep.mubr.bf16.mxu0 0
        %3916 = vmatmul.mubr.bf16.gmra.mrb[0].mxu0 %v3796
        %v3917 = vpop.f32.mrb[0].mxu0
        %v3918 = vadd.f32 0.0, %v3917
        %v3919 = vpop.f32.mrb[0].mxu0
        %v3920 = vpop.f32.mrb[0].mxu0
        %v3921 = vadd.f32 0.0, %v3920
        %v3922 = vpop.f32.mrb[0].mxu0
        %3923 = vmatprep.mubr.bf16.mxu0 0
        %3924 = vmatmul.mubr.bf16.gmra.mrb[0].mxu0 %v3799
        %v3925 = vpop.f32.mrb[0].mxu0
        %v3926 = vadd.f32 0.0, %v3925
        %v3927 = vpop.f32.mrb[0].mxu0
        %v3928 = vpop.f32.mrb[0].mxu0
        %v3929 = vadd.f32 0.0, %v3928
        %v3930 = vpop.f32.mrb[0].mxu0
        %3931 = vmatprep.mubr.bf16.mxu0 0
        %3932 = vmatmul.mubr.bf16.gmra.mrb[0].mxu0 %v3802
        %v3933 = vpop.f32.mrb[0].mxu0
        %v3934 = vadd.f32 0.0, %v3933
        %v3935 = vpop.f32.mrb[0].mxu0
        %v3936 = vpop.f32.mrb[0].mxu0
        %v3937 = vadd.f32 0.0, %v3936
        %v3938 = vpop.f32.mrb[0].mxu0
        %3939 = vmatprep.mubr.bf16.mxu0 0
        %3940 = vmatmul.mubr.bf16.gmra.mrb[0].mxu0 %v3805
        %v3941 = vpop.f32.mrb[0].mxu0
        %v3942 = vadd.f32 0.0, %v3941
        %v3943 = vpop.f32.mrb[0].mxu0
        %v3944 = vpop.f32.mrb[0].mxu0
        %v3945 = vadd.f32 0.0, %v3944
        %v3946 = vpop.f32.mrb[0].mxu0
        %3947 = vmatprep.mubr.bf16.mxu0 0
        %3948 = vmatmul.mubr.bf16.gmra.mrb[0].mxu0 %v3808
        %v3949 = vpop.f32.mrb[0].mxu0
        %v3950 = vadd.f32 0.0, %v3949
        %v3951 = vpop.f32.mrb[0].mxu0
        %v3952 = vpop.f32.mrb[0].mxu0
        %v3953 = vadd.f32 0.0, %v3952
        %v3954 = vpop.f32.mrb[0].mxu0
        %3955 = vmatprep.mubr.bf16.mxu0 0
        %3956 = vmatmul.mubr.bf16.gmra.mrb[0].mxu0 %v3811
        %v3957 = vpop.f32.mrb[0].mxu0
        %v3958 = vadd.f32 0.0, %v3957
        %v3959 = vpop.f32.mrb[0].mxu0
        %v3960 = vpop.f32.mrb[0].mxu0
        %v3961 = vadd.f32 0.0, %v3960
        %v3962 = vpop.f32.mrb[0].mxu0
        %3963 = vmatprep.mubr.bf16.mxu0 0
        %3964 = vmatmul.mubr.bf16.gmra.mrb[0].mxu0 %v3814
        %v3965 = vpop.f32.mrb[0].mxu0
        %v3966 = vadd.f32 0.0, %v3965
        %v3967 = vpop.f32.mrb[0].mxu0
        %v3968 = vpop.f32.mrb[0].mxu0
        %v3969 = vadd.f32 0.0, %v3968
        %v3970 = vpop.f32.mrb[0].mxu0
        %3971 = vmatprep.mubr.bf16.mxu0 0
        %3972 = vmatmul.mubr.bf16.gmra.mrb[0].mxu0 %v3817
        %v3973 = vpop.f32.mrb[0].mxu0
        %v3974 = vadd.f32 0.0, %v3973
        %v3975 = vpop.f32.mrb[0].mxu0
        %v3976 = vpop.f32.mrb[0].mxu0
        %v3977 = vadd.f32 0.0, %v3976
        %v3978 = vpop.f32.mrb[0].mxu0
        %3979 = vdwg.mxu0
        %v3980 = vadd.f32 %v3482, %v3854
        %v3981 = vadd.f32 %v3483, %v3857
        %v3982 = vadd.f32 %v3484, %v3862
        %v3983 = vadd.f32 %v3485, %v3865
        %v3984 = vadd.f32 %v3486, %v3870
        %v3985 = vadd.f32 %v3487, %v3873
        %v3986 = vadd.f32 %v3488, %v3878
        %v3987 = vadd.f32 %v3489, %v3881
        %v3988 = vadd.f32 %v3490, %v3886
        %v3989 = vadd.f32 %v3491, %v3889
        %v3990 = vadd.f32 %v3492, %v3894
        %v3991 = vadd.f32 %v3493, %v3897
        %v3992 = vadd.f32 %v3494, %v3902
        %v3993 = vadd.f32 %v3495, %v3905
        %v3994 = vadd.f32 %v3496, %v3910
        %v3995 = vadd.f32 %v3497, %v3913
        %v3996 = vadd.f32 %v3498, %v3918
        %v3997 = vadd.f32 %v3499, %v3921
        %v3998 = vadd.f32 %v3500, %v3926
        %v3999 = vadd.f32 %v3501, %v3929
        %v4000 = vadd.f32 %v3502, %v3934
        %v4001 = vadd.f32 %v3503, %v3937
        %v4002 = vadd.f32 %v3504, %v3942
        %v4003 = vadd.f32 %v3505, %v3945
        %v4004 = vadd.f32 %v3506, %v3950
        %v4005 = vadd.f32 %v3507, %v3953
        %v4006 = vadd.f32 %v3508, %v3958
        %v4007 = vadd.f32 %v3509, %v3961
        %v4008 = vadd.f32 %v3510, %v3966
        %v4009 = vadd.f32 %v3511, %v3969
        %v4010 = vadd.f32 %v3512, %v3974
        %v4011 = vadd.f32 %v3513, %v3977
        %s4012 = scalar_lea.vmem [#allocation2], 24
        %v4013 = vld [vmem:[%s4012] sm:$0xf]
        %v4014 = vld [vmem:[%s4012 + $0x4] sm:$0xf]
        %v4015 = vld [vmem:[%s4012 + $0xc] sm:$0xf]
        %v4016 = vld [vmem:[%s4012 + $0x10] sm:$0xf]
        %v4017 = vld [vmem:[%s4012 + $0x18] sm:$0xf]
        %v4018 = vld [vmem:[%s4012 + $0x1c] sm:$0xf]
        %v4019 = vld [vmem:[%s4012 + $0x24] sm:$0xf]
        %v4020 = vld [vmem:[%s4012 + $0x28] sm:$0xf]
        %v4021 = vld [vmem:[%s4012 + $0x30] sm:$0xf]
        %v4022 = vld [vmem:[%s4012 + $0x34] sm:$0xf]
        %v4023 = vld [vmem:[%s4012 + $0x3c] sm:$0xf]
        %v4024 = vld [vmem:[%s4012 + $0x40] sm:$0xf]
        %v4025 = vld [vmem:[%s4012 + $0x48] sm:$0xf]
        %v4026 = vld [vmem:[%s4012 + $0x4c] sm:$0xf]
        %v4027 = vld [vmem:[%s4012 + $0x54] sm:$0xf]
        %v4028 = vld [vmem:[%s4012 + $0x58] sm:$0xf]
        %v4029 = vld [vmem:[%s4012 + $0x60] sm:$0xf]
        %v4030 = vld [vmem:[%s4012 + $0x64] sm:$0xf]
        %v4031 = vld [vmem:[%s4012 + $0x6c] sm:$0xf]
        %v4032 = vld [vmem:[%s4012 + $0x70] sm:$0xf]
        %v4033 = vld [vmem:[%s4012 + $0x78] sm:$0xf]
        %v4034 = vld [vmem:[%s4012 + $0x7c] sm:$0xf]
        %v4035 = vld [vmem:[%s4012 + $0x84] sm:$0xf]
        %v4036 = vld [vmem:[%s4012 + $0x88] sm:$0xf]
        %v4037 = vld [vmem:[%s4012 + $0x90] sm:$0xf]
        %v4038 = vld [vmem:[%s4012 + $0x94] sm:$0xf]
        %v4039 = vld [vmem:[%s4012 + $0x9c] sm:$0xf]
        %v4040 = vld [vmem:[%s4012 + $0xa0] sm:$0xf]
        %v4041 = vld [vmem:[%s4012 + $0xa8] sm:$0xf]
        %v4042 = vld [vmem:[%s4012 + $0xac] sm:$0xf]
        %v4043 = vld [vmem:[%s4012 + $0xb4] sm:$0xf]
        %v4044 = vld [vmem:[%s4012 + $0xb8] sm:$0xf]
        %s4045 = scalar_lea.vmem %s1, 192
        %v4046 = vld [vmem:[%s4045] sm:$0xf]
        %v4047 = vld [vmem:[%s4045 + $0x4] sm:$0xf]
        %v4048 = vld [vmem:[%s4045 + $0x8] sm:$0xf]
        %v4049 = vld [vmem:[%s4045 + $0xc] sm:$0xf]
        %v4050 = vld [vmem:[%s4045 + $0x10] sm:$0xf]
        %v4051 = vld [vmem:[%s4045 + $0x14] sm:$0xf]
        %v4052 = vld [vmem:[%s4045 + $0x18] sm:$0xf]
        %v4053 = vld [vmem:[%s4045 + $0x1c] sm:$0xf]
        %v4086 = vunpack.c.l.b16 %v4013
        %v4087 = vunpack.c.l.b16 %v4014
        %v4088 = vunpack.c.l.b16 %v4015
        %v4089 = vunpack.c.l.b16 %v4016
        %v4090 = vunpack.c.l.b16 %v4017
        %v4091 = vunpack.c.l.b16 %v4018
        %v4092 = vunpack.c.l.b16 %v4019
        %v4093 = vunpack.c.l.b16 %v4020
        %v4094 = vunpack.c.l.b16 %v4021
        %v4095 = vunpack.c.l.b16 %v4022
        %v4096 = vunpack.c.l.b16 %v4023
        %v4097 = vunpack.c.l.b16 %v4024
        %v4098 = vunpack.c.l.b16 %v4025
        %v4099 = vunpack.c.l.b16 %v4026
        %v4100 = vunpack.c.l.b16 %v4027
        %v4101 = vunpack.c.l.b16 %v4028
        %v4102 = vunpack.c.l.b16 %v4029
        %v4103 = vunpack.c.l.b16 %v4030
        %v4104 = vunpack.c.l.b16 %v4031
        %v4105 = vunpack.c.l.b16 %v4032
        %v4106 = vunpack.c.l.b16 %v4033
        %v4107 = vunpack.c.l.b16 %v4034
        %v4108 = vunpack.c.l.b16 %v4035
        %v4109 = vunpack.c.l.b16 %v4036
        %v4110 = vunpack.c.l.b16 %v4037
        %v4111 = vunpack.c.l.b16 %v4038
        %v4112 = vunpack.c.l.b16 %v4039
        %v4113 = vunpack.c.l.b16 %v4040
        %v4114 = vunpack.c.l.b16 %v4041
        %v4115 = vunpack.c.l.b16 %v4042
        %v4116 = vunpack.c.l.b16 %v4043
        %v4117 = vunpack.c.l.b16 %v4044
        %v4118 = vpack.c.b16 %v4087, %v4086
        %v4119 = vpack.c.b16 %v4089, %v4088
        %v4120 = vpack.c.b16 %v4091, %v4090
        %v4121 = vpack.c.b16 %v4093, %v4092
        %v4122 = vpack.c.b16 %v4095, %v4094
        %v4123 = vpack.c.b16 %v4097, %v4096
        %v4124 = vpack.c.b16 %v4099, %v4098
        %v4125 = vpack.c.b16 %v4101, %v4100
        %v4126 = vpack.c.b16 %v4103, %v4102
        %v4127 = vpack.c.b16 %v4105, %v4104
        %v4128 = vpack.c.b16 %v4107, %v4106
        %v4129 = vpack.c.b16 %v4109, %v4108
        %v4130 = vpack.c.b16 %v4111, %v4110
        %v4131 = vpack.c.b16 %v4113, %v4112
        %v4132 = vpack.c.b16 %v4115, %v4114
        %v4133 = vpack.c.b16 %v4117, %v4116
        %v4142 = vunpack.c.l.b16 %v4046
        %v4143 = vunpack.c.l.b16 %v4047
        %v4144 = vunpack.c.l.b16 %v4048
        %v4145 = vunpack.c.l.b16 %v4049
        %v4146 = vunpack.c.l.b16 %v4050
        %v4147 = vunpack.c.l.b16 %v4051
        %v4148 = vunpack.c.l.b16 %v4052
        %v4149 = vunpack.c.l.b16 %v4053
        %v4150 = vpack.c.b16 %v4143, %v4142
        %v4151 = vpack.c.b16 %v4145, %v4144
        %v4152 = vpack.c.b16 %v4147, %v4146
        %v4153 = vpack.c.b16 %v4149, %v4148
        %v4159 = vsel %vm1366, %v4118, 0
        %v4162 = vsel %vm1366, %v4119, 0
        %v4165 = vsel %vm1366, %v4120, 0
        %v4168 = vsel %vm1366, %v4121, 0
        %v4171 = vsel %vm1366, %v4122, 0
        %v4174 = vsel %vm1366, %v4123, 0
        %v4177 = vsel %vm1366, %v4124, 0
        %v4180 = vsel %vm1366, %v4125, 0
        %v4183 = vsel %vm1366, %v4126, 0
        %v4186 = vsel %vm1366, %v4127, 0
        %v4189 = vsel %vm1366, %v4128, 0
        %v4192 = vsel %vm1366, %v4129, 0
        %v4195 = vsel %vm1366, %v4130, 0
        %v4198 = vsel %vm1366, %v4131, 0
        %v4201 = vsel %vm1366, %v4132, 0
        %v4204 = vsel %vm1366, %v4133, 0
        %4206 = vmatprep.subr.bf16.mxu0 0
        %4207 = vmatpush1.bf16.msra.mxu0 %v4150
        %4208 = vmatprep.subr.bf16.mxu0 0
        %4209 = vmatpush1.bf16.msra.mxu0 %v4151
        %4210 = vmatprep.subr.bf16.mxu0 0
        %4211 = vmatpush1.bf16.msra.mxu0 %v4152
        %4212 = vmatprep.subr.bf16.mxu0 0
        %4213 = vmatpush1.bf16.msra.mxu0 %v4153
        %4214 = vmatprep.subr.bf16.mxu0 0
        %4215 = vmatpush1.bf16.msra.mxu0 0
        %4216 = vmatprep.subr.bf16.mxu0 0
        %4217 = vmatpush1.bf16.msra.mxu0 0
        %4218 = vmatprep.subr.bf16.mxu0 0
        %4219 = vmatpush1.bf16.msra.mxu0 0
        %4220 = vmatprep.subr.bf16.mxu0 0
        %4221 = vmatpush1.bf16.msra.mxu0 0
        %4222 = vmatprep.subr.bf16.mxu0 0
        %4223 = vmatpush1.bf16.msra.mxu0 0
        %4224 = vmatprep.subr.bf16.mxu0 0
        %4225 = vmatpush1.bf16.msra.mxu0 0
        %4226 = vmatprep.subr.bf16.mxu0 0
        %4227 = vmatpush1.bf16.msra.mxu0 0
        %4228 = vmatprep.subr.bf16.mxu0 0
        %4229 = vmatpush1.bf16.msra.mxu0 0
        %4230 = vmatprep.subr.bf16.mxu0 0
        %4231 = vmatpush1.bf16.msra.mxu0 0
        %4232 = vmatprep.subr.bf16.mxu0 0
        %4233 = vmatpush1.bf16.msra.mxu0 0
        %4234 = vmatprep.subr.bf16.mxu0 0
        %4235 = vmatpush1.bf16.msra.mxu0 0
        %4236 = vmatprep.subr.bf16.mxu0 0
        %4237 = vmatpush1.bf16.msra.mxu0 0
        %4238 = vmatprep.mubr.bf16.mxu0 0
        %4239 = vmatmul.mubr.bf16.gmra.mrb[0].mxu0 %v4159
        %v4240 = vpop.f32.mrb[0].mxu0
        %v4241 = vadd.f32 0.0, %v4240
        %v4242 = vpop.f32.mrb[0].mxu0
        %v4243 = vpop.f32.mrb[0].mxu0
        %v4244 = vadd.f32 0.0, %v4243
        %v4245 = vpop.f32.mrb[0].mxu0
        %4246 = vmatprep.mubr.bf16.mxu0 0
        %4247 = vmatmul.mubr.bf16.gmra.mrb[0].mxu0 %v4162
        %v4248 = vpop.f32.mrb[0].mxu0
        %v4249 = vadd.f32 0.0, %v4248
        %v4250 = vpop.f32.mrb[0].mxu0
        %v4251 = vpop.f32.mrb[0].mxu0
        %v4252 = vadd.f32 0.0, %v4251
        %v4253 = vpop.f32.mrb[0].mxu0
        %4254 = vmatprep.mubr.bf16.mxu0 0
        %4255 = vmatmul.mubr.bf16.gmra.mrb[0].mxu0 %v4165
        %v4256 = vpop.f32.mrb[0].mxu0
        %v4257 = vadd.f32 0.0, %v4256
        %v4258 = vpop.f32.mrb[0].mxu0
        %v4259 = vpop.f32.mrb[0].mxu0
        %v4260 = vadd.f32 0.0, %v4259
        %v4261 = vpop.f32.mrb[0].mxu0
        %4262 = vmatprep.mubr.bf16.mxu0 0
        %4263 = vmatmul.mubr.bf16.gmra.mrb[0].mxu0 %v4168
        %v4264 = vpop.f32.mrb[0].mxu0
        %v4265 = vadd.f32 0.0, %v4264
        %v4266 = vpop.f32.mrb[0].mxu0
        %v4267 = vpop.f32.mrb[0].mxu0
        %v4268 = vadd.f32 0.0, %v4267
        %v4269 = vpop.f32.mrb[0].mxu0
        %4270 = vmatprep.mubr.bf16.mxu0 0
        %4271 = vmatmul.mubr.bf16.gmra.mrb[0].mxu0 %v4171
        %v4272 = vpop.f32.mrb[0].mxu0
        %v4273 = vadd.f32 0.0, %v4272
        %v4274 = vpop.f32.mrb[0].mxu0
        %v4275 = vpop.f32.mrb[0].mxu0
        %v4276 = vadd.f32 0.0, %v4275
        %v4277 = vpop.f32.mrb[0].mxu0
        %4278 = vmatprep.mubr.bf16.mxu0 0
        %4279 = vmatmul.mubr.bf16.gmra.mrb[0].mxu0 %v4174
        %v4280 = vpop.f32.mrb[0].mxu0
        %v4281 = vadd.f32 0.0, %v4280
        %v4282 = vpop.f32.mrb[0].mxu0
        %v4283 = vpop.f32.mrb[0].mxu0
        %v4284 = vadd.f32 0.0, %v4283
        %v4285 = vpop.f32.mrb[0].mxu0
        %4286 = vmatprep.mubr.bf16.mxu0 0
        %4287 = vmatmul.mubr.bf16.gmra.mrb[0].mxu0 %v4177
        %v4288 = vpop.f32.mrb[0].mxu0
        %v4289 = vadd.f32 0.0, %v4288
        %v4290 = vpop.f32.mrb[0].mxu0
        %v4291 = vpop.f32.mrb[0].mxu0
        %v4292 = vadd.f32 0.0, %v4291
        %v4293 = vpop.f32.mrb[0].mxu0
        %4294 = vmatprep.mubr.bf16.mxu0 0
        %4295 = vmatmul.mubr.bf16.gmra.mrb[0].mxu0 %v4180
        %v4296 = vpop.f32.mrb[0].mxu0
        %v4297 = vadd.f32 0.0, %v4296
        %v4298 = vpop.f32.mrb[0].mxu0
        %v4299 = vpop.f32.mrb[0].mxu0
        %v4300 = vadd.f32 0.0, %v4299
        %v4301 = vpop.f32.mrb[0].mxu0
        %4302 = vmatprep.mubr.bf16.mxu0 0
        %4303 = vmatmul.mubr.bf16.gmra.mrb[0].mxu0 %v4183
        %v4304 = vpop.f32.mrb[0].mxu0
        %v4305 = vadd.f32 0.0, %v4304
        %v4306 = vpop.f32.mrb[0].mxu0
        %v4307 = vpop.f32.mrb[0].mxu0
        %v4308 = vadd.f32 0.0, %v4307
        %v4309 = vpop.f32.mrb[0].mxu0
        %4310 = vmatprep.mubr.bf16.mxu0 0
        %4311 = vmatmul.mubr.bf16.gmra.mrb[0].mxu0 %v4186
        %v4312 = vpop.f32.mrb[0].mxu0
        %v4313 = vadd.f32 0.0, %v4312
        %v4314 = vpop.f32.mrb[0].mxu0
        %v4315 = vpop.f32.mrb[0].mxu0
        %v4316 = vadd.f32 0.0, %v4315
        %v4317 = vpop.f32.mrb[0].mxu0
        %4318 = vmatprep.mubr.bf16.mxu0 0
        %4319 = vmatmul.mubr.bf16.gmra.mrb[0].mxu0 %v4189
        %v4320 = vpop.f32.mrb[0].mxu0
        %v4321 = vadd.f32 0.0, %v4320
        %v4322 = vpop.f32.mrb[0].mxu0
        %v4323 = vpop.f32.mrb[0].mxu0
        %v4324 = vadd.f32 0.0, %v4323
        %v4325 = vpop.f32.mrb[0].mxu0
        %4326 = vmatprep.mubr.bf16.mxu0 0
        %4327 = vmatmul.mubr.bf16.gmra.mrb[0].mxu0 %v4192
        %v4328 = vpop.f32.mrb[0].mxu0
        %v4329 = vadd.f32 0.0, %v4328
        %v4330 = vpop.f32.mrb[0].mxu0
        %v4331 = vpop.f32.mrb[0].mxu0
        %v4332 = vadd.f32 0.0, %v4331
        %v4333 = vpop.f32.mrb[0].mxu0
        %4334 = vmatprep.mubr.bf16.mxu0 0
        %4335 = vmatmul.mubr.bf16.gmra.mrb[0].mxu0 %v4195
        %v4336 = vpop.f32.mrb[0].mxu0
        %v4337 = vadd.f32 0.0, %v4336
        %v4338 = vpop.f32.mrb[0].mxu0
        %v4339 = vpop.f32.mrb[0].mxu0
        %v4340 = vadd.f32 0.0, %v4339
        %v4341 = vpop.f32.mrb[0].mxu0
        %4342 = vmatprep.mubr.bf16.mxu0 0
        %4343 = vmatmul.mubr.bf16.gmra.mrb[0].mxu0 %v4198
        %v4344 = vpop.f32.mrb[0].mxu0
        %v4345 = vadd.f32 0.0, %v4344
        %v4346 = vpop.f32.mrb[0].mxu0
        %v4347 = vpop.f32.mrb[0].mxu0
        %v4348 = vadd.f32 0.0, %v4347
        %v4349 = vpop.f32.mrb[0].mxu0
        %4350 = vmatprep.mubr.bf16.mxu0 0
        %4351 = vmatmul.mubr.bf16.gmra.mrb[0].mxu0 %v4201
        %v4352 = vpop.f32.mrb[0].mxu0
        %v4353 = vadd.f32 0.0, %v4352
        %v4354 = vpop.f32.mrb[0].mxu0
        %v4355 = vpop.f32.mrb[0].mxu0
        %v4356 = vadd.f32 0.0, %v4355
        %v4357 = vpop.f32.mrb[0].mxu0
        %4358 = vmatprep.mubr.bf16.mxu0 0
        %4359 = vmatmul.mubr.bf16.gmra.mrb[0].mxu0 %v4204
        %v4360 = vpop.f32.mrb[0].mxu0
        %v4361 = vadd.f32 0.0, %v4360
        %v4362 = vpop.f32.mrb[0].mxu0
        %v4363 = vpop.f32.mrb[0].mxu0
        %v4364 = vadd.f32 0.0, %v4363
        %v4365 = vpop.f32.mrb[0].mxu0
        %4366 = vdwg.mxu0
        %v4367 = vadd.f32 %v3980, %v4241
        %v4368 = vadd.f32 %v3981, %v4244
        %v4369 = vadd.f32 %v3982, %v4249
        %v4370 = vadd.f32 %v3983, %v4252
        %v4371 = vadd.f32 %v3984, %v4257
        %v4372 = vadd.f32 %v3985, %v4260
        %v4373 = vadd.f32 %v3986, %v4265
        %v4374 = vadd.f32 %v3987, %v4268
        %v4375 = vadd.f32 %v3988, %v4273
        %v4376 = vadd.f32 %v3989, %v4276
        %v4377 = vadd.f32 %v3990, %v4281
        %v4378 = vadd.f32 %v3991, %v4284
        %v4379 = vadd.f32 %v3992, %v4289
        %v4380 = vadd.f32 %v3993, %v4292
        %v4381 = vadd.f32 %v3994, %v4297
        %v4382 = vadd.f32 %v3995, %v4300
        %v4383 = vadd.f32 %v3996, %v4305
        %v4384 = vadd.f32 %v3997, %v4308
        %v4385 = vadd.f32 %v3998, %v4313
        %v4386 = vadd.f32 %v3999, %v4316
        %v4387 = vadd.f32 %v4000, %v4321
        %v4388 = vadd.f32 %v4001, %v4324
        %v4389 = vadd.f32 %v4002, %v4329
        %v4390 = vadd.f32 %v4003, %v4332
        %v4391 = vadd.f32 %v4004, %v4337
        %v4392 = vadd.f32 %v4005, %v4340
        %v4393 = vadd.f32 %v4006, %v4345
        %v4394 = vadd.f32 %v4007, %v4348
        %v4395 = vadd.f32 %v4008, %v4353
        %v4396 = vadd.f32 %v4009, %v4356
        %v4397 = vadd.f32 %v4010, %v4361
        %v4398 = vadd.f32 %v4011, %v4364
        %v4399 = vld [vmem:[%s4012] sm:$0xf]
        %v4400 = vld [vmem:[%s4012 + $0x4] sm:$0xf]
        %v4401 = vld [vmem:[%s4012 + $0x8] sm:$0x1]
        %v4402 = vld [vmem:[%s4012 + $0xc] sm:$0xf]
        %v4403 = vld [vmem:[%s4012 + $0x10] sm:$0xf]
        %v4404 = vld [vmem:[%s4012 + $0x14] sm:$0x1]
        %v4405 = vld [vmem:[%s4012 + $0x18] sm:$0xf]
        %v4406 = vld [vmem:[%s4012 + $0x1c] sm:$0xf]
        %v4407 = vld [vmem:[%s4012 + $0x20] sm:$0x1]
        %v4408 = vld [vmem:[%s4012 + $0x24] sm:$0xf]
        %v4409 = vld [vmem:[%s4012 + $0x28] sm:$0xf]
        %v4410 = vld [vmem:[%s4012 + $0x2c] sm:$0x1]
        %v4411 = vld [vmem:[%s4012 + $0x30] sm:$0xf]
        %v4412 = vld [vmem:[%s4012 + $0x34] sm:$0xf]
        %v4413 = vld [vmem:[%s4012 + $0x38] sm:$0x1]
        %v4414 = vld [vmem:[%s4012 + $0x3c] sm:$0xf]
        %v4415 = vld [vmem:[%s4012 + $0x40] sm:$0xf]
        %v4416 = vld [vmem:[%s4012 + $0x44] sm:$0x1]
        %v4417 = vld [vmem:[%s4012 + $0x48] sm:$0xf]
        %v4418 = vld [vmem:[%s4012 + $0x4c] sm:$0xf]
        %v4419 = vld [vmem:[%s4012 + $0x50] sm:$0x1]
        %v4420 = vld [vmem:[%s4012 + $0x54] sm:$0xf]
        %v4421 = vld [vmem:[%s4012 + $0x58] sm:$0xf]
        %v4422 = vld [vmem:[%s4012 + $0x5c] sm:$0x1]
        %v4423 = vld [vmem:[%s4012 + $0x60] sm:$0xf]
        %v4424 = vld [vmem:[%s4012 + $0x64] sm:$0xf]
        %v4425 = vld [vmem:[%s4012 + $0x68] sm:$0x1]
        %v4426 = vld [vmem:[%s4012 + $0x6c] sm:$0xf]
        %v4427 = vld [vmem:[%s4012 + $0x70] sm:$0xf]
        %v4428 = vld [vmem:[%s4012 + $0x74] sm:$0x1]
        %v4429 = vld [vmem:[%s4012 + $0x78] sm:$0xf]
        %v4430 = vld [vmem:[%s4012 + $0x7c] sm:$0xf]
        %v4431 = vld [vmem:[%s4012 + $0x80] sm:$0x1]
        %v4432 = vld [vmem:[%s4012 + $0x84] sm:$0xf]
        %v4433 = vld [vmem:[%s4012 + $0x88] sm:$0xf]
        %v4434 = vld [vmem:[%s4012 + $0x8c] sm:$0x1]
        %v4435 = vld [vmem:[%s4012 + $0x90] sm:$0xf]
        %v4436 = vld [vmem:[%s4012 + $0x94] sm:$0xf]
        %v4437 = vld [vmem:[%s4012 + $0x98] sm:$0x1]
        %v4438 = vld [vmem:[%s4012 + $0x9c] sm:$0xf]
        %v4439 = vld [vmem:[%s4012 + $0xa0] sm:$0xf]
        %v4440 = vld [vmem:[%s4012 + $0xa4] sm:$0x1]
        %v4441 = vld [vmem:[%s4012 + $0xa8] sm:$0xf]
        %v4442 = vld [vmem:[%s4012 + $0xac] sm:$0xf]
        %v4443 = vld [vmem:[%s4012 + $0xb0] sm:$0x1]
        %v4444 = vld [vmem:[%s4012 + $0xb4] sm:$0xf]
        %v4445 = vld [vmem:[%s4012 + $0xb8] sm:$0xf]
        %v4446 = vld [vmem:[%s4012 + $0xbc] sm:$0x1]
        %v4448 = vshrl.u32 %v4399, 16
        %v4450 = vrot.slane %v4448, 4
        %v4451 = vshll.u32 %v4399, 16
        %v4453 = vrot.slane %v4451, 5
        %v4454 = vor.u32 %v4450, %v4453
        %v4455 = vrot.slane %v4454, 4
        %v4457 = vshll.u32 %v4400, 16
        %v4459 = vrot.slane %v4457, 5
        %v4460 = vsel %vm900, %v4455, %v4459
        %v4461 = vshrl.u32 %v4400, 16
        %v4463 = vrot.slane %v4461, 4
        %v4464 = vor.u32 %v4463, %v4459
        %v4465 = vrot.slane %v4464, 4
        %v4467 = vshll.u32 %v4401, 16
        %v4469 = vrot.slane %v4467, 5
        %v4470 = vsel %vm900, %v4465, %v4469
        %v4472 = vshrl.u32 %v4402, 16
        %v4474 = vrot.slane %v4472, 4
        %v4475 = vshll.u32 %v4402, 16
        %v4477 = vrot.slane %v4475, 5
        %v4478 = vor.u32 %v4474, %v4477
        %v4479 = vrot.slane %v4478, 4
        %v4481 = vshll.u32 %v4403, 16
        %v4483 = vrot.slane %v4481, 5
        %v4484 = vsel %vm900, %v4479, %v4483
        %v4485 = vshrl.u32 %v4403, 16
        %v4487 = vrot.slane %v4485, 4
        %v4488 = vor.u32 %v4487, %v4483
        %v4489 = vrot.slane %v4488, 4
        %v4491 = vshll.u32 %v4404, 16
        %v4493 = vrot.slane %v4491, 5
        %v4494 = vsel %vm900, %v4489, %v4493
        %v4496 = vshrl.u32 %v4405, 16
        %v4498 = vrot.slane %v4496, 4
        %v4499 = vshll.u32 %v4405, 16
        %v4501 = vrot.slane %v4499, 5
        %v4502 = vor.u32 %v4498, %v4501
        %v4503 = vrot.slane %v4502, 4
        %v4505 = vshll.u32 %v4406, 16
        %v4507 = vrot.slane %v4505, 5
        %v4508 = vsel %vm900, %v4503, %v4507
        %v4509 = vshrl.u32 %v4406, 16
        %v4511 = vrot.slane %v4509, 4
        %v4512 = vor.u32 %v4511, %v4507
        %v4513 = vrot.slane %v4512, 4
        %v4515 = vshll.u32 %v4407, 16
        %v4517 = vrot.slane %v4515, 5
        %v4518 = vsel %vm900, %v4513, %v4517
        %v4520 = vshrl.u32 %v4408, 16
        %v4522 = vrot.slane %v4520, 4
        %v4523 = vshll.u32 %v4408, 16
        %v4525 = vrot.slane %v4523, 5
        %v4526 = vor.u32 %v4522, %v4525
        %v4527 = vrot.slane %v4526, 4
        %v4529 = vshll.u32 %v4409, 16
        %v4531 = vrot.slane %v4529, 5
        %v4532 = vsel %vm900, %v4527, %v4531
        %v4533 = vshrl.u32 %v4409, 16
        %v4535 = vrot.slane %v4533, 4
        %v4536 = vor.u32 %v4535, %v4531
        %v4537 = vrot.slane %v4536, 4
        %v4539 = vshll.u32 %v4410, 16
        %v4541 = vrot.slane %v4539, 5
        %v4542 = vsel %vm900, %v4537, %v4541
        %v4544 = vshrl.u32 %v4411, 16
        %v4546 = vrot.slane %v4544, 4
        %v4547 = vshll.u32 %v4411, 16
        %v4549 = vrot.slane %v4547, 5
        %v4550 = vor.u32 %v4546, %v4549
        %v4551 = vrot.slane %v4550, 4
        %v4553 = vshll.u32 %v4412, 16
        %v4555 = vrot.slane %v4553, 5
        %v4556 = vsel %vm900, %v4551, %v4555
        %v4557 = vshrl.u32 %v4412, 16
        %v4559 = vrot.slane %v4557, 4
        %v4560 = vor.u32 %v4559, %v4555
        %v4561 = vrot.slane %v4560, 4
        %v4563 = vshll.u32 %v4413, 16
        %v4565 = vrot.slane %v4563, 5
        %v4566 = vsel %vm900, %v4561, %v4565
        %v4568 = vshrl.u32 %v4414, 16
        %v4570 = vrot.slane %v4568, 4
        %v4571 = vshll.u32 %v4414, 16
        %v4573 = vrot.slane %v4571, 5
        %v4574 = vor.u32 %v4570, %v4573
        %v4575 = vrot.slane %v4574, 4
        %v4577 = vshll.u32 %v4415, 16
        %v4579 = vrot.slane %v4577, 5
        %v4580 = vsel %vm900, %v4575, %v4579
        %v4581 = vshrl.u32 %v4415, 16
        %v4583 = vrot.slane %v4581, 4
        %v4584 = vor.u32 %v4583, %v4579
        %v4585 = vrot.slane %v4584, 4
        %v4587 = vshll.u32 %v4416, 16
        %v4589 = vrot.slane %v4587, 5
        %v4590 = vsel %vm900, %v4585, %v4589
        %v4592 = vshrl.u32 %v4417, 16
        %v4594 = vrot.slane %v4592, 4
        %v4595 = vshll.u32 %v4417, 16
        %v4597 = vrot.slane %v4595, 5
        %v4598 = vor.u32 %v4594, %v4597
        %v4599 = vrot.slane %v4598, 4
        %v4601 = vshll.u32 %v4418, 16
        %v4603 = vrot.slane %v4601, 5
        %v4604 = vsel %vm900, %v4599, %v4603
        %v4605 = vshrl.u32 %v4418, 16
        %v4607 = vrot.slane %v4605, 4
        %v4608 = vor.u32 %v4607, %v4603
        %v4609 = vrot.slane %v4608, 4
        %v4611 = vshll.u32 %v4419, 16
        %v4613 = vrot.slane %v4611, 5
        %v4614 = vsel %vm900, %v4609, %v4613
        %v4616 = vshrl.u32 %v4420, 16
        %v4618 = vrot.slane %v4616, 4
        %v4619 = vshll.u32 %v4420, 16
        %v4621 = vrot.slane %v4619, 5
        %v4622 = vor.u32 %v4618, %v4621
        %v4623 = vrot.slane %v4622, 4
        %v4625 = vshll.u32 %v4421, 16
        %v4627 = vrot.slane %v4625, 5
        %v4628 = vsel %vm900, %v4623, %v4627
        %v4629 = vshrl.u32 %v4421, 16
        %v4631 = vrot.slane %v4629, 4
        %v4632 = vor.u32 %v4631, %v4627
        %v4633 = vrot.slane %v4632, 4
        %v4635 = vshll.u32 %v4422, 16
        %v4637 = vrot.slane %v4635, 5
        %v4638 = vsel %vm900, %v4633, %v4637
        %v4640 = vshrl.u32 %v4423, 16
        %v4642 = vrot.slane %v4640, 4
        %v4643 = vshll.u32 %v4423, 16
        %v4645 = vrot.slane %v4643, 5
        %v4646 = vor.u32 %v4642, %v4645
        %v4647 = vrot.slane %v4646, 4
        %v4649 = vshll.u32 %v4424, 16
        %v4651 = vrot.slane %v4649, 5
        %v4652 = vsel %vm900, %v4647, %v4651
        %v4653 = vshrl.u32 %v4424, 16
        %v4655 = vrot.slane %v4653, 4
        %v4656 = vor.u32 %v4655, %v4651
        %v4657 = vrot.slane %v4656, 4
        %v4659 = vshll.u32 %v4425, 16
        %v4661 = vrot.slane %v4659, 5
        %v4662 = vsel %vm900, %v4657, %v4661
        %v4664 = vshrl.u32 %v4426, 16
        %v4666 = vrot.slane %v4664, 4
        %v4667 = vshll.u32 %v4426, 16
        %v4669 = vrot.slane %v4667, 5
        %v4670 = vor.u32 %v4666, %v4669
        %v4671 = vrot.slane %v4670, 4
        %v4673 = vshll.u32 %v4427, 16
        %v4675 = vrot.slane %v4673, 5
        %v4676 = vsel %vm900, %v4671, %v4675
        %v4677 = vshrl.u32 %v4427, 16
        %v4679 = vrot.slane %v4677, 4
        %v4680 = vor.u32 %v4679, %v4675
        %v4681 = vrot.slane %v4680, 4
        %v4683 = vshll.u32 %v4428, 16
        %v4685 = vrot.slane %v4683, 5
        %v4686 = vsel %vm900, %v4681, %v4685
        %v4688 = vshrl.u32 %v4429, 16
        %v4690 = vrot.slane %v4688, 4
        %v4691 = vshll.u32 %v4429, 16
        %v4693 = vrot.slane %v4691, 5
        %v4694 = vor.u32 %v4690, %v4693
        %v4695 = vrot.slane %v4694, 4
        %v4697 = vshll.u32 %v4430, 16
        %v4699 = vrot.slane %v4697, 5
        %v4700 = vsel %vm900, %v4695, %v4699
        %v4701 = vshrl.u32 %v4430, 16
        %v4703 = vrot.slane %v4701, 4
        %v4704 = vor.u32 %v4703, %v4699
        %v4705 = vrot.slane %v4704, 4
        %v4707 = vshll.u32 %v4431, 16
        %v4709 = vrot.slane %v4707, 5
        %v4710 = vsel %vm900, %v4705, %v4709
        %v4712 = vshrl.u32 %v4432, 16
        %v4714 = vrot.slane %v4712, 4
        %v4715 = vshll.u32 %v4432, 16
        %v4717 = vrot.slane %v4715, 5
        %v4718 = vor.u32 %v4714, %v4717
        %v4719 = vrot.slane %v4718, 4
        %v4721 = vshll.u32 %v4433, 16
        %v4723 = vrot.slane %v4721, 5
        %v4724 = vsel %vm900, %v4719, %v4723
        %v4725 = vshrl.u32 %v4433, 16
        %v4727 = vrot.slane %v4725, 4
        %v4728 = vor.u32 %v4727, %v4723
        %v4729 = vrot.slane %v4728, 4
        %v4731 = vshll.u32 %v4434, 16
        %v4733 = vrot.slane %v4731, 5
        %v4734 = vsel %vm900, %v4729, %v4733
        %v4736 = vshrl.u32 %v4435, 16
        %v4738 = vrot.slane %v4736, 4
        %v4739 = vshll.u32 %v4435, 16
        %v4741 = vrot.slane %v4739, 5
        %v4742 = vor.u32 %v4738, %v4741
        %v4743 = vrot.slane %v4742, 4
        %v4745 = vshll.u32 %v4436, 16
        %v4747 = vrot.slane %v4745, 5
        %v4748 = vsel %vm900, %v4743, %v4747
        %v4749 = vshrl.u32 %v4436, 16
        %v4751 = vrot.slane %v4749, 4
        %v4752 = vor.u32 %v4751, %v4747
        %v4753 = vrot.slane %v4752, 4
        %v4755 = vshll.u32 %v4437, 16
        %v4757 = vrot.slane %v4755, 5
        %v4758 = vsel %vm900, %v4753, %v4757
        %v4760 = vshrl.u32 %v4438, 16
        %v4762 = vrot.slane %v4760, 4
        %v4763 = vshll.u32 %v4438, 16
        %v4765 = vrot.slane %v4763, 5
        %v4766 = vor.u32 %v4762, %v4765
        %v4767 = vrot.slane %v4766, 4
        %v4769 = vshll.u32 %v4439, 16
        %v4771 = vrot.slane %v4769, 5
        %v4772 = vsel %vm900, %v4767, %v4771
        %v4773 = vshrl.u32 %v4439, 16
        %v4775 = vrot.slane %v4773, 4
        %v4776 = vor.u32 %v4775, %v4771
        %v4777 = vrot.slane %v4776, 4
        %v4779 = vshll.u32 %v4440, 16
        %v4781 = vrot.slane %v4779, 5
        %v4782 = vsel %vm900, %v4777, %v4781
        %v4784 = vshrl.u32 %v4441, 16
        %v4786 = vrot.slane %v4784, 4
        %v4787 = vshll.u32 %v4441, 16
        %v4789 = vrot.slane %v4787, 5
        %v4790 = vor.u32 %v4786, %v4789
        %v4791 = vrot.slane %v4790, 4
        %v4793 = vshll.u32 %v4442, 16
        %v4795 = vrot.slane %v4793, 5
        %v4796 = vsel %vm900, %v4791, %v4795
        %v4797 = vshrl.u32 %v4442, 16
        %v4799 = vrot.slane %v4797, 4
        %v4800 = vor.u32 %v4799, %v4795
        %v4801 = vrot.slane %v4800, 4
        %v4803 = vshll.u32 %v4443, 16
        %v4805 = vrot.slane %v4803, 5
        %v4806 = vsel %vm900, %v4801, %v4805
        %v4808 = vshrl.u32 %v4444, 16
        %v4810 = vrot.slane %v4808, 4
        %v4811 = vshll.u32 %v4444, 16
        %v4813 = vrot.slane %v4811, 5
        %v4814 = vor.u32 %v4810, %v4813
        %v4815 = vrot.slane %v4814, 4
        %v4817 = vshll.u32 %v4445, 16
        %v4819 = vrot.slane %v4817, 5
        %v4820 = vsel %vm900, %v4815, %v4819
        %v4821 = vshrl.u32 %v4445, 16
        %v4823 = vrot.slane %v4821, 4
        %v4824 = vor.u32 %v4823, %v4819
        %v4825 = vrot.slane %v4824, 4
        %v4827 = vshll.u32 %v4446, 16
        %v4829 = vrot.slane %v4827, 5
        %v4830 = vsel %vm900, %v4825, %v4829
        %s4831 = scalar_lea.vmem %s1, 224
        %v4832 = vld [vmem:[%s4831] sm:$0xf]
        %v4833 = vld [vmem:[%s4831 + $0x4] sm:$0xf]
        %v4834 = vld [vmem:[%s4831 + $0x8] sm:$0xf]
        %v4835 = vld [vmem:[%s4831 + $0xc] sm:$0xf]
        %v4836 = vld [vmem:[%s4831 + $0x10] sm:$0xf]
        %v4837 = vld [vmem:[%s4831 + $0x14] sm:$0xf]
        %v4838 = vld [vmem:[%s4831 + $0x18] sm:$0xf]
        %v4839 = vld [vmem:[%s4831 + $0x1c] sm:$0xf]
        %v4840 = vunpack.c.l.b16 %v4460
        %v4841 = vunpack.c.l.b16 %v4470
        %v4842 = vunpack.c.l.b16 %v4484
        %v4843 = vunpack.c.l.b16 %v4494
        %v4844 = vunpack.c.l.b16 %v4508
        %v4845 = vunpack.c.l.b16 %v4518
        %v4846 = vunpack.c.l.b16 %v4532
        %v4847 = vunpack.c.l.b16 %v4542
        %v4848 = vunpack.c.l.b16 %v4556
        %v4849 = vunpack.c.l.b16 %v4566
        %v4850 = vunpack.c.l.b16 %v4580
        %v4851 = vunpack.c.l.b16 %v4590
        %v4852 = vunpack.c.l.b16 %v4604
        %v4853 = vunpack.c.l.b16 %v4614
        %v4854 = vunpack.c.l.b16 %v4628
        %v4855 = vunpack.c.l.b16 %v4638
        %v4856 = vunpack.c.l.b16 %v4652
        %v4857 = vunpack.c.l.b16 %v4662
        %v4858 = vunpack.c.l.b16 %v4676
        %v4859 = vunpack.c.l.b16 %v4686
        %v4860 = vunpack.c.l.b16 %v4700
        %v4861 = vunpack.c.l.b16 %v4710
        %v4862 = vunpack.c.l.b16 %v4724
        %v4863 = vunpack.c.l.b16 %v4734
        %v4864 = vunpack.c.l.b16 %v4748
        %v4865 = vunpack.c.l.b16 %v4758
        %v4866 = vunpack.c.l.b16 %v4772
        %v4867 = vunpack.c.l.b16 %v4782
        %v4868 = vunpack.c.l.b16 %v4796
        %v4869 = vunpack.c.l.b16 %v4806
        %v4870 = vunpack.c.l.b16 %v4820
        %v4871 = vunpack.c.l.b16 %v4830
        %v4872 = vpack.c.b16 %v4841, %v4840
        %v4873 = vpack.c.b16 %v4843, %v4842
        %v4874 = vpack.c.b16 %v4845, %v4844
        %v4875 = vpack.c.b16 %v4847, %v4846
        %v4876 = vpack.c.b16 %v4849, %v4848
        %v4877 = vpack.c.b16 %v4851, %v4850
        %v4878 = vpack.c.b16 %v4853, %v4852
        %v4879 = vpack.c.b16 %v4855, %v4854
        %v4880 = vpack.c.b16 %v4857, %v4856
        %v4881 = vpack.c.b16 %v4859, %v4858
        %v4882 = vpack.c.b16 %v4861, %v4860
        %v4883 = vpack.c.b16 %v4863, %v4862
        %v4884 = vpack.c.b16 %v4865, %v4864
        %v4885 = vpack.c.b16 %v4867, %v4866
        %v4886 = vpack.c.b16 %v4869, %v4868
        %v4887 = vpack.c.b16 %v4871, %v4870
        %v4896 = vunpack.c.l.b16 %v4832
        %v4897 = vunpack.c.l.b16 %v4833
        %v4898 = vunpack.c.l.b16 %v4834
        %v4899 = vunpack.c.l.b16 %v4835
        %v4900 = vunpack.c.l.b16 %v4836
        %v4901 = vunpack.c.l.b16 %v4837
        %v4902 = vunpack.c.l.b16 %v4838
        %v4903 = vunpack.c.l.b16 %v4839
        %v4904 = vpack.c.b16 %v4897, %v4896
        %v4905 = vpack.c.b16 %v4899, %v4898
        %v4906 = vpack.c.b16 %v4901, %v4900
        %v4907 = vpack.c.b16 %v4903, %v4902
        %v4913 = vsel %vm1366, %v4872, 0
        %v4916 = vsel %vm1366, %v4873, 0
        %v4919 = vsel %vm1366, %v4874, 0
        %v4922 = vsel %vm1366, %v4875, 0
        %v4925 = vsel %vm1366, %v4876, 0
        %v4928 = vsel %vm1366, %v4877, 0
        %v4931 = vsel %vm1366, %v4878, 0
        %v4934 = vsel %vm1366, %v4879, 0
        %v4937 = vsel %vm1366, %v4880, 0
        %v4940 = vsel %vm1366, %v4881, 0
        %v4943 = vsel %vm1366, %v4882, 0
        %v4946 = vsel %vm1366, %v4883, 0
        %v4949 = vsel %vm1366, %v4884, 0
        %v4952 = vsel %vm1366, %v4885, 0
        %v4955 = vsel %vm1366, %v4886, 0
        %v4958 = vsel %vm1366, %v4887, 0
        %4960 = vmatprep.subr.bf16.mxu0 0
        %4961 = vmatpush1.bf16.msra.mxu0 %v4904
        %4962 = vmatprep.subr.bf16.mxu0 0
        %4963 = vmatpush1.bf16.msra.mxu0 %v4905
        %4964 = vmatprep.subr.bf16.mxu0 0
        %4965 = vmatpush1.bf16.msra.mxu0 %v4906
        %4966 = vmatprep.subr.bf16.mxu0 0
        %4967 = vmatpush1.bf16.msra.mxu0 %v4907
        %4968 = vmatprep.subr.bf16.mxu0 0
        %4969 = vmatpush1.bf16.msra.mxu0 0
        %4970 = vmatprep.subr.bf16.mxu0 0
        %4971 = vmatpush1.bf16.msra.mxu0 0
        %4972 = vmatprep.subr.bf16.mxu0 0
        %4973 = vmatpush1.bf16.msra.mxu0 0
        %4974 = vmatprep.subr.bf16.mxu0 0
        %4975 = vmatpush1.bf16.msra.mxu0 0
        %4976 = vmatprep.subr.bf16.mxu0 0
        %4977 = vmatpush1.bf16.msra.mxu0 0
        %4978 = vmatprep.subr.bf16.mxu0 0
        %4979 = vmatpush1.bf16.msra.mxu0 0
        %4980 = vmatprep.subr.bf16.mxu0 0
        %4981 = vmatpush1.bf16.msra.mxu0 0
        %4982 = vmatprep.subr.bf16.mxu0 0
        %4983 = vmatpush1.bf16.msra.mxu0 0
        %4984 = vmatprep.subr.bf16.mxu0 0
        %4985 = vmatpush1.bf16.msra.mxu0 0
        %4986 = vmatprep.subr.bf16.mxu0 0
        %4987 = vmatpush1.bf16.msra.mxu0 0
        %4988 = vmatprep.subr.bf16.mxu0 0
        %4989 = vmatpush1.bf16.msra.mxu0 0
        %4990 = vmatprep.subr.bf16.mxu0 0
        %4991 = vmatpush1.bf16.msra.mxu0 0
        %4992 = vmatprep.mubr.bf16.mxu0 0
        %4993 = vmatmul.mubr.bf16.gmra.mrb[0].mxu0 %v4913
        %v4994 = vpop.f32.mrb[0].mxu0
        %v4995 = vadd.f32 0.0, %v4994
        %v4996 = vpop.f32.mrb[0].mxu0
        %v4997 = vpop.f32.mrb[0].mxu0
        %v4998 = vadd.f32 0.0, %v4997
        %v4999 = vpop.f32.mrb[0].mxu0
        %5000 = vmatprep.mubr.bf16.mxu0 0
        %5001 = vmatmul.mubr.bf16.gmra.mrb[0].mxu0 %v4916
        %v5002 = vpop.f32.mrb[0].mxu0
        %v5003 = vadd.f32 0.0, %v5002
        %v5004 = vpop.f32.mrb[0].mxu0
        %v5005 = vpop.f32.mrb[0].mxu0
        %v5006 = vadd.f32 0.0, %v5005
        %v5007 = vpop.f32.mrb[0].mxu0
        %5008 = vmatprep.mubr.bf16.mxu0 0
        %5009 = vmatmul.mubr.bf16.gmra.mrb[0].mxu0 %v4919
        %v5010 = vpop.f32.mrb[0].mxu0
        %v5011 = vadd.f32 0.0, %v5010
        %v5012 = vpop.f32.mrb[0].mxu0
        %v5013 = vpop.f32.mrb[0].mxu0
        %v5014 = vadd.f32 0.0, %v5013
        %v5015 = vpop.f32.mrb[0].mxu0
        %5016 = vmatprep.mubr.bf16.mxu0 0
        %5017 = vmatmul.mubr.bf16.gmra.mrb[0].mxu0 %v4922
        %v5018 = vpop.f32.mrb[0].mxu0
        %v5019 = vadd.f32 0.0, %v5018
        %v5020 = vpop.f32.mrb[0].mxu0
        %v5021 = vpop.f32.mrb[0].mxu0
        %v5022 = vadd.f32 0.0, %v5021
        %v5023 = vpop.f32.mrb[0].mxu0
        %5024 = vmatprep.mubr.bf16.mxu0 0
        %5025 = vmatmul.mubr.bf16.gmra.mrb[0].mxu0 %v4925
        %v5026 = vpop.f32.mrb[0].mxu0
        %v5027 = vadd.f32 0.0, %v5026
        %v5028 = vpop.f32.mrb[0].mxu0
        %v5029 = vpop.f32.mrb[0].mxu0
        %v5030 = vadd.f32 0.0, %v5029
        %v5031 = vpop.f32.mrb[0].mxu0
        %5032 = vmatprep.mubr.bf16.mxu0 0
        %5033 = vmatmul.mubr.bf16.gmra.mrb[0].mxu0 %v4928
        %v5034 = vpop.f32.mrb[0].mxu0
        %v5035 = vadd.f32 0.0, %v5034
        %v5036 = vpop.f32.mrb[0].mxu0
        %v5037 = vpop.f32.mrb[0].mxu0
        %v5038 = vadd.f32 0.0, %v5037
        %v5039 = vpop.f32.mrb[0].mxu0
        %5040 = vmatprep.mubr.bf16.mxu0 0
        %5041 = vmatmul.mubr.bf16.gmra.mrb[0].mxu0 %v4931
        %v5042 = vpop.f32.mrb[0].mxu0
        %v5043 = vadd.f32 0.0, %v5042
        %v5044 = vpop.f32.mrb[0].mxu0
        %v5045 = vpop.f32.mrb[0].mxu0
        %v5046 = vadd.f32 0.0, %v5045
        %v5047 = vpop.f32.mrb[0].mxu0
        %5048 = vmatprep.mubr.bf16.mxu0 0
        %5049 = vmatmul.mubr.bf16.gmra.mrb[0].mxu0 %v4934
        %v5050 = vpop.f32.mrb[0].mxu0
        %v5051 = vadd.f32 0.0, %v5050
        %v5052 = vpop.f32.mrb[0].mxu0
        %v5053 = vpop.f32.mrb[0].mxu0
        %v5054 = vadd.f32 0.0, %v5053
        %v5055 = vpop.f32.mrb[0].mxu0
        %5056 = vmatprep.mubr.bf16.mxu0 0
        %5057 = vmatmul.mubr.bf16.gmra.mrb[0].mxu0 %v4937
        %v5058 = vpop.f32.mrb[0].mxu0
        %v5059 = vadd.f32 0.0, %v5058
        %v5060 = vpop.f32.mrb[0].mxu0
        %v5061 = vpop.f32.mrb[0].mxu0
        %v5062 = vadd.f32 0.0, %v5061
        %v5063 = vpop.f32.mrb[0].mxu0
        %5064 = vmatprep.mubr.bf16.mxu0 0
        %5065 = vmatmul.mubr.bf16.gmra.mrb[0].mxu0 %v4940
        %v5066 = vpop.f32.mrb[0].mxu0
        %v5067 = vadd.f32 0.0, %v5066
        %v5068 = vpop.f32.mrb[0].mxu0
        %v5069 = vpop.f32.mrb[0].mxu0
        %v5070 = vadd.f32 0.0, %v5069
        %v5071 = vpop.f32.mrb[0].mxu0
        %5072 = vmatprep.mubr.bf16.mxu0 0
        %5073 = vmatmul.mubr.bf16.gmra.mrb[0].mxu0 %v4943
        %v5074 = vpop.f32.mrb[0].mxu0
        %v5075 = vadd.f32 0.0, %v5074
        %v5076 = vpop.f32.mrb[0].mxu0
        %v5077 = vpop.f32.mrb[0].mxu0
        %v5078 = vadd.f32 0.0, %v5077
        %v5079 = vpop.f32.mrb[0].mxu0
        %5080 = vmatprep.mubr.bf16.mxu0 0
        %5081 = vmatmul.mubr.bf16.gmra.mrb[0].mxu0 %v4946
        %v5082 = vpop.f32.mrb[0].mxu0
        %v5083 = vadd.f32 0.0, %v5082
        %v5084 = vpop.f32.mrb[0].mxu0
        %v5085 = vpop.f32.mrb[0].mxu0
        %v5086 = vadd.f32 0.0, %v5085
        %v5087 = vpop.f32.mrb[0].mxu0
        %5088 = vmatprep.mubr.bf16.mxu0 0
        %5089 = vmatmul.mubr.bf16.gmra.mrb[0].mxu0 %v4949
        %v5090 = vpop.f32.mrb[0].mxu0
        %v5091 = vadd.f32 0.0, %v5090
        %v5092 = vpop.f32.mrb[0].mxu0
        %v5093 = vpop.f32.mrb[0].mxu0
        %v5094 = vadd.f32 0.0, %v5093
        %v5095 = vpop.f32.mrb[0].mxu0
        %5096 = vmatprep.mubr.bf16.mxu0 0
        %5097 = vmatmul.mubr.bf16.gmra.mrb[0].mxu0 %v4952
        %v5098 = vpop.f32.mrb[0].mxu0
        %v5099 = vadd.f32 0.0, %v5098
        %v5100 = vpop.f32.mrb[0].mxu0
        %v5101 = vpop.f32.mrb[0].mxu0
        %v5102 = vadd.f32 0.0, %v5101
        %v5103 = vpop.f32.mrb[0].mxu0
        %5104 = vmatprep.mubr.bf16.mxu0 0
        %5105 = vmatmul.mubr.bf16.gmra.mrb[0].mxu0 %v4955
        %v5106 = vpop.f32.mrb[0].mxu0
        %v5107 = vadd.f32 0.0, %v5106
        %v5108 = vpop.f32.mrb[0].mxu0
        %v5109 = vpop.f32.mrb[0].mxu0
        %v5110 = vadd.f32 0.0, %v5109
        %v5111 = vpop.f32.mrb[0].mxu0
        %5112 = vmatprep.mubr.bf16.mxu0 0
        %5113 = vmatmul.mubr.bf16.gmra.mrb[0].mxu0 %v4958
        %v5114 = vpop.f32.mrb[0].mxu0
        %v5115 = vadd.f32 0.0, %v5114
        %v5116 = vpop.f32.mrb[0].mxu0
        %v5117 = vpop.f32.mrb[0].mxu0
        %v5118 = vadd.f32 0.0, %v5117
        %v5119 = vpop.f32.mrb[0].mxu0
        %5120 = vdwg.mxu0
        %v5121 = vadd.f32 %v4367, %v4995
        %v5122 = vadd.f32 %v4368, %v4998
        %v5123 = vadd.f32 %v4369, %v5003
        %v5124 = vadd.f32 %v4370, %v5006
        %v5125 = vadd.f32 %v4371, %v5011
        %v5126 = vadd.f32 %v4372, %v5014
        %v5127 = vadd.f32 %v4373, %v5019
        %v5128 = vadd.f32 %v4374, %v5022
        %v5129 = vadd.f32 %v4375, %v5027
        %v5130 = vadd.f32 %v4376, %v5030
        %v5131 = vadd.f32 %v4377, %v5035
        %v5132 = vadd.f32 %v4378, %v5038
        %v5133 = vadd.f32 %v4379, %v5043
        %v5134 = vadd.f32 %v4380, %v5046
        %v5135 = vadd.f32 %v4381, %v5051
        %v5136 = vadd.f32 %v4382, %v5054
        %v5137 = vadd.f32 %v4383, %v5059
        %v5138 = vadd.f32 %v4384, %v5062
        %v5139 = vadd.f32 %v4385, %v5067
        %v5140 = vadd.f32 %v4386, %v5070
        %v5141 = vadd.f32 %v4387, %v5075
        %v5142 = vadd.f32 %v4388, %v5078
        %v5143 = vadd.f32 %v4389, %v5083
        %v5144 = vadd.f32 %v4390, %v5086
        %v5145 = vadd.f32 %v4391, %v5091
        %v5146 = vadd.f32 %v4392, %v5094
        %v5147 = vadd.f32 %v4393, %v5099
        %v5148 = vadd.f32 %v4394, %v5102
        %v5149 = vadd.f32 %v4395, %v5107
        %v5150 = vadd.f32 %v4396, %v5110
        %v5151 = vadd.f32 %v4397, %v5115
        %v5152 = vadd.f32 %v4398, %v5118
        %v5153 = vld [vmem:[%s4012] sm:$0xe]
        %v5154 = vld [vmem:[%s4012 + $0xc] sm:$0xe]
        %v5155 = vld [vmem:[%s4012 + $0x18] sm:$0xe]
        %v5156 = vld [vmem:[%s4012 + $0x24] sm:$0xe]
        %v5157 = vld [vmem:[%s4012 + $0x30] sm:$0xe]
        %v5158 = vld [vmem:[%s4012 + $0x3c] sm:$0xe]
        %v5159 = vld [vmem:[%s4012 + $0x48] sm:$0xe]
        %v5160 = vld [vmem:[%s4012 + $0x54] sm:$0xe]
        %v5161 = vld [vmem:[%s4012 + $0x60] sm:$0xe]
        %v5162 = vld [vmem:[%s4012 + $0x6c] sm:$0xe]
        %v5163 = vld [vmem:[%s4012 + $0x78] sm:$0xe]
        %v5164 = vld [vmem:[%s4012 + $0x84] sm:$0xe]
        %v5165 = vld [vmem:[%s4012 + $0x90] sm:$0xe]
        %v5166 = vld [vmem:[%s4012 + $0x9c] sm:$0xe]
        %v5167 = vld [vmem:[%s4012 + $0xa8] sm:$0xe]
        %v5168 = vld [vmem:[%s4012 + $0xb4] sm:$0xe]
        %v5217 = vrot.slane %v5153, 5
        %v5218 = vrot.slane %v5217, 4
        %v5219 = vrot.slane %v4400, 5
        %v5220 = vsel %vm1939, %v5218, %v5219
        %v5221 = vrot.slane %v5219, 4
        %v5222 = vrot.slane %v4401, 5
        %v5223 = vsel %vm1939, %v5221, %v5222
        %v5224 = vrot.slane %v5154, 5
        %v5225 = vrot.slane %v5224, 4
        %v5226 = vrot.slane %v4403, 5
        %v5227 = vsel %vm1939, %v5225, %v5226
        %v5228 = vrot.slane %v5226, 4
        %v5229 = vrot.slane %v4404, 5
        %v5230 = vsel %vm1939, %v5228, %v5229
        %v5231 = vrot.slane %v5155, 5
        %v5232 = vrot.slane %v5231, 4
        %v5233 = vrot.slane %v4406, 5
        %v5234 = vsel %vm1939, %v5232, %v5233
        %v5235 = vrot.slane %v5233, 4
        %v5236 = vrot.slane %v4407, 5
        %v5237 = vsel %vm1939, %v5235, %v5236
        %v5238 = vrot.slane %v5156, 5
        %v5239 = vrot.slane %v5238, 4
        %v5240 = vrot.slane %v4409, 5
        %v5241 = vsel %vm1939, %v5239, %v5240
        %v5242 = vrot.slane %v5240, 4
        %v5243 = vrot.slane %v4410, 5
        %v5244 = vsel %vm1939, %v5242, %v5243
        %v5245 = vrot.slane %v5157, 5
        %v5246 = vrot.slane %v5245, 4
        %v5247 = vrot.slane %v4412, 5
        %v5248 = vsel %vm1939, %v5246, %v5247
        %v5249 = vrot.slane %v5247, 4
        %v5250 = vrot.slane %v4413, 5
        %v5251 = vsel %vm1939, %v5249, %v5250
        %v5252 = vrot.slane %v5158, 5
        %v5253 = vrot.slane %v5252, 4
        %v5254 = vrot.slane %v4415, 5
        %v5255 = vsel %vm1939, %v5253, %v5254
        %v5256 = vrot.slane %v5254, 4
        %v5257 = vrot.slane %v4416, 5
        %v5258 = vsel %vm1939, %v5256, %v5257
        %v5259 = vrot.slane %v5159, 5
        %v5260 = vrot.slane %v5259, 4
        %v5261 = vrot.slane %v4418, 5
        %v5262 = vsel %vm1939, %v5260, %v5261
        %v5263 = vrot.slane %v5261, 4
        %v5264 = vrot.slane %v4419, 5
        %v5265 = vsel %vm1939, %v5263, %v5264
        %v5266 = vrot.slane %v5160, 5
        %v5267 = vrot.slane %v5266, 4
        %v5268 = vrot.slane %v4421, 5
        %v5269 = vsel %vm1939, %v5267, %v5268
        %v5270 = vrot.slane %v5268, 4
        %v5271 = vrot.slane %v4422, 5
        %v5272 = vsel %vm1939, %v5270, %v5271
        %v5273 = vrot.slane %v5161, 5
        %v5274 = vrot.slane %v5273, 4
        %v5275 = vrot.slane %v4424, 5
        %v5276 = vsel %vm1939, %v5274, %v5275
        %v5277 = vrot.slane %v5275, 4
        %v5278 = vrot.slane %v4425, 5
        %v5279 = vsel %vm1939, %v5277, %v5278
        %v5280 = vrot.slane %v5162, 5
        %v5281 = vrot.slane %v5280, 4
        %v5282 = vrot.slane %v4427, 5
        %v5283 = vsel %vm1939, %v5281, %v5282
        %v5284 = vrot.slane %v5282, 4
        %v5285 = vrot.slane %v4428, 5
        %v5286 = vsel %vm1939, %v5284, %v5285
        %v5287 = vrot.slane %v5163, 5
        %v5288 = vrot.slane %v5287, 4
        %v5289 = vrot.slane %v4430, 5
        %v5290 = vsel %vm1939, %v5288, %v5289
        %v5291 = vrot.slane %v5289, 4
        %v5292 = vrot.slane %v4431, 5
        %v5293 = vsel %vm1939, %v5291, %v5292
        %v5294 = vrot.slane %v5164, 5
        %v5295 = vrot.slane %v5294, 4
        %v5296 = vrot.slane %v4433, 5
        %v5297 = vsel %vm1939, %v5295, %v5296
        %v5298 = vrot.slane %v5296, 4
        %v5299 = vrot.slane %v4434, 5
        %v5300 = vsel %vm1939, %v5298, %v5299
        %v5301 = vrot.slane %v5165, 5
        %v5302 = vrot.slane %v5301, 4
        %v5303 = vrot.slane %v4436, 5
        %v5304 = vsel %vm1939, %v5302, %v5303
        %v5305 = vrot.slane %v5303, 4
        %v5306 = vrot.slane %v4437, 5
        %v5307 = vsel %vm1939, %v5305, %v5306
        %v5308 = vrot.slane %v5166, 5
        %v5309 = vrot.slane %v5308, 4
        %v5310 = vrot.slane %v4439, 5
        %v5311 = vsel %vm1939, %v5309, %v5310
        %v5312 = vrot.slane %v5310, 4
        %v5313 = vrot.slane %v4440, 5
        %v5314 = vsel %vm1939, %v5312, %v5313
        %v5315 = vrot.slane %v5167, 5
        %v5316 = vrot.slane %v5315, 4
        %v5317 = vrot.slane %v4442, 5
        %v5318 = vsel %vm1939, %v5316, %v5317
        %v5319 = vrot.slane %v5317, 4
        %v5320 = vrot.slane %v4443, 5
        %v5321 = vsel %vm1939, %v5319, %v5320
        %v5322 = vrot.slane %v5168, 5
        %v5323 = vrot.slane %v5322, 4
        %v5324 = vrot.slane %v4445, 5
        %v5325 = vsel %vm1939, %v5323, %v5324
        %v5326 = vrot.slane %v5324, 4
        %v5327 = vrot.slane %v4446, 5
        %v5328 = vsel %vm1939, %v5326, %v5327
        %s5329 = scalar_lea.vmem %s1, 256
        %v5330 = vld [vmem:[%s5329] sm:$0xf]
        %v5331 = vld [vmem:[%s5329 + $0x4] sm:$0xf]
        %v5332 = vld [vmem:[%s5329 + $0x8] sm:$0xf]
        %v5333 = vld [vmem:[%s5329 + $0xc] sm:$0xf]
        %v5334 = vld [vmem:[%s5329 + $0x10] sm:$0xf]
        %v5335 = vld [vmem:[%s5329 + $0x14] sm:$0xf]
        %v5336 = vld [vmem:[%s5329 + $0x18] sm:$0xf]
        %v5337 = vld [vmem:[%s5329 + $0x1c] sm:$0xf]
        %v5338 = vunpack.c.l.b16 %v5220
        %v5339 = vunpack.c.l.b16 %v5223
        %v5340 = vunpack.c.l.b16 %v5227
        %v5341 = vunpack.c.l.b16 %v5230
        %v5342 = vunpack.c.l.b16 %v5234
        %v5343 = vunpack.c.l.b16 %v5237
        %v5344 = vunpack.c.l.b16 %v5241
        %v5345 = vunpack.c.l.b16 %v5244
        %v5346 = vunpack.c.l.b16 %v5248
        %v5347 = vunpack.c.l.b16 %v5251
        %v5348 = vunpack.c.l.b16 %v5255
        %v5349 = vunpack.c.l.b16 %v5258
        %v5350 = vunpack.c.l.b16 %v5262
        %v5351 = vunpack.c.l.b16 %v5265
        %v5352 = vunpack.c.l.b16 %v5269
        %v5353 = vunpack.c.l.b16 %v5272
        %v5354 = vunpack.c.l.b16 %v5276
        %v5355 = vunpack.c.l.b16 %v5279
        %v5356 = vunpack.c.l.b16 %v5283
        %v5357 = vunpack.c.l.b16 %v5286
        %v5358 = vunpack.c.l.b16 %v5290
        %v5359 = vunpack.c.l.b16 %v5293
        %v5360 = vunpack.c.l.b16 %v5297
        %v5361 = vunpack.c.l.b16 %v5300
        %v5362 = vunpack.c.l.b16 %v5304
        %v5363 = vunpack.c.l.b16 %v5307
        %v5364 = vunpack.c.l.b16 %v5311
        %v5365 = vunpack.c.l.b16 %v5314
        %v5366 = vunpack.c.l.b16 %v5318
        %v5367 = vunpack.c.l.b16 %v5321
        %v5368 = vunpack.c.l.b16 %v5325
        %v5369 = vunpack.c.l.b16 %v5328
        %v5370 = vpack.c.b16 %v5339, %v5338
        %v5371 = vpack.c.b16 %v5341, %v5340
        %v5372 = vpack.c.b16 %v5343, %v5342
        %v5373 = vpack.c.b16 %v5345, %v5344
        %v5374 = vpack.c.b16 %v5347, %v5346
        %v5375 = vpack.c.b16 %v5349, %v5348
        %v5376 = vpack.c.b16 %v5351, %v5350
        %v5377 = vpack.c.b16 %v5353, %v5352
        %v5378 = vpack.c.b16 %v5355, %v5354
        %v5379 = vpack.c.b16 %v5357, %v5356
        %v5380 = vpack.c.b16 %v5359, %v5358
        %v5381 = vpack.c.b16 %v5361, %v5360
        %v5382 = vpack.c.b16 %v5363, %v5362
        %v5383 = vpack.c.b16 %v5365, %v5364
        %v5384 = vpack.c.b16 %v5367, %v5366
        %v5385 = vpack.c.b16 %v5369, %v5368
        %v5394 = vunpack.c.l.b16 %v5330
        %v5395 = vunpack.c.l.b16 %v5331
        %v5396 = vunpack.c.l.b16 %v5332
        %v5397 = vunpack.c.l.b16 %v5333
        %v5398 = vunpack.c.l.b16 %v5334
        %v5399 = vunpack.c.l.b16 %v5335
        %v5400 = vunpack.c.l.b16 %v5336
        %v5401 = vunpack.c.l.b16 %v5337
        %v5402 = vpack.c.b16 %v5395, %v5394
        %v5403 = vpack.c.b16 %v5397, %v5396
        %v5404 = vpack.c.b16 %v5399, %v5398
        %v5405 = vpack.c.b16 %v5401, %v5400
        %v5411 = vsel %vm1366, %v5370, 0
        %v5414 = vsel %vm1366, %v5371, 0
        %v5417 = vsel %vm1366, %v5372, 0
        %v5420 = vsel %vm1366, %v5373, 0
        %v5423 = vsel %vm1366, %v5374, 0
        %v5426 = vsel %vm1366, %v5375, 0
        %v5429 = vsel %vm1366, %v5376, 0
        %v5432 = vsel %vm1366, %v5377, 0
        %v5435 = vsel %vm1366, %v5378, 0
        %v5438 = vsel %vm1366, %v5379, 0
        %v5441 = vsel %vm1366, %v5380, 0
        %v5444 = vsel %vm1366, %v5381, 0
        %v5447 = vsel %vm1366, %v5382, 0
        %v5450 = vsel %vm1366, %v5383, 0
        %v5453 = vsel %vm1366, %v5384, 0
        %v5456 = vsel %vm1366, %v5385, 0
        %5458 = vmatprep.subr.bf16.mxu0 0
        %5459 = vmatpush1.bf16.msra.mxu0 %v5402
        %5460 = vmatprep.subr.bf16.mxu0 0
        %5461 = vmatpush1.bf16.msra.mxu0 %v5403
        %5462 = vmatprep.subr.bf16.mxu0 0
        %5463 = vmatpush1.bf16.msra.mxu0 %v5404
        %5464 = vmatprep.subr.bf16.mxu0 0
        %5465 = vmatpush1.bf16.msra.mxu0 %v5405
        %5466 = vmatprep.subr.bf16.mxu0 0
        %5467 = vmatpush1.bf16.msra.mxu0 0
        %5468 = vmatprep.subr.bf16.mxu0 0
        %5469 = vmatpush1.bf16.msra.mxu0 0
        %5470 = vmatprep.subr.bf16.mxu0 0
        %5471 = vmatpush1.bf16.msra.mxu0 0
        %5472 = vmatprep.subr.bf16.mxu0 0
        %5473 = vmatpush1.bf16.msra.mxu0 0
        %5474 = vmatprep.subr.bf16.mxu0 0
        %5475 = vmatpush1.bf16.msra.mxu0 0
        %5476 = vmatprep.subr.bf16.mxu0 0
        %5477 = vmatpush1.bf16.msra.mxu0 0
        %5478 = vmatprep.subr.bf16.mxu0 0
        %5479 = vmatpush1.bf16.msra.mxu0 0
        %5480 = vmatprep.subr.bf16.mxu0 0
        %5481 = vmatpush1.bf16.msra.mxu0 0
        %5482 = vmatprep.subr.bf16.mxu0 0
        %5483 = vmatpush1.bf16.msra.mxu0 0
        %5484 = vmatprep.subr.bf16.mxu0 0
        %5485 = vmatpush1.bf16.msra.mxu0 0
        %5486 = vmatprep.subr.bf16.mxu0 0
        %5487 = vmatpush1.bf16.msra.mxu0 0
        %5488 = vmatprep.subr.bf16.mxu0 0
        %5489 = vmatpush1.bf16.msra.mxu0 0
        %5490 = vmatprep.mubr.bf16.mxu0 0
        %5491 = vmatmul.mubr.bf16.gmra.mrb[0].mxu0 %v5411
        %v5492 = vpop.f32.mrb[0].mxu0
        %v5493 = vadd.f32 0.0, %v5492
        %v5494 = vpop.f32.mrb[0].mxu0
        %v5495 = vpop.f32.mrb[0].mxu0
        %v5496 = vadd.f32 0.0, %v5495
        %v5497 = vpop.f32.mrb[0].mxu0
        %5498 = vmatprep.mubr.bf16.mxu0 0
        %5499 = vmatmul.mubr.bf16.gmra.mrb[0].mxu0 %v5414
        %v5500 = vpop.f32.mrb[0].mxu0
        %v5501 = vadd.f32 0.0, %v5500
        %v5502 = vpop.f32.mrb[0].mxu0
        %v5503 = vpop.f32.mrb[0].mxu0
        %v5504 = vadd.f32 0.0, %v5503
        %v5505 = vpop.f32.mrb[0].mxu0
        %5506 = vmatprep.mubr.bf16.mxu0 0
        %5507 = vmatmul.mubr.bf16.gmra.mrb[0].mxu0 %v5417
        %v5508 = vpop.f32.mrb[0].mxu0
        %v5509 = vadd.f32 0.0, %v5508
        %v5510 = vpop.f32.mrb[0].mxu0
        %v5511 = vpop.f32.mrb[0].mxu0
        %v5512 = vadd.f32 0.0, %v5511
        %v5513 = vpop.f32.mrb[0].mxu0
        %5514 = vmatprep.mubr.bf16.mxu0 0
        %5515 = vmatmul.mubr.bf16.gmra.mrb[0].mxu0 %v5420
        %v5516 = vpop.f32.mrb[0].mxu0
        %v5517 = vadd.f32 0.0, %v5516
        %v5518 = vpop.f32.mrb[0].mxu0
        %v5519 = vpop.f32.mrb[0].mxu0
        %v5520 = vadd.f32 0.0, %v5519
        %v5521 = vpop.f32.mrb[0].mxu0
        %5522 = vmatprep.mubr.bf16.mxu0 0
        %5523 = vmatmul.mubr.bf16.gmra.mrb[0].mxu0 %v5423
        %v5524 = vpop.f32.mrb[0].mxu0
        %v5525 = vadd.f32 0.0, %v5524
        %v5526 = vpop.f32.mrb[0].mxu0
        %v5527 = vpop.f32.mrb[0].mxu0
        %v5528 = vadd.f32 0.0, %v5527
        %v5529 = vpop.f32.mrb[0].mxu0
        %5530 = vmatprep.mubr.bf16.mxu0 0
        %5531 = vmatmul.mubr.bf16.gmra.mrb[0].mxu0 %v5426
        %v5532 = vpop.f32.mrb[0].mxu0
        %v5533 = vadd.f32 0.0, %v5532
        %v5534 = vpop.f32.mrb[0].mxu0
        %v5535 = vpop.f32.mrb[0].mxu0
        %v5536 = vadd.f32 0.0, %v5535
        %v5537 = vpop.f32.mrb[0].mxu0
        %5538 = vmatprep.mubr.bf16.mxu0 0
        %5539 = vmatmul.mubr.bf16.gmra.mrb[0].mxu0 %v5429
        %v5540 = vpop.f32.mrb[0].mxu0
        %v5541 = vadd.f32 0.0, %v5540
        %v5542 = vpop.f32.mrb[0].mxu0
        %v5543 = vpop.f32.mrb[0].mxu0
        %v5544 = vadd.f32 0.0, %v5543
        %v5545 = vpop.f32.mrb[0].mxu0
        %5546 = vmatprep.mubr.bf16.mxu0 0
        %5547 = vmatmul.mubr.bf16.gmra.mrb[0].mxu0 %v5432
        %v5548 = vpop.f32.mrb[0].mxu0
        %v5549 = vadd.f32 0.0, %v5548
        %v5550 = vpop.f32.mrb[0].mxu0
        %v5551 = vpop.f32.mrb[0].mxu0
        %v5552 = vadd.f32 0.0, %v5551
        %v5553 = vpop.f32.mrb[0].mxu0
        %5554 = vmatprep.mubr.bf16.mxu0 0
        %5555 = vmatmul.mubr.bf16.gmra.mrb[0].mxu0 %v5435
        %v5556 = vpop.f32.mrb[0].mxu0
        %v5557 = vadd.f32 0.0, %v5556
        %v5558 = vpop.f32.mrb[0].mxu0
        %v5559 = vpop.f32.mrb[0].mxu0
        %v5560 = vadd.f32 0.0, %v5559
        %v5561 = vpop.f32.mrb[0].mxu0
        %5562 = vmatprep.mubr.bf16.mxu0 0
        %5563 = vmatmul.mubr.bf16.gmra.mrb[0].mxu0 %v5438
        %v5564 = vpop.f32.mrb[0].mxu0
        %v5565 = vadd.f32 0.0, %v5564
        %v5566 = vpop.f32.mrb[0].mxu0
        %v5567 = vpop.f32.mrb[0].mxu0
        %v5568 = vadd.f32 0.0, %v5567
        %v5569 = vpop.f32.mrb[0].mxu0
        %5570 = vmatprep.mubr.bf16.mxu0 0
        %5571 = vmatmul.mubr.bf16.gmra.mrb[0].mxu0 %v5441
        %v5572 = vpop.f32.mrb[0].mxu0
        %v5573 = vadd.f32 0.0, %v5572
        %v5574 = vpop.f32.mrb[0].mxu0
        %v5575 = vpop.f32.mrb[0].mxu0
        %v5576 = vadd.f32 0.0, %v5575
        %v5577 = vpop.f32.mrb[0].mxu0
        %5578 = vmatprep.mubr.bf16.mxu0 0
        %5579 = vmatmul.mubr.bf16.gmra.mrb[0].mxu0 %v5444
        %v5580 = vpop.f32.mrb[0].mxu0
        %v5581 = vadd.f32 0.0, %v5580
        %v5582 = vpop.f32.mrb[0].mxu0
        %v5583 = vpop.f32.mrb[0].mxu0
        %v5584 = vadd.f32 0.0, %v5583
        %v5585 = vpop.f32.mrb[0].mxu0
        %5586 = vmatprep.mubr.bf16.mxu0 0
        %5587 = vmatmul.mubr.bf16.gmra.mrb[0].mxu0 %v5447
        %v5588 = vpop.f32.mrb[0].mxu0
        %v5589 = vadd.f32 0.0, %v5588
        %v5590 = vpop.f32.mrb[0].mxu0
        %v5591 = vpop.f32.mrb[0].mxu0
        %v5592 = vadd.f32 0.0, %v5591
        %v5593 = vpop.f32.mrb[0].mxu0
        %5594 = vmatprep.mubr.bf16.mxu0 0
        %5595 = vmatmul.mubr.bf16.gmra.mrb[0].mxu0 %v5450
        %v5596 = vpop.f32.mrb[0].mxu0
        %v5597 = vadd.f32 0.0, %v5596
        %v5598 = vpop.f32.mrb[0].mxu0
        %v5599 = vpop.f32.mrb[0].mxu0
        %v5600 = vadd.f32 0.0, %v5599
        %v5601 = vpop.f32.mrb[0].mxu0
        %5602 = vmatprep.mubr.bf16.mxu0 0
        %5603 = vmatmul.mubr.bf16.gmra.mrb[0].mxu0 %v5453
        %v5604 = vpop.f32.mrb[0].mxu0
        %v5605 = vadd.f32 0.0, %v5604
        %v5606 = vpop.f32.mrb[0].mxu0
        %v5607 = vpop.f32.mrb[0].mxu0
        %v5608 = vadd.f32 0.0, %v5607
        %v5609 = vpop.f32.mrb[0].mxu0
        %5610 = vmatprep.mubr.bf16.mxu0 0
        %5611 = vmatmul.mubr.bf16.gmra.mrb[0].mxu0 %v5456
        %v5612 = vpop.f32.mrb[0].mxu0
        %v5613 = vadd.f32 0.0, %v5612
        %v5614 = vpop.f32.mrb[0].mxu0
        %v5615 = vpop.f32.mrb[0].mxu0
        %v5616 = vadd.f32 0.0, %v5615
        %v5617 = vpop.f32.mrb[0].mxu0
        %5618 = vdwg.mxu0
        %v5619 = vadd.f32 %v5121, %v5493
        %v5620 = vadd.f32 %v5122, %v5496
        %v5621 = vadd.f32 %v5123, %v5501
        %v5622 = vadd.f32 %v5124, %v5504
        %v5623 = vadd.f32 %v5125, %v5509
        %v5624 = vadd.f32 %v5126, %v5512
        %v5625 = vadd.f32 %v5127, %v5517
        %v5626 = vadd.f32 %v5128, %v5520
        %v5627 = vadd.f32 %v5129, %v5525
        %v5628 = vadd.f32 %v5130, %v5528
        %v5629 = vadd.f32 %v5131, %v5533
        %v5630 = vadd.f32 %v5132, %v5536
        %v5631 = vadd.f32 %v5133, %v5541
        %v5632 = vadd.f32 %v5134, %v5544
        %v5633 = vadd.f32 %v5135, %v5549
        %v5634 = vadd.f32 %v5136, %v5552
        %v5635 = vadd.f32 %v5137, %v5557
        %v5636 = vadd.f32 %v5138, %v5560
        %v5637 = vadd.f32 %v5139, %v5565
        %v5638 = vadd.f32 %v5140, %v5568
        %v5639 = vadd.f32 %v5141, %v5573
        %v5640 = vadd.f32 %v5142, %v5576
        %v5641 = vadd.f32 %v5143, %v5581
        %v5642 = vadd.f32 %v5144, %v5584
        %v5643 = vadd.f32 %v5145, %v5589
        %v5644 = vadd.f32 %v5146, %v5592
        %v5645 = vadd.f32 %v5147, %v5597
        %v5646 = vadd.f32 %v5148, %v5600
        %v5647 = vadd.f32 %v5149, %v5605
        %v5648 = vadd.f32 %v5150, %v5608
        %v5649 = vadd.f32 %v5151, %v5613
        %v5650 = vadd.f32 %v5152, %v5616
        %v5651 = vld [vmem:[%s2] sm:$0x1]
        %v5653 = vlaneseq
        %v5654 = vshrl.u32 %v5653, 7
        %v5655 = vsub.s32 0, %v5654
        %v5656 = vrot.slane %v5651, %v5655
        %v5658 = vmul.f32 %v5619, %v5656
        %v5659 = vmul.f32 %v5620, %v5656
        %v5660 = vmul.f32 %v5621, %v5656
        %v5661 = vmul.f32 %v5622, %v5656
        %v5662 = vmul.f32 %v5623, %v5656
        %v5663 = vmul.f32 %v5624, %v5656
        %v5664 = vmul.f32 %v5625, %v5656
        %v5665 = vmul.f32 %v5626, %v5656
        %v5666 = vmul.f32 %v5627, %v5656
        %v5667 = vmul.f32 %v5628, %v5656
        %v5668 = vmul.f32 %v5629, %v5656
        %v5669 = vmul.f32 %v5630, %v5656
        %v5670 = vmul.f32 %v5631, %v5656
        %v5671 = vmul.f32 %v5632, %v5656
        %v5672 = vmul.f32 %v5633, %v5656
        %v5673 = vmul.f32 %v5634, %v5656
        %v5674 = vmul.f32 %v5635, %v5656
        %v5675 = vmul.f32 %v5636, %v5656
        %v5676 = vmul.f32 %v5637, %v5656
        %v5677 = vmul.f32 %v5638, %v5656
        %v5678 = vmul.f32 %v5639, %v5656
        %v5679 = vmul.f32 %v5640, %v5656
        %v5680 = vmul.f32 %v5641, %v5656
        %v5681 = vmul.f32 %v5642, %v5656
        %v5682 = vmul.f32 %v5643, %v5656
        %v5683 = vmul.f32 %v5644, %v5656
        %v5684 = vmul.f32 %v5645, %v5656
        %v5685 = vmul.f32 %v5646, %v5656
        %v5686 = vmul.f32 %v5647, %v5656
        %v5687 = vmul.f32 %v5648, %v5656
        %v5688 = vmul.f32 %v5649, %v5656
        %v5689 = vmul.f32 %v5650, %v5656
        %v5690 = vld [vmem:[%s3] sm:$0x1]
        %v5692 = vlaneseq
        %v5693 = vshrl.u32 %v5692, 7
        %v5694 = vsub.s32 0, %v5693
        %v5695 = vrot.slane %v5690, %v5694
        %v5697 = vadd.f32 %v5658, %v5695
        %v5698 = vadd.f32 %v5659, %v5695
        %v5699 = vadd.f32 %v5660, %v5695
        %v5700 = vadd.f32 %v5661, %v5695
        %v5701 = vadd.f32 %v5662, %v5695
        %v5702 = vadd.f32 %v5663, %v5695
        %v5703 = vadd.f32 %v5664, %v5695
        %v5704 = vadd.f32 %v5665, %v5695
        %v5705 = vadd.f32 %v5666, %v5695
        %v5706 = vadd.f32 %v5667, %v5695
        %v5707 = vadd.f32 %v5668, %v5695
        %v5708 = vadd.f32 %v5669, %v5695
        %v5709 = vadd.f32 %v5670, %v5695
        %v5710 = vadd.f32 %v5671, %v5695
        %v5711 = vadd.f32 %v5672, %v5695
        %v5712 = vadd.f32 %v5673, %v5695
        %v5713 = vadd.f32 %v5674, %v5695
        %v5714 = vadd.f32 %v5675, %v5695
        %v5715 = vadd.f32 %v5676, %v5695
        %v5716 = vadd.f32 %v5677, %v5695
        %v5717 = vadd.f32 %v5678, %v5695
        %v5718 = vadd.f32 %v5679, %v5695
        %v5719 = vadd.f32 %v5680, %v5695
        %v5720 = vadd.f32 %v5681, %v5695
        %v5721 = vadd.f32 %v5682, %v5695
        %v5722 = vadd.f32 %v5683, %v5695
        %v5723 = vadd.f32 %v5684, %v5695
        %v5724 = vadd.f32 %v5685, %v5695
        %v5725 = vadd.f32 %v5686, %v5695
        %v5726 = vadd.f32 %v5687, %v5695
        %v5727 = vadd.f32 %v5688, %v5695
        %v5728 = vadd.f32 %v5689, %v5695
        %v5729 = vmax.f32 %v5697, 0.0
        %v5730 = vmax.f32 %v5698, 0.0
        %v5731 = vmax.f32 %v5699, 0.0
        %v5732 = vmax.f32 %v5700, 0.0
        %v5733 = vmax.f32 %v5701, 0.0
        %v5734 = vmax.f32 %v5702, 0.0
        %v5735 = vmax.f32 %v5703, 0.0
        %v5736 = vmax.f32 %v5704, 0.0
        %v5737 = vmax.f32 %v5705, 0.0
        %v5738 = vmax.f32 %v5706, 0.0
        %v5739 = vmax.f32 %v5707, 0.0
        %v5740 = vmax.f32 %v5708, 0.0
        %v5741 = vmax.f32 %v5709, 0.0
        %v5742 = vmax.f32 %v5710, 0.0
        %v5743 = vmax.f32 %v5711, 0.0
        %v5744 = vmax.f32 %v5712, 0.0
        %v5745 = vmax.f32 %v5713, 0.0
        %v5746 = vmax.f32 %v5714, 0.0
        %v5747 = vmax.f32 %v5715, 0.0
        %v5748 = vmax.f32 %v5716, 0.0
        %v5749 = vmax.f32 %v5717, 0.0
        %v5750 = vmax.f32 %v5718, 0.0
        %v5751 = vmax.f32 %v5719, 0.0
        %v5752 = vmax.f32 %v5720, 0.0
        %v5753 = vmax.f32 %v5721, 0.0
        %v5754 = vmax.f32 %v5722, 0.0
        %v5755 = vmax.f32 %v5723, 0.0
        %v5756 = vmax.f32 %v5724, 0.0
        %v5757 = vmax.f32 %v5725, 0.0
        %v5758 = vmax.f32 %v5726, 0.0
        %v5759 = vmax.f32 %v5727, 0.0
        %v5760 = vmax.f32 %v5728, 0.0
        %v5761 = vpack.c.bf16 %v5730, %v5729
        %v5762 = vpack.c.bf16 %v5732, %v5731
        %v5763 = vpack.c.bf16 %v5734, %v5733
        %v5764 = vpack.c.bf16 %v5736, %v5735
        %v5765 = vpack.c.bf16 %v5738, %v5737
        %v5766 = vpack.c.bf16 %v5740, %v5739
        %v5767 = vpack.c.bf16 %v5742, %v5741
        %v5768 = vpack.c.bf16 %v5744, %v5743
        %v5769 = vpack.c.bf16 %v5746, %v5745
        %v5770 = vpack.c.bf16 %v5748, %v5747
        %v5771 = vpack.c.bf16 %v5750, %v5749
        %v5772 = vpack.c.bf16 %v5752, %v5751
        %v5773 = vpack.c.bf16 %v5754, %v5753
        %v5774 = vpack.c.bf16 %v5756, %v5755
        %v5775 = vpack.c.bf16 %v5758, %v5757
        %v5776 = vpack.c.bf16 %v5760, %v5759
        %v5793 = vunpack.c.l.b16 %v5761
        %v5794 = vunpack.c.h.b16 %v5761
        %v5795 = vunpack.c.l.b16 %v5762
        %v5796 = vunpack.c.h.b16 %v5762
        %v5797 = vunpack.c.l.b16 %v5763
        %v5798 = vunpack.c.h.b16 %v5763
        %v5799 = vunpack.c.l.b16 %v5764
        %v5800 = vunpack.c.h.b16 %v5764
        %v5801 = vunpack.c.l.b16 %v5765
        %v5802 = vunpack.c.h.b16 %v5765
        %v5803 = vunpack.c.l.b16 %v5766
        %v5804 = vunpack.c.h.b16 %v5766
        %v5805 = vunpack.c.l.b16 %v5767
        %v5806 = vunpack.c.h.b16 %v5767
        %v5807 = vunpack.c.l.b16 %v5768
        %v5808 = vunpack.c.h.b16 %v5768
        %v5809 = vunpack.c.l.b16 %v5769
        %v5810 = vunpack.c.h.b16 %v5769
        %v5811 = vunpack.c.l.b16 %v5770
        %v5812 = vunpack.c.h.b16 %v5770
        %v5813 = vunpack.c.l.b16 %v5771
        %v5814 = vunpack.c.h.b16 %v5771
        %v5815 = vunpack.c.l.b16 %v5772
        %v5816 = vunpack.c.h.b16 %v5772
        %v5817 = vunpack.c.l.b16 %v5773
        %v5818 = vunpack.c.h.b16 %v5773
        %v5819 = vunpack.c.l.b16 %v5774
        %v5820 = vunpack.c.h.b16 %v5774
        %v5821 = vunpack.c.l.b16 %v5775
        %v5822 = vunpack.c.h.b16 %v5775
        %v5823 = vunpack.c.l.b16 %v5776
        %v5824 = vunpack.c.h.b16 %v5776
        %v5825 = vpack.c.b16 %v5793, %v5793
        %v5826 = vpack.c.b16 %v5794, %v5794
        %v5827 = vpack.c.b16 %v5795, %v5795
        %v5828 = vpack.c.b16 %v5796, %v5796
        %v5829 = vpack.c.b16 %v5797, %v5797
        %v5830 = vpack.c.b16 %v5798, %v5798
        %v5831 = vpack.c.b16 %v5799, %v5799
        %v5832 = vpack.c.b16 %v5800, %v5800
        %v5833 = vpack.c.b16 %v5801, %v5801
        %v5834 = vpack.c.b16 %v5802, %v5802
        %v5835 = vpack.c.b16 %v5803, %v5803
        %v5836 = vpack.c.b16 %v5804, %v5804
        %v5837 = vpack.c.b16 %v5805, %v5805
        %v5838 = vpack.c.b16 %v5806, %v5806
        %v5839 = vpack.c.b16 %v5807, %v5807
        %v5840 = vpack.c.b16 %v5808, %v5808
        %v5841 = vpack.c.b16 %v5809, %v5809
        %v5842 = vpack.c.b16 %v5810, %v5810
        %v5843 = vpack.c.b16 %v5811, %v5811
        %v5844 = vpack.c.b16 %v5812, %v5812
        %v5845 = vpack.c.b16 %v5813, %v5813
        %v5846 = vpack.c.b16 %v5814, %v5814
        %v5847 = vpack.c.b16 %v5815, %v5815
        %v5848 = vpack.c.b16 %v5816, %v5816
        %v5849 = vpack.c.b16 %v5817, %v5817
        %v5850 = vpack.c.b16 %v5818, %v5818
        %v5851 = vpack.c.b16 %v5819, %v5819
        %v5852 = vpack.c.b16 %v5820, %v5820
        %v5853 = vpack.c.b16 %v5821, %v5821
        %v5854 = vpack.c.b16 %v5822, %v5822
        %v5855 = vpack.c.b16 %v5823, %v5823
        %v5856 = vpack.c.b16 %v5824, %v5824
        %vm5889 = vcmask 257024
        %5890 = vst.msk [vmem:[%s215] sm:$0xf] %vm5889, %v5825
        %5891 = vst.msk [vmem:[%s215 + $0x4] sm:$0xf] %vm5889, %v5826
        %5892 = vst.msk [vmem:[%s215 + $0x8] sm:$0xf] %vm5889, %v5827
        %5893 = vst.msk [vmem:[%s215 + $0xc] sm:$0xf] %vm5889, %v5828
        %5894 = vst.msk [vmem:[%s215 + $0x10] sm:$0xf] %vm5889, %v5829
        %5895 = vst.msk [vmem:[%s215 + $0x14] sm:$0xf] %vm5889, %v5830
        %5896 = vst.msk [vmem:[%s215 + $0x18] sm:$0xf] %vm5889, %v5831
        %5897 = vst.msk [vmem:[%s215 + $0x1c] sm:$0xf] %vm5889, %v5832
        %5898 = vst.msk [vmem:[%s215 + $0x20] sm:$0xf] %vm5889, %v5833
        %5899 = vst.msk [vmem:[%s215 + $0x24] sm:$0xf] %vm5889, %v5834
        %5900 = vst.msk [vmem:[%s215 + $0x28] sm:$0xf] %vm5889, %v5835
        %5901 = vst.msk [vmem:[%s215 + $0x2c] sm:$0xf] %vm5889, %v5836
        %5902 = vst.msk [vmem:[%s215 + $0x30] sm:$0xf] %vm5889, %v5837
        %5903 = vst.msk [vmem:[%s215 + $0x34] sm:$0xf] %vm5889, %v5838
        %5904 = vst.msk [vmem:[%s215 + $0x38] sm:$0xf] %vm5889, %v5839
        %5905 = vst.msk [vmem:[%s215 + $0x3c] sm:$0xf] %vm5889, %v5840
        %5906 = vst.msk [vmem:[%s215 + $0x40] sm:$0xf] %vm5889, %v5841
        %5907 = vst.msk [vmem:[%s215 + $0x44] sm:$0xf] %vm5889, %v5842
        %5908 = vst.msk [vmem:[%s215 + $0x48] sm:$0xf] %vm5889, %v5843
        %5909 = vst.msk [vmem:[%s215 + $0x4c] sm:$0xf] %vm5889, %v5844
        %5910 = vst.msk [vmem:[%s215 + $0x50] sm:$0xf] %vm5889, %v5845
        %5911 = vst.msk [vmem:[%s215 + $0x54] sm:$0xf] %vm5889, %v5846
        %5912 = vst.msk [vmem:[%s215 + $0x58] sm:$0xf] %vm5889, %v5847
        %5913 = vst.msk [vmem:[%s215 + $0x5c] sm:$0xf] %vm5889, %v5848
        %5914 = vst.msk [vmem:[%s215 + $0x60] sm:$0xf] %vm5889, %v5849
        %5915 = vst.msk [vmem:[%s215 + $0x64] sm:$0xf] %vm5889, %v5850
        %5916 = vst.msk [vmem:[%s215 + $0x68] sm:$0xf] %vm5889, %v5851
        %5917 = vst.msk [vmem:[%s215 + $0x6c] sm:$0xf] %vm5889, %v5852
        %5918 = vst.msk [vmem:[%s215 + $0x70] sm:$0xf] %vm5889, %v5853
        %5919 = vst.msk [vmem:[%s215 + $0x74] sm:$0xf] %vm5889, %v5854
        %5920 = vst.msk [vmem:[%s215 + $0x78] sm:$0xf] %vm5889, %v5855
        %5921 = vst.msk [vmem:[%s215 + $0x7c] sm:$0xf] %vm5889, %v5856
        %s5922 = sand.u32 %s118, 1
        %s5923 = scalar_lea.sflag [#allocation5], %s5922
        %s5924 = sand.u32 %s118, 1
        %s5925 = smul.addr %s5924, 128
        %s5926 = scalar_lea.vmem [#allocation6], %s5925
        // Predicated region
        $region41: #{tpu_custom_call.1} parent=35 // pred_check
          %p5927 = pneg %p128
        $region42: #{tpu_custom_call.1} parent=35 // pred_check_branch
          %5929 = sbr.rel (%p5927) target = $region44
        $region43: #{tpu_custom_call.1} parent=35 // pred_region
          %s5931 = ssub.s32 2048, 2048
          %5932 = vsyncadd %s5923, %s5931
          %s5933 = smul.addr %s21, 32
          %s5934 = smul.addr %s5933, 64
          %s5935 = scalar_lea.hbm %s4, %s5934
          %s5936 = sshll.u32 %s5926, 4
          %s5937 = int_to_ptr.vmem [resolvable:$true] %s5936
          %5942 = dma.vmem_to_hbm [thread:$0]  %s5937, 2048, %s5935, %s5923, 64, 64, 4
        $region44: #{tpu_custom_call.1} parent=35 // pred_fallthru
          _
      $region36: #{tpu_custom_call.1} parent=5 // pred_fallthru
        _
      %p5943 = scmp.le.s32.totalorder 2, %s16
      // Predicated region
      $region45: #{tpu_custom_call.1} parent=5 // pred_check
        %p5944 = pneg %p5943
      $region46: #{tpu_custom_call.1} parent=5 // pred_check_branch
        %5946 = sbr.rel (%p5944) target = $region48
      $region47: #{tpu_custom_call.1} parent=5 // pred_region
        %s5947 = ssub.s32 %s16, 2
        // Predicated region
        $region49: #{tpu_custom_call.1} parent=47 // pred_check
          %p5948 = pneg %p134
        $region50: #{tpu_custom_call.1} parent=47 // pred_check_branch
          %5950 = sbr.rel (%p5948) target = $region52
        $region51: #{tpu_custom_call.1} parent=47 // pred_region
          %s5951 = sand.u32 %s119, 1
          %s5952 = scalar_lea.sflag [#allocation5], %s5951
          %s5953 = sand.u32 %s119, 1
          %s5954 = smul.addr %s5953, 128
          %s5955 = scalar_lea.vmem [#allocation6], %s5954
          %5956 = dma.done %s5952, 2048
        $region52: #{tpu_custom_call.1} parent=47 // pred_fallthru
          _
      $region48: #{tpu_custom_call.1} parent=5 // pred_fallthru
        _
    $region6: #{tpu_custom_call.1} parent=1 // loop_footer
      %s20 = sadd.s32 1, %s16
    $region7: #{tpu_custom_call.1} parent=1 // loop_footer_branch
      %15 = sbr.rel target = $region3
    $region8: #{tpu_custom_call.1} parent=1 // loop_exit
      _
    %5957 = vsyncpa [#allocation4], 1
    %s5958 = scalar_lea.sflag [#allocation4], 1
    %5959 = vsyncpa %s5958, 1
    %5960 = vsyncpa [#allocation5], 1
    %s5961 = scalar_lea.sflag [#allocation5], 1
    %5962 = vsyncpa %s5961, 1

</llo_original>
